<compile_context>
chip_gen: v5e
topology: v5e:2x2
jax: 0.10.0
libtpu: 0.0.40
codegen_flags: <defaults>
</compile_context>

<pallas_src>
import jax
import jax.numpy as jnp
from jax.experimental import pallas as pl
from jax.experimental.pallas import tpu as pltpu

_LANE = 128


def _bottleneck_kernel(x_ref,
                       w1_ref, b1_ref,
                       w2_ref, b2_ref,
                       w3_ref, b3_ref,
                       wsk_ref, bsk_ref,
                       out_ref):
    bt, H, W, cin = x_ref.shape
    mid = w1_ref.shape[1]
    cout = w3_ref.shape[1]
    M = bt * H * W                                     # rows fed to the MXU

    x = x_ref[...].reshape(M, cin)                     # bf16 (M, cin)

    # ---- fit_: 1x1 reduce (BN scale pre-folded) + shift + ReLU -------------
    y1f = jnp.dot(x, w1_ref[...], preferred_element_type=jnp.float32)
    y1f = jnp.maximum(y1f + b1_ref[...], 0.0)          # f32 (M, mid), only live buf

    # ---- 3x3 conv, padding=1, stride=1, as a single im2col matmul ----------
    # A (di, dj) spatial shift is a shift of di*W + dj along the flattened
    # bt*H*W axis (pltpu.roll -> XLU rotate); positions whose source pixel
    # falls outside the image (incl. cross-image wrap) are masked to zero.
    # Masks are built at lane-width 1 and broadcast in the select.
    if (H & (H - 1)) == 0 and (W & (W - 1)) == 0:
        p = jax.lax.broadcasted_iota(jnp.int32, (M, 1), 0)
        col = p & (W - 1)
        row = (p >> (W.bit_length() - 1)) & (H - 1)
    else:
        row = jax.lax.broadcasted_iota(jnp.int32, (bt, H, W, 1), 1).reshape(M, 1)
        col = jax.lax.broadcasted_iota(jnp.int32, (bt, H, W, 1), 2).reshape(M, 1)
    row_ok = {d: jnp.logical_and(row + d >= 0, row + d < H) for d in (-1, 0, 1)}
    col_ok = {d: jnp.logical_and(col + d >= 0, col + d < W) for d in (-1, 0, 1)}

    taps = []
    for di in (-1, 0, 1):
        for dj in (-1, 0, 1):
            if di == 0 and dj == 0:
                taps.append(y1f.astype(jnp.bfloat16))
            else:
                shift = (-(di * W + dj)) % M
                shifted = pltpu.roll(y1f, shift=shift, axis=0)
                mask = jnp.logical_and(row_ok[di], col_ok[dj])     # (M, 1)
                taps.append(jnp.where(mask, shifted, 0.0).astype(jnp.bfloat16))
    patches = jnp.concatenate(taps, axis=1)            # bf16 (M, 9*mid)
    y2 = jnp.dot(patches, w2_ref[...], preferred_element_type=jnp.float32)
    y2 = jnp.maximum(y2 + b2_ref[...], 0.0).astype(jnp.bfloat16)   # bf16 (M, mid)

    # ---- skip: 1x1 projection + shift (deferred to just before epilogue) ---
    sk = jnp.dot(x, wsk_ref[...], preferred_element_type=jnp.float32)
    sk = sk + bsk_ref[...]                             # f32 (M, cout)

    # ---- 1x1 expand + shift, fused residual add + ReLU ---------------------
    out = jnp.dot(y2, w3_ref[...], preferred_element_type=jnp.float32)
    out = jnp.maximum(out + b3_ref[...] + sk, 0.0)
    out_ref[...] = out.reshape(bt, H, W, cout).astype(out_ref.dtype)


def _tensorcores_per_chip():
    try:
        kind = jax.devices()[0].device_kind.lower()
    except Exception:
        return 1
    return 2 if ("v7" in kind or "7x" in kind) else 1


def bottleneck_pallas(x, params, stride_one=1, batch_tile=None, slice_output=True):
    """x: (B, H, W, Cin) float32, NHWC."""
    if stride_one != 1:
        # 1x1 conv with stride s == same conv on the strided spatial subsample
        # (both branches start with a stride-s 1x1 conv).
        x = x[:, ::stride_one, ::stride_one, :]
    B, H, W, cin = x.shape
    mid = params["w1"].shape[1]
    cout = params["w3"].shape[1]

    cin_p = pl.cdiv(cin, _LANE) * _LANE
    mid_p = pl.cdiv(mid, _LANE) * _LANE
    cout_p = pl.cdiv(cout, _LANE) * _LANE

    def pad2(a, r, c):
        return jnp.pad(a, ((0, r - a.shape[-2]), (0, c - a.shape[-1])))

    # Fold BN scale into the conv weights; keep the shift as an f32 bias.
    # Zero-pad all channel dims to the 128-lane width (padded channels stay
    # exactly zero through every stage and are sliced off at the end).
    w1 = pad2(params["w1"] * params["s1"], cin_p, mid_p).astype(jnp.bfloat16)
    b1 = pad2(params["b1"], 1, mid_p).astype(jnp.float32)
    w2 = params["w2"] * params["s2"].reshape(1, 1, 1, -1)            # (3,3,mid,mid)
    w2 = jnp.pad(w2, ((0, 0), (0, 0), (0, mid_p - mid), (0, mid_p - mid)))
    w2 = w2.reshape(9 * mid_p, mid_p).astype(jnp.bfloat16)           # im2col layout
    b2 = pad2(params["b2"], 1, mid_p).astype(jnp.float32)
    w3 = pad2(params["w3"] * params["s3"], mid_p, cout_p).astype(jnp.bfloat16)
    b3 = pad2(params["b3"], 1, cout_p).astype(jnp.float32)
    wsk = pad2(params["wsk"] * params["ssk"], cin_p, cout_p).astype(jnp.bfloat16)
    bsk = pad2(params["bsk"], 1, cout_p).astype(jnp.float32)

    # Cast before padding so the pad moves bf16 bytes; XLA fuses this chain.
    xp = jnp.pad(x.astype(jnp.bfloat16), ((0, 0), (0, 0), (0, 0), (0, cin_p - cin)))

    if batch_tile is None:
        # v7x has 2 TensorCores and shards "parallel" grid axes across them;
        # give it >= 2 grid steps.  v5e/v6e: one step (avoid per-step overhead).
        n_tc = _tensorcores_per_chip()
        batch_tile = B // n_tc if (n_tc > 1 and B % n_tc == 0) else B
    assert B % batch_tile == 0
    bt = batch_tile

    weights = [w1, b1, w2, b2, w3, b3, wsk, bsk]

    def full_spec(a):
        n = a.ndim
        return pl.BlockSpec(a.shape, lambda b: (0,) * n)

    in_specs = [pl.BlockSpec((bt, H, W, cin_p), lambda b: (b, 0, 0, 0))]
    in_specs += [full_spec(a) for a in weights]

    grid_spec = pltpu.PrefetchScalarGridSpec(
        num_scalar_prefetch=0,
        grid=(B // bt,),
        in_specs=in_specs,
        out_specs=pl.BlockSpec((bt, H, W, cout_p), lambda b: (b, 0, 0, 0)),
    )

    out = pl.pallas_call(
        _bottleneck_kernel,
        out_shape=jax.ShapeDtypeStruct((B, H, W, cout_p), jnp.bfloat16),
        grid_spec=grid_spec,
        compiler_params=pltpu.CompilerParams(
            dimension_semantics=("parallel",),
            vmem_limit_bytes=32 * 1024 * 1024,
        ),
    )(xp, *weights)

    # For chained blocks keep the padded cout (slice once at the network end).
    return out[..., :cout] if slice_output else out


# ---------------- parameter init (deterministic, synthetic) -----------------
def init_params(key, in_channels, middle_channels):
    out_channels = middle_channels * 4
    ks = jax.random.split(key, 12)

    def bn(kg, kb, c):
        # Fresh nn.BatchNorm2d (eval semantics): running_mean=0, running_var=1.
        gamma = 1.0 + 0.1 * jax.random.normal(kg, (c,), jnp.float32)
        beta = 0.1 * jax.random.normal(kb, (c,), jnp.float32)
        rm = jnp.zeros((c,), jnp.float32)
        rv = jnp.ones((c,), jnp.float32)
        eps = 1e-5
        scale = gamma / jnp.sqrt(rv + eps)
        shift = beta - rm * scale
        return scale.reshape(1, c), shift.reshape(1, c)

    w1 = 0.1 * jax.random.normal(ks[0], (in_channels, middle_channels), jnp.float32)
    s1, b1 = bn(ks[1], ks[2], middle_channels)
    w2 = 0.1 * jax.random.normal(ks[3], (3, 3, middle_channels, middle_channels),
                                 jnp.float32)
    s2, b2 = bn(ks[4], ks[5], middle_channels)
    w3 = 0.1 * jax.random.normal(ks[6], (middle_channels, out_channels), jnp.float32)
    s3, b3 = bn(ks[7], ks[8], out_channels)
    wsk = 0.1 * jax.random.normal(ks[9], (in_channels, out_channels), jnp.float32)
    ssk, bsk = bn(ks[10], ks[11], out_channels)
    return dict(w1=w1, s1=s1, b1=b1, w2=w2, s2=s2, b2=b2,
                w3=w3, s3=s3, b3=b3, wsk=wsk, ssk=ssk, bsk=bsk)


# ---------------- pure-JAX reference (for correctness check) ----------------
def bottleneck_ref(x, params, stride_one=1):
    dn = ("NHWC", "HWIO", "NHWC")

    def c1(z, w, s, b, stride=1):
        y = jax.lax.conv_general_dilated(
            z, w.reshape(1, 1, *w.shape), (stride, stride), "VALID",
            dimension_numbers=dn)
        return y * s.reshape(1, 1, 1, -1) + b.reshape(1, 1, 1, -1)

    def c3(z, w, s, b):
        y = jax.lax.conv_general_dilated(z, w, (1, 1), "SAME",
                                         dimension_numbers=dn)
        return y * s.reshape(1, 1, 1, -1) + b.reshape(1, 1, 1, -1)

    y = jax.nn.relu(c1(x, params["w1"], params["s1"], params["b1"], stride_one))
    y = jax.nn.relu(c3(y, params["w2"], params["s2"], params["b2"]))
    fx = c1(y, params["w3"], params["s3"], params["b3"])
    sk = c1(x, params["wsk"], params["ssk"], params["bsk"], stride_one)
    return jax.nn.relu(fx + sk)


if __name__ == "__main__":
    # BottleNeck(middle_channels=4, stride_one=2) -> in_channels = 2*4 = 8,
    # out_channels = 4*4 = 16. Input NHWC (2, 16, 16, 8) == NCHW (2, 8, 16, 16).
    middle = 4
    stride_one = 2
    in_channels = 2 * middle if stride_one != 1 else 4 * middle

    key = jax.random.PRNGKey(0)
    kx, kp = jax.random.split(key)
    x = jax.random.normal(kx, (2, 16, 16, in_channels), jnp.float32)
    params = init_params(kp, in_channels, middle)

    out = bottleneck_pallas(x, params, stride_one=stride_one)
    out = jax.block_until_ready(out)

    ref = bottleneck_ref(x, params, stride_one=stride_one)
    assert out.shape == ref.shape, (out.shape, ref.shape)
    outf = out.astype(jnp.float32)
    max_err = float(jnp.max(jnp.abs(outf - ref)))
    # bf16 matmuls / bf16 intermediates / bf16 output vs. the f32 reference.
    assert jnp.allclose(outf, ref, atol=5e-2, rtol=5e-2), max_err

    print("KERNEL_OK")
</pallas_src>

<mosaic_0001>
module attributes {stable_mosaic.version = 11 : i64} {
  func.func @_bottleneck_kernel(%arg0: i32, %arg1: memref<2x8x8x128xbf16, #tpu.memory_space<vmem>>, %arg2: memref<128x128xbf16, #tpu.memory_space<vmem>>, %arg3: memref<1x128xf32, #tpu.memory_space<vmem>>, %arg4: memref<1152x128xbf16, #tpu.memory_space<vmem>>, %arg5: memref<1x128xf32, #tpu.memory_space<vmem>>, %arg6: memref<128x128xbf16, #tpu.memory_space<vmem>>, %arg7: memref<1x128xf32, #tpu.memory_space<vmem>>, %arg8: memref<128x128xbf16, #tpu.memory_space<vmem>>, %arg9: memref<1x128xf32, #tpu.memory_space<vmem>>, %arg10: memref<2x8x8x128xbf16, #tpu.memory_space<vmem>>) attributes {dimension_semantics = [#tpu.dimension_semantics<parallel>], iteration_bounds = array<i64: 1>, scalar_prefetch = 0 : i64, scratch_operands = 0 : i64, tpu.core_type = #tpu.core_type<tc>, window_params = [{transform_indices = @transform_0, window_bounds = array<i64: 2, 8, 8, 128>}, {pipeline_mode = #tpu.pipeline_mode<synchronous>, transform_indices = @transform_1, window_bounds = array<i64: 128, 128>}, {pipeline_mode = #tpu.pipeline_mode<synchronous>, transform_indices = @transform_2, window_bounds = array<i64: 1, 128>}, {pipeline_mode = #tpu.pipeline_mode<synchronous>, transform_indices = @transform_3, window_bounds = array<i64: 1152, 128>}, {pipeline_mode = #tpu.pipeline_mode<synchronous>, transform_indices = @transform_4, window_bounds = array<i64: 1, 128>}, {pipeline_mode = #tpu.pipeline_mode<synchronous>, transform_indices = @transform_5, window_bounds = array<i64: 128, 128>}, {pipeline_mode = #tpu.pipeline_mode<synchronous>, transform_indices = @transform_6, window_bounds = array<i64: 1, 128>}, {pipeline_mode = #tpu.pipeline_mode<synchronous>, transform_indices = @transform_7, window_bounds = array<i64: 128, 128>}, {pipeline_mode = #tpu.pipeline_mode<synchronous>, transform_indices = @transform_8, window_bounds = array<i64: 1, 128>}, {transform_indices = @transform_9, window_bounds = array<i64: 2, 8, 8, 128>}]} {
    %c0 = arith.constant 0 : index
    %c0_0 = arith.constant 0 : index
    %c0_1 = arith.constant 0 : index
    %c0_2 = arith.constant 0 : index
    %0 = vector.load %arg1[%c0, %c0_0, %c0_1, %c0_2] : memref<2x8x8x128xbf16, #tpu.memory_space<vmem>>, vector<2x8x8x128xbf16>
    %1 = vector.shape_cast %0 : vector<2x8x8x128xbf16> to vector<128x128xbf16>
    %c0_3 = arith.constant 0 : index
    %c0_4 = arith.constant 0 : index
    %2 = vector.load %arg2[%c0_3, %c0_4] : memref<128x128xbf16, #tpu.memory_space<vmem>>, vector<128x128xbf16>
    %cst = arith.constant dense<0.000000e+00> : vector<128x128xf32>
    %3 = tpu.matmul %1, %2, %cst {dimension_numbers = #tpu.dot_dimension_numbers<[1], [0], [0], [1], [0, 0, 1, 1], [], []>} : vector<128x128xbf16>, vector<128x128xbf16>, vector<128x128xf32> -> vector<128x128xf32>
    %c0_5 = arith.constant 0 : index
    %c0_6 = arith.constant 0 : index
    %4 = vector.load %arg3[%c0_5, %c0_6] : memref<1x128xf32, #tpu.memory_space<vmem>>, vector<1x128xf32>
    %5 = vector.broadcast %4 : vector<1x128xf32> to vector<128x128xf32>
    %6 = arith.addf %3, %5 : vector<128x128xf32>
    %cst_7 = arith.constant 0.000000e+00 : f32
    %7 = vector.broadcast %cst_7 : f32 to vector<128x128xf32>
    %8 = arith.maximumf %6, %7 : vector<128x128xf32>
    %9 = tpu.iota {dimensions = array<i32: 0>} : vector<128x1xi32>
    %c7_i32 = arith.constant 7 : i32
    %10 = vector.broadcast %c7_i32 : i32 to vector<128x1xi32>
    %11 = arith.andi %9, %10 : vector<128x1xi32>
    %c3_i32 = arith.constant 3 : i32
    %12 = vector.broadcast %c3_i32 : i32 to vector<128x1xi32>
    %13 = arith.shrsi %9, %12 : vector<128x1xi32>
    %c7_i32_8 = arith.constant 7 : i32
    %14 = vector.broadcast %c7_i32_8 : i32 to vector<128x1xi32>
    %15 = arith.andi %13, %14 : vector<128x1xi32>
    %c-1_i32 = arith.constant -1 : i32
    %16 = vector.broadcast %c-1_i32 : i32 to vector<128x1xi32>
    %17 = arith.addi %15, %16 : vector<128x1xi32>
    %c0_i32 = arith.constant 0 : i32
    %18 = vector.broadcast %c0_i32 : i32 to vector<128x1xi32>
    %19 = arith.cmpi sge, %17, %18 : vector<128x1xi32>
    %c-1_i32_9 = arith.constant -1 : i32
    %20 = vector.broadcast %c-1_i32_9 : i32 to vector<128x1xi32>
    %21 = arith.addi %15, %20 : vector<128x1xi32>
    %c8_i32 = arith.constant 8 : i32
    %22 = vector.broadcast %c8_i32 : i32 to vector<128x1xi32>
    %23 = arith.cmpi slt, %21, %22 : vector<128x1xi32>
    %24 = arith.andi %19, %23 : vector<128x1xi1>
    %c0_i32_10 = arith.constant 0 : i32
    %25 = vector.broadcast %c0_i32_10 : i32 to vector<128x1xi32>
    %26 = arith.addi %15, %25 : vector<128x1xi32>
    %c0_i32_11 = arith.constant 0 : i32
    %27 = vector.broadcast %c0_i32_11 : i32 to vector<128x1xi32>
    %28 = arith.cmpi sge, %26, %27 : vector<128x1xi32>
    %c0_i32_12 = arith.constant 0 : i32
    %29 = vector.broadcast %c0_i32_12 : i32 to vector<128x1xi32>
    %30 = arith.addi %15, %29 : vector<128x1xi32>
    %c8_i32_13 = arith.constant 8 : i32
    %31 = vector.broadcast %c8_i32_13 : i32 to vector<128x1xi32>
    %32 = arith.cmpi slt, %30, %31 : vector<128x1xi32>
    %33 = arith.andi %28, %32 : vector<128x1xi1>
    %c1_i32 = arith.constant 1 : i32
    %34 = vector.broadcast %c1_i32 : i32 to vector<128x1xi32>
    %35 = arith.addi %15, %34 : vector<128x1xi32>
    %c0_i32_14 = arith.constant 0 : i32
    %36 = vector.broadcast %c0_i32_14 : i32 to vector<128x1xi32>
    %37 = arith.cmpi sge, %35, %36 : vector<128x1xi32>
    %c1_i32_15 = arith.constant 1 : i32
    %38 = vector.broadcast %c1_i32_15 : i32 to vector<128x1xi32>
    %39 = arith.addi %15, %38 : vector<128x1xi32>
    %c8_i32_16 = arith.constant 8 : i32
    %40 = vector.broadcast %c8_i32_16 : i32 to vector<128x1xi32>
    %41 = arith.cmpi slt, %39, %40 : vector<128x1xi32>
    %42 = arith.andi %37, %41 : vector<128x1xi1>
    %c-1_i32_17 = arith.constant -1 : i32
    %43 = vector.broadcast %c-1_i32_17 : i32 to vector<128x1xi32>
    %44 = arith.addi %11, %43 : vector<128x1xi32>
    %c0_i32_18 = arith.constant 0 : i32
    %45 = vector.broadcast %c0_i32_18 : i32 to vector<128x1xi32>
    %46 = arith.cmpi sge, %44, %45 : vector<128x1xi32>
    %c-1_i32_19 = arith.constant -1 : i32
    %47 = vector.broadcast %c-1_i32_19 : i32 to vector<128x1xi32>
    %48 = arith.addi %11, %47 : vector<128x1xi32>
    %c8_i32_20 = arith.constant 8 : i32
    %49 = vector.broadcast %c8_i32_20 : i32 to vector<128x1xi32>
    %50 = arith.cmpi slt, %48, %49 : vector<128x1xi32>
    %51 = arith.andi %46, %50 : vector<128x1xi1>
    %c0_i32_21 = arith.constant 0 : i32
    %52 = vector.broadcast %c0_i32_21 : i32 to vector<128x1xi32>
    %53 = arith.addi %11, %52 : vector<128x1xi32>
    %c0_i32_22 = arith.constant 0 : i32
    %54 = vector.broadcast %c0_i32_22 : i32 to vector<128x1xi32>
    %55 = arith.cmpi sge, %53, %54 : vector<128x1xi32>
    %c0_i32_23 = arith.constant 0 : i32
    %56 = vector.broadcast %c0_i32_23 : i32 to vector<128x1xi32>
    %57 = arith.addi %11, %56 : vector<128x1xi32>
    %c8_i32_24 = arith.constant 8 : i32
    %58 = vector.broadcast %c8_i32_24 : i32 to vector<128x1xi32>
    %59 = arith.cmpi slt, %57, %58 : vector<128x1xi32>
    %60 = arith.andi %55, %59 : vector<128x1xi1>
    %c1_i32_25 = arith.constant 1 : i32
    %61 = vector.broadcast %c1_i32_25 : i32 to vector<128x1xi32>
    %62 = arith.addi %11, %61 : vector<128x1xi32>
    %c0_i32_26 = arith.constant 0 : i32
    %63 = vector.broadcast %c0_i32_26 : i32 to vector<128x1xi32>
    %64 = arith.cmpi sge, %62, %63 : vector<128x1xi32>
    %c1_i32_27 = arith.constant 1 : i32
    %65 = vector.broadcast %c1_i32_27 : i32 to vector<128x1xi32>
    %66 = arith.addi %11, %65 : vector<128x1xi32>
    %c8_i32_28 = arith.constant 8 : i32
    %67 = vector.broadcast %c8_i32_28 : i32 to vector<128x1xi32>
    %68 = arith.cmpi slt, %66, %67 : vector<128x1xi32>
    %69 = arith.andi %64, %68 : vector<128x1xi1>
    %c9_i32 = arith.constant 9 : i32
    %70 = tpu.dynamic_rotate %8 by %c9_i32 dim 0 : vector<128x128xf32>, i32 -> vector<128x128xf32>
    %71 = arith.andi %24, %51 : vector<128x1xi1>
    %cst_29 = arith.constant 0.000000e+00 : f32
    %72 = vector.shape_cast %71 : vector<128x1xi1> to vector<128x1xi1>
    %73 = vector.broadcast %72 : vector<128x1xi1> to vector<128x128xi1>
    %74 = vector.broadcast %cst_29 : f32 to vector<128x128xf32>
    %75 = arith.select %73, %70, %74 : vector<128x128xi1>, vector<128x128xf32>
    %76 = arith.truncf %75 : vector<128x128xf32> to vector<128x128xbf16>
    %c8_i32_30 = arith.constant 8 : i32
    %77 = tpu.dynamic_rotate %8 by %c8_i32_30 dim 0 : vector<128x128xf32>, i32 -> vector<128x128xf32>
    %78 = arith.andi %24, %60 : vector<128x1xi1>
    %cst_31 = arith.constant 0.000000e+00 : f32
    %79 = vector.shape_cast %78 : vector<128x1xi1> to vector<128x1xi1>
    %80 = vector.broadcast %79 : vector<128x1xi1> to vector<128x128xi1>
    %81 = vector.broadcast %cst_31 : f32 to vector<128x128xf32>
    %82 = arith.select %80, %77, %81 : vector<128x128xi1>, vector<128x128xf32>
    %83 = arith.truncf %82 : vector<128x128xf32> to vector<128x128xbf16>
    %c7_i32_32 = arith.constant 7 : i32
    %84 = tpu.dynamic_rotate %8 by %c7_i32_32 dim 0 : vector<128x128xf32>, i32 -> vector<128x128xf32>
    %85 = arith.andi %24, %69 : vector<128x1xi1>
    %cst_33 = arith.constant 0.000000e+00 : f32
    %86 = vector.shape_cast %85 : vector<128x1xi1> to vector<128x1xi1>
    %87 = vector.broadcast %86 : vector<128x1xi1> to vector<128x128xi1>
    %88 = vector.broadcast %cst_33 : f32 to vector<128x128xf32>
    %89 = arith.select %87, %84, %88 : vector<128x128xi1>, vector<128x128xf32>
    %90 = arith.truncf %89 : vector<128x128xf32> to vector<128x128xbf16>
    %c1_i32_34 = arith.constant 1 : i32
    %91 = tpu.dynamic_rotate %8 by %c1_i32_34 dim 0 : vector<128x128xf32>, i32 -> vector<128x128xf32>
    %92 = arith.andi %33, %51 : vector<128x1xi1>
    %cst_35 = arith.constant 0.000000e+00 : f32
    %93 = vector.shape_cast %92 : vector<128x1xi1> to vector<128x1xi1>
    %94 = vector.broadcast %93 : vector<128x1xi1> to vector<128x128xi1>
    %95 = vector.broadcast %cst_35 : f32 to vector<128x128xf32>
    %96 = arith.select %94, %91, %95 : vector<128x128xi1>, vector<128x128xf32>
    %97 = arith.truncf %96 : vector<128x128xf32> to vector<128x128xbf16>
    %98 = arith.truncf %8 : vector<128x128xf32> to vector<128x128xbf16>
    %c127_i32 = arith.constant 127 : i32
    %99 = tpu.dynamic_rotate %8 by %c127_i32 dim 0 : vector<128x128xf32>, i32 -> vector<128x128xf32>
    %100 = arith.andi %33, %69 : vector<128x1xi1>
    %cst_36 = arith.constant 0.000000e+00 : f32
    %101 = vector.shape_cast %100 : vector<128x1xi1> to vector<128x1xi1>
    %102 = vector.broadcast %101 : vector<128x1xi1> to vector<128x128xi1>
    %103 = vector.broadcast %cst_36 : f32 to vector<128x128xf32>
    %104 = arith.select %102, %99, %103 : vector<128x128xi1>, vector<128x128xf32>
    %105 = arith.truncf %104 : vector<128x128xf32> to vector<128x128xbf16>
    %c121_i32 = arith.constant 121 : i32
    %106 = tpu.dynamic_rotate %8 by %c121_i32 dim 0 : vector<128x128xf32>, i32 -> vector<128x128xf32>
    %107 = arith.andi %42, %51 : vector<128x1xi1>
    %cst_37 = arith.constant 0.000000e+00 : f32
    %108 = vector.shape_cast %107 : vector<128x1xi1> to vector<128x1xi1>
    %109 = vector.broadcast %108 : vector<128x1xi1> to vector<128x128xi1>
    %110 = vector.broadcast %cst_37 : f32 to vector<128x128xf32>
    %111 = arith.select %109, %106, %110 : vector<128x128xi1>, vector<128x128xf32>
    %112 = arith.truncf %111 : vector<128x128xf32> to vector<128x128xbf16>
    %c120_i32 = arith.constant 120 : i32
    %113 = tpu.dynamic_rotate %8 by %c120_i32 dim 0 : vector<128x128xf32>, i32 -> vector<128x128xf32>
    %114 = arith.andi %42, %60 : vector<128x1xi1>
    %cst_38 = arith.constant 0.000000e+00 : f32
    %115 = vector.shape_cast %114 : vector<128x1xi1> to vector<128x1xi1>
    %116 = vector.broadcast %115 : vector<128x1xi1> to vector<128x128xi1>
    %117 = vector.broadcast %cst_38 : f32 to vector<128x128xf32>
    %118 = arith.select %116, %113, %117 : vector<128x128xi1>, vector<128x128xf32>
    %119 = arith.truncf %118 : vector<128x128xf32> to vector<128x128xbf16>
    %c119_i32 = arith.constant 119 : i32
    %120 = tpu.dynamic_rotate %8 by %c119_i32 dim 0 : vector<128x128xf32>, i32 -> vector<128x128xf32>
    %121 = arith.andi %42, %69 : vector<128x1xi1>
    %cst_39 = arith.constant 0.000000e+00 : f32
    %122 = vector.shape_cast %121 : vector<128x1xi1> to vector<128x1xi1>
    %123 = vector.broadcast %122 : vector<128x1xi1> to vector<128x128xi1>
    %124 = vector.broadcast %cst_39 : f32 to vector<128x128xf32>
    %125 = arith.select %123, %120, %124 : vector<128x128xi1>, vector<128x128xf32>
    %126 = arith.truncf %125 : vector<128x128xf32> to vector<128x128xbf16>
    %127 = tpu.concatenate %76, %83, %90, %97, %98, %105, %112, %119, %126 in 1 : vector<128x128xbf16>, vector<128x128xbf16>, vector<128x128xbf16>, vector<128x128xbf16>, vector<128x128xbf16>, vector<128x128xbf16>, vector<128x128xbf16>, vector<128x128xbf16>, vector<128x128xbf16> -> vector<128x1152xbf16>
    %c0_40 = arith.constant 0 : index
    %c0_41 = arith.constant 0 : index
    %128 = vector.load %arg4[%c0_40, %c0_41] : memref<1152x128xbf16, #tpu.memory_space<vmem>>, vector<1152x128xbf16>
    %cst_42 = arith.constant dense<0.000000e+00> : vector<128x128xf32>
    %129 = tpu.matmul %127, %128, %cst_42 {dimension_numbers = #tpu.dot_dimension_numbers<[1], [0], [0], [1], [0, 0, 1, 1], [], []>} : vector<128x1152xbf16>, vector<1152x128xbf16>, vector<128x128xf32> -> vector<128x128xf32>
    %c0_43 = arith.constant 0 : index
    %c0_44 = arith.constant 0 : index
    %130 = vector.load %arg5[%c0_43, %c0_44] : memref<1x128xf32, #tpu.memory_space<vmem>>, vector<1x128xf32>
    %131 = vector.broadcast %130 : vector<1x128xf32> to vector<128x128xf32>
    %132 = arith.addf %129, %131 : vector<128x128xf32>
    %cst_45 = arith.constant 0.000000e+00 : f32
    %133 = vector.broadcast %cst_45 : f32 to vector<128x128xf32>
    %134 = arith.maximumf %132, %133 : vector<128x128xf32>
    %135 = arith.truncf %134 : vector<128x128xf32> to vector<128x128xbf16>
    %c0_46 = arith.constant 0 : index
    %c0_47 = arith.constant 0 : index
    %136 = vector.load %arg8[%c0_46, %c0_47] : memref<128x128xbf16, #tpu.memory_space<vmem>>, vector<128x128xbf16>
    %cst_48 = arith.constant dense<0.000000e+00> : vector<128x128xf32>
    %137 = tpu.matmul %1, %136, %cst_48 {dimension_numbers = #tpu.dot_dimension_numbers<[1], [0], [0], [1], [0, 0, 1, 1], [], []>} : vector<128x128xbf16>, vector<128x128xbf16>, vector<128x128xf32> -> vector<128x128xf32>
    %c0_49 = arith.constant 0 : index
    %c0_50 = arith.constant 0 : index
    %138 = vector.load %arg9[%c0_49, %c0_50] : memref<1x128xf32, #tpu.memory_space<vmem>>, vector<1x128xf32>
    %139 = vector.broadcast %138 : vector<1x128xf32> to vector<128x128xf32>
    %140 = arith.addf %137, %139 : vector<128x128xf32>
    %c0_51 = arith.constant 0 : index
    %c0_52 = arith.constant 0 : index
    %141 = vector.load %arg6[%c0_51, %c0_52] : memref<128x128xbf16, #tpu.memory_space<vmem>>, vector<128x128xbf16>
    %cst_53 = arith.constant dense<0.000000e+00> : vector<128x128xf32>
    %142 = tpu.matmul %135, %141, %cst_53 {dimension_numbers = #tpu.dot_dimension_numbers<[1], [0], [0], [1], [0, 0, 1, 1], [], []>} : vector<128x128xbf16>, vector<128x128xbf16>, vector<128x128xf32> -> vector<128x128xf32>
    %c0_54 = arith.constant 0 : index
    %c0_55 = arith.constant 0 : index
    %143 = vector.load %arg7[%c0_54, %c0_55] : memref<1x128xf32, #tpu.memory_space<vmem>>, vector<1x128xf32>
    %144 = vector.broadcast %143 : vector<1x128xf32> to vector<128x128xf32>
    %145 = arith.addf %142, %144 : vector<128x128xf32>
    %146 = arith.addf %145, %140 : vector<128x128xf32>
    %cst_56 = arith.constant 0.000000e+00 : f32
    %147 = vector.broadcast %cst_56 : f32 to vector<128x128xf32>
    %148 = arith.maximumf %146, %147 : vector<128x128xf32>
    %149 = vector.shape_cast %148 : vector<128x128xf32> to vector<2x8x8x128xf32>
    %150 = arith.truncf %149 : vector<2x8x8x128xf32> to vector<2x8x8x128xbf16>
    %c0_57 = arith.constant 0 : index
    %c0_58 = arith.constant 0 : index
    %c0_59 = arith.constant 0 : index
    %c0_60 = arith.constant 0 : index
    %151 = vector.load %arg10[%c0_57, %c0_58, %c0_59, %c0_60] : memref<2x8x8x128xbf16, #tpu.memory_space<vmem>>, vector<2x8x8x128xbf16>
    tpu.vector_store %arg10[%c0_57, %c0_58, %c0_59, %c0_60], %150 {strides = array<i32>} : memref<2x8x8x128xbf16, #tpu.memory_space<vmem>>, vector<2x8x8x128xbf16>,
    return
  }
  func.func @transform_0(%arg0: i32) -> (i32, i32, i32, i32) {
    %c0_i32 = arith.constant 0 : i32
    %c0_i32_0 = arith.constant 0 : i32
    %c0_i32_1 = arith.constant 0 : i32
    %c0_i32_2 = arith.constant 0 : i32
    return %arg0, %c0_i32, %c0_i32_0, %c0_i32_1 : i32, i32, i32, i32
  }
  func.func @transform_1(%arg0: i32) -> (i32, i32) {
    %c0_i32 = arith.constant 0 : i32
    %c0_i32_0 = arith.constant 0 : i32
    %c0_i32_1 = arith.constant 0 : i32
    return %c0_i32, %c0_i32_0 : i32, i32
  }
  func.func @transform_2(%arg0: i32) -> (i32, i32) {
    %c0_i32 = arith.constant 0 : i32
    %c0_i32_0 = arith.constant 0 : i32
    %c0_i32_1 = arith.constant 0 : i32
    return %c0_i32, %c0_i32_0 : i32, i32
  }
  func.func @transform_3(%arg0: i32) -> (i32, i32) {
    %c0_i32 = arith.constant 0 : i32
    %c0_i32_0 = arith.constant 0 : i32
    %c0_i32_1 = arith.constant 0 : i32
    return %c0_i32, %c0_i32_0 : i32, i32
  }
  func.func @transform_4(%arg0: i32) -> (i32, i32) {
    %c0_i32 = arith.constant 0 : i32
    %c0_i32_0 = arith.constant 0 : i32
    %c0_i32_1 = arith.constant 0 : i32
    return %c0_i32, %c0_i32_0 : i32, i32
  }
  func.func @transform_5(%arg0: i32) -> (i32, i32) {
    %c0_i32 = arith.constant 0 : i32
    %c0_i32_0 = arith.constant 0 : i32
    %c0_i32_1 = arith.constant 0 : i32
    return %c0_i32, %c0_i32_0 : i32, i32
  }
  func.func @transform_6(%arg0: i32) -> (i32, i32) {
    %c0_i32 = arith.constant 0 : i32
    %c0_i32_0 = arith.constant 0 : i32
    %c0_i32_1 = arith.constant 0 : i32
    return %c0_i32, %c0_i32_0 : i32, i32
  }
  func.func @transform_7(%arg0: i32) -> (i32, i32) {
    %c0_i32 = arith.constant 0 : i32
    %c0_i32_0 = arith.constant 0 : i32
    %c0_i32_1 = arith.constant 0 : i32
    return %c0_i32, %c0_i32_0 : i32, i32
  }
  func.func @transform_8(%arg0: i32) -> (i32, i32) {
    %c0_i32 = arith.constant 0 : i32
    %c0_i32_0 = arith.constant 0 : i32
    %c0_i32_1 = arith.constant 0 : i32
    return %c0_i32, %c0_i32_0 : i32, i32
  }
  func.func @transform_9(%arg0: i32) -> (i32, i32, i32, i32) {
    %c0_i32 = arith.constant 0 : i32
    %c0_i32_0 = arith.constant 0 : i32
    %c0_i32_1 = arith.constant 0 : i32
    %c0_i32_2 = arith.constant 0 : i32
    return %arg0, %c0_i32, %c0_i32_0, %c0_i32_1 : i32, i32, i32, i32
  }
}

</mosaic_0001>

<llo_original>
// kernel: tpu_custom_call.1
$region0: #{tpu_custom_call.1}
  #allocation0 [shape = 'u32[]', space=smem, size = 0x4, offset = 0x4, fixed_abs, tag = 'smem constant byte address 0x4 - core index']
  #allocation1 [shape = 'u32[72,128]{1,0:T(1,128)}', space=vmem, size = 0x9000, scoped, tag = 'internal scratch']
  %s0 = inlined_call_operand.hbm [shape: bf16[2,8,8,128], index: 0, kind: input, shape index: {}]
  %s1 = inlined_call_operand.hbm [shape: bf16[128,128], index: 1, kind: input, shape index: {}]
  %s2 = inlined_call_operand.vmem [shape: f32[1,128], index: 2, kind: input, shape index: {}]
  %s3 = inlined_call_operand.hbm [shape: bf16[1152,128], index: 3, kind: input, shape index: {}]
  %s4 = inlined_call_operand.vmem [shape: f32[1,128], index: 4, kind: input, shape index: {}]
  %s5 = inlined_call_operand.hbm [shape: bf16[128,128], index: 5, kind: input, shape index: {}]
  %s6 = inlined_call_operand.vmem [shape: f32[1,128], index: 6, kind: input, shape index: {}]
  %s7 = inlined_call_operand.hbm [shape: bf16[128,128], index: 7, kind: input, shape index: {}]
  %s8 = inlined_call_operand.vmem [shape: f32[1,128], index: 8, kind: input, shape index: {}]
  %s9 = inlined_call_operand.hbm [shape: bf16[2,8,8,128], index: 9, kind: output, shape index: {}]
  %s10 = sld [smem:[#allocation0]]
  $region66: #{tpu_custom_call.1} parent=0
    _
  %s12 = ssub.s32 1, %s10
  %s13 = scalar_select 0, %s12, %s10
  $region1: #{tpu_custom_call.1} parent=0
    #allocation2 [shape = 'u8[32768]{0}', space=vmem, size = 0x8000, scoped, tag = 'input window, operand 0, single buffered']
    #allocation3 [shape = 's32[1]{0}', space=sflag, size = 0x4, scoped, tag = 'scoped memory for tpu_custom_call.1']
    #allocation4 [shape = 's32[1]{0}', space=sflag, size = 0x4, scoped, tag = 'scoped memory for tpu_custom_call.1']
    #allocation5 [shape = 'u8[32768]{0}', space=vmem, size = 0x8000, scoped, tag = 'input window, operand 1, single buffered']
    #allocation6 [shape = 's32[1]{0}', space=sflag, size = 0x4, scoped, tag = 'scoped memory for tpu_custom_call.1']
    #allocation7 [shape = 'u8[294912]{0}', space=vmem, size = 0x48000, scoped, tag = 'input window, operand 3, single buffered']
    #allocation8 [shape = 'u8[32768]{0}', space=vmem, size = 0x8000, scoped, tag = 'input window, operand 5, single buffered']
    #allocation9 [shape = 's32[1]{0}', space=sflag, size = 0x4, scoped, tag = 'scoped memory for tpu_custom_call.1']
    #allocation10 [shape = 'u8[32768]{0}', space=vmem, size = 0x8000, scoped, tag = 'input window, operand 7, single buffered']
    #allocation11 [shape = 'u8[32768]{0}', space=vmem, size = 0x8000, scoped, tag = 'output window, operand 0, single buffered']
    %14 = vsyncpa [#allocation3], 0
    %15 = vsyncpa [#allocation6], 0
    %16 = vsyncpa [#allocation9], 0
    %17 = vsyncpa [#allocation4], 0
    // Predicated region
    $region2: #{tpu_custom_call.1} parent=1 // pred_check
      _
    $region3: #{tpu_custom_call.1} parent=1 // pred_check_branch
      %19 = sbr.rel (0) target = $region5
    $region4: #{tpu_custom_call.1} parent=1 // pred_region
      %21 = vsyncadd [#allocation3], 0
      %s22 = sshll.u32 %s0, 4
      %s23 = int_to_ptr.hbm [resolvable:$true] %s22
      %s24 = sshll.u32 [#allocation2], 4
      %s25 = int_to_ptr.vmem [resolvable:$true] %s24
      %30 = dma.hbm_to_vmem [thread:$0]  %s23, 1024, %s25, [#allocation3], 64, 64, 4
    $region5: #{tpu_custom_call.1} parent=1 // pred_fallthru
      _
    // Predicated region
    $region6: #{tpu_custom_call.1} parent=1 // pred_check
      _
    $region7: #{tpu_custom_call.1} parent=1 // pred_check_branch
      %32 = sbr.rel (0) target = $region9
    $region8: #{tpu_custom_call.1} parent=1 // pred_region
      %34 = vsyncadd [#allocation6], 0
      %s35 = sshll.u32 %s1, 4
      %s36 = int_to_ptr.hbm [resolvable:$true] %s35
      %s37 = sshll.u32 [#allocation5], 4
      %s38 = int_to_ptr.vmem [resolvable:$true] %s37
      %43 = dma.hbm_to_vmem [thread:$0]  %s36, 1024, %s38, [#allocation6], 64, 64, 4
    $region9: #{tpu_custom_call.1} parent=1 // pred_fallthru
      _
    // Predicated region
    $region10: #{tpu_custom_call.1} parent=1 // pred_check
      _
    $region11: #{tpu_custom_call.1} parent=1 // pred_check_branch
      %45 = sbr.rel (0) target = $region13
    $region12: #{tpu_custom_call.1} parent=1 // pred_region
      _
    $region13: #{tpu_custom_call.1} parent=1 // pred_fallthru
      _
    // Predicated region
    $region14: #{tpu_custom_call.1} parent=1 // pred_check
      _
    $region15: #{tpu_custom_call.1} parent=1 // pred_check_branch
      %47 = sbr.rel (0) target = $region17
    $region16: #{tpu_custom_call.1} parent=1 // pred_region
      %49 = vsyncadd [#allocation6], 0
      %s50 = sshll.u32 %s3, 4
      %s51 = int_to_ptr.hbm [resolvable:$true] %s50
      %s52 = sshll.u32 [#allocation7], 4
      %s53 = int_to_ptr.vmem [resolvable:$true] %s52
      %58 = dma.hbm_to_vmem [thread:$0]  %s51, 9216, %s53, [#allocation6], 64, 64, 4
    $region17: #{tpu_custom_call.1} parent=1 // pred_fallthru
      _
    // Predicated region
    $region18: #{tpu_custom_call.1} parent=1 // pred_check
      _
    $region19: #{tpu_custom_call.1} parent=1 // pred_check_branch
      %60 = sbr.rel (0) target = $region21
    $region20: #{tpu_custom_call.1} parent=1 // pred_region
      _
    $region21: #{tpu_custom_call.1} parent=1 // pred_fallthru
      _
    // Predicated region
    $region22: #{tpu_custom_call.1} parent=1 // pred_check
      _
    $region23: #{tpu_custom_call.1} parent=1 // pred_check_branch
      %62 = sbr.rel (0) target = $region25
    $region24: #{tpu_custom_call.1} parent=1 // pred_region
      %64 = vsyncadd [#allocation9], 0
      %s65 = sshll.u32 %s5, 4
      %s66 = int_to_ptr.hbm [resolvable:$true] %s65
      %s67 = sshll.u32 [#allocation8], 4
      %s68 = int_to_ptr.vmem [resolvable:$true] %s67
      %73 = dma.hbm_to_vmem [thread:$0]  %s66, 1024, %s68, [#allocation9], 64, 64, 4
    $region25: #{tpu_custom_call.1} parent=1 // pred_fallthru
      _
    // Predicated region
    $region26: #{tpu_custom_call.1} parent=1 // pred_check
      _
    $region27: #{tpu_custom_call.1} parent=1 // pred_check_branch
      %75 = sbr.rel (0) target = $region29
    $region28: #{tpu_custom_call.1} parent=1 // pred_region
      _
    $region29: #{tpu_custom_call.1} parent=1 // pred_fallthru
      _
    // Predicated region
    $region30: #{tpu_custom_call.1} parent=1 // pred_check
      _
    $region31: #{tpu_custom_call.1} parent=1 // pred_check_branch
      %77 = sbr.rel (0) target = $region33
    $region32: #{tpu_custom_call.1} parent=1 // pred_region
      %79 = vsyncadd [#allocation9], 0
      %s80 = sshll.u32 %s7, 4
      %s81 = int_to_ptr.hbm [resolvable:$true] %s80
      %s82 = sshll.u32 [#allocation10], 4
      %s83 = int_to_ptr.vmem [resolvable:$true] %s82
      %88 = dma.hbm_to_vmem [thread:$0]  %s81, 1024, %s83, [#allocation9], 64, 64, 4
    $region33: #{tpu_custom_call.1} parent=1 // pred_fallthru
      _
    // Predicated region
    $region34: #{tpu_custom_call.1} parent=1 // pred_check
      _
    $region35: #{tpu_custom_call.1} parent=1 // pred_check_branch
      %90 = sbr.rel (0) target = $region37
    $region36: #{tpu_custom_call.1} parent=1 // pred_region
      _
    $region37: #{tpu_custom_call.1} parent=1 // pred_fallthru
      _
    // Predicated region
    $region38: #{tpu_custom_call.1} parent=1 // pred_check
      _
    $region39: #{tpu_custom_call.1} parent=1 // pred_check_branch
      %92 = sbr.rel (0) target = $region41
    $region40: #{tpu_custom_call.1} parent=1 // pred_region
      %94 = dma.done [#allocation3], 1024
    $region41: #{tpu_custom_call.1} parent=1 // pred_fallthru
      _
    // Predicated region
    $region42: #{tpu_custom_call.1} parent=1 // pred_check
      _
    $region43: #{tpu_custom_call.1} parent=1 // pred_check_branch
      %96 = sbr.rel (0) target = $region45
    $region44: #{tpu_custom_call.1} parent=1 // pred_region
      %98 = dma.done [#allocation6], 1024
    $region45: #{tpu_custom_call.1} parent=1 // pred_fallthru
      _
    // Predicated region
    $region46: #{tpu_custom_call.1} parent=1 // pred_check
      _
    $region47: #{tpu_custom_call.1} parent=1 // pred_check_branch
      %100 = sbr.rel (0) target = $region49
    $region48: #{tpu_custom_call.1} parent=1 // pred_region
      %102 = dma.done [#allocation6], 9216
    $region49: #{tpu_custom_call.1} parent=1 // pred_fallthru
      _
    // Predicated region
    $region50: #{tpu_custom_call.1} parent=1 // pred_check
      _
    $region51: #{tpu_custom_call.1} parent=1 // pred_check_branch
      %104 = sbr.rel (0) target = $region53
    $region52: #{tpu_custom_call.1} parent=1 // pred_region
      %106 = dma.done [#allocation9], 1024
    $region53: #{tpu_custom_call.1} parent=1 // pred_fallthru
      _
    // Predicated region
    $region54: #{tpu_custom_call.1} parent=1 // pred_check
      _
    $region55: #{tpu_custom_call.1} parent=1 // pred_check_branch
      %108 = sbr.rel (0) target = $region57
    $region56: #{tpu_custom_call.1} parent=1 // pred_region
      %110 = dma.done [#allocation9], 1024
    $region57: #{tpu_custom_call.1} parent=1 // pred_fallthru
      _
    %v111 = vld [vmem:[#allocation2] sm:$0xf]
    %v112 = vld [vmem:[#allocation2 + $0x4] sm:$0xf]
    %v113 = vld [vmem:[#allocation2 + $0x8] sm:$0xf]
    %v114 = vld [vmem:[#allocation2 + $0xc] sm:$0xf]
    %v115 = vld [vmem:[#allocation2 + $0x10] sm:$0xf]
    %v116 = vld [vmem:[#allocation2 + $0x14] sm:$0xf]
    %v117 = vld [vmem:[#allocation2 + $0x18] sm:$0xf]
    %v118 = vld [vmem:[#allocation2 + $0x1c] sm:$0xf]
    %v119 = vld [vmem:[#allocation2 + $0x20] sm:$0xf]
    %v120 = vld [vmem:[#allocation2 + $0x24] sm:$0xf]
    %v121 = vld [vmem:[#allocation2 + $0x28] sm:$0xf]
    %v122 = vld [vmem:[#allocation2 + $0x2c] sm:$0xf]
    %v123 = vld [vmem:[#allocation2 + $0x30] sm:$0xf]
    %v124 = vld [vmem:[#allocation2 + $0x34] sm:$0xf]
    %v125 = vld [vmem:[#allocation2 + $0x38] sm:$0xf]
    %v126 = vld [vmem:[#allocation2 + $0x3c] sm:$0xf]
    %v127 = vld [vmem:[#allocation5] sm:$0xf]
    %v128 = vld [vmem:[#allocation5 + $0x4] sm:$0xf]
    %v129 = vld [vmem:[#allocation5 + $0x8] sm:$0xf]
    %v130 = vld [vmem:[#allocation5 + $0xc] sm:$0xf]
    %v131 = vld [vmem:[#allocation5 + $0x10] sm:$0xf]
    %v132 = vld [vmem:[#allocation5 + $0x14] sm:$0xf]
    %v133 = vld [vmem:[#allocation5 + $0x18] sm:$0xf]
    %v134 = vld [vmem:[#allocation5 + $0x1c] sm:$0xf]
    %v135 = vld [vmem:[#allocation5 + $0x20] sm:$0xf]
    %v136 = vld [vmem:[#allocation5 + $0x24] sm:$0xf]
    %v137 = vld [vmem:[#allocation5 + $0x28] sm:$0xf]
    %v138 = vld [vmem:[#allocation5 + $0x2c] sm:$0xf]
    %v139 = vld [vmem:[#allocation5 + $0x30] sm:$0xf]
    %v140 = vld [vmem:[#allocation5 + $0x34] sm:$0xf]
    %v141 = vld [vmem:[#allocation5 + $0x38] sm:$0xf]
    %v142 = vld [vmem:[#allocation5 + $0x3c] sm:$0xf]
    %v143 = vld [vmem:[%s2] sm:$0x1]
    %v145 = vperm.slane %v143, 0
    %v163 = vunpack.c.l.b16 %v111
    %v164 = vunpack.c.l.b16 %v112
    %v165 = vunpack.c.l.b16 %v113
    %v166 = vunpack.c.l.b16 %v114
    %v167 = vunpack.c.l.b16 %v115
    %v168 = vunpack.c.l.b16 %v116
    %v169 = vunpack.c.l.b16 %v117
    %v170 = vunpack.c.l.b16 %v118
    %v171 = vunpack.c.l.b16 %v119
    %v172 = vunpack.c.l.b16 %v120
    %v173 = vunpack.c.l.b16 %v121
    %v174 = vunpack.c.l.b16 %v122
    %v175 = vunpack.c.l.b16 %v123
    %v176 = vunpack.c.l.b16 %v124
    %v177 = vunpack.c.l.b16 %v125
    %v178 = vunpack.c.l.b16 %v126
    %v179 = vpack.c.b16 %v164, %v163
    %v180 = vpack.c.b16 %v166, %v165
    %v181 = vpack.c.b16 %v168, %v167
    %v182 = vpack.c.b16 %v170, %v169
    %v183 = vpack.c.b16 %v172, %v171
    %v184 = vpack.c.b16 %v174, %v173
    %v185 = vpack.c.b16 %v176, %v175
    %v186 = vpack.c.b16 %v178, %v177
    %v211 = vunpack.c.l.b16 %v127
    %v212 = vunpack.c.l.b16 %v128
    %v213 = vunpack.c.l.b16 %v129
    %v214 = vunpack.c.l.b16 %v130
    %v215 = vunpack.c.l.b16 %v131
    %v216 = vunpack.c.l.b16 %v132
    %v217 = vunpack.c.l.b16 %v133
    %v218 = vunpack.c.l.b16 %v134
    %v219 = vunpack.c.l.b16 %v135
    %v220 = vunpack.c.l.b16 %v136
    %v221 = vunpack.c.l.b16 %v137
    %v222 = vunpack.c.l.b16 %v138
    %v223 = vunpack.c.l.b16 %v139
    %v224 = vunpack.c.l.b16 %v140
    %v225 = vunpack.c.l.b16 %v141
    %v226 = vunpack.c.l.b16 %v142
    %v227 = vpack.c.b16 %v212, %v211
    %v228 = vpack.c.b16 %v214, %v213
    %v229 = vpack.c.b16 %v216, %v215
    %v230 = vpack.c.b16 %v218, %v217
    %v231 = vpack.c.b16 %v220, %v219
    %v232 = vpack.c.b16 %v222, %v221
    %v233 = vpack.c.b16 %v224, %v223
    %v234 = vpack.c.b16 %v226, %v225
    %243 = vmatpush.bf16.msra.mxu0 %v234
    %244 = vmatpush.bf16.msra.mxu0 %v233
    %245 = vmatpush.bf16.msra.mxu0 %v232
    %246 = vmatpush.bf16.msra.mxu0 %v231
    %247 = vmatpush.bf16.msra.mxu0 %v230
    %248 = vmatpush.bf16.msra.mxu0 %v229
    %249 = vmatpush.bf16.msra.mxu0 %v228
    %250 = vmatpush.bf16.msra.mxu0 %v227
    %251 = vmatmul.bf16.gmra.mxu0 %v179
    %v252 = vpop.f32.mrf.mxu0
    %v253 = vadd.f32 %v145, %v252
    %v254 = vpop.f32.mrf.mxu0
    %v255 = vadd.f32 %v145, %v254
    %256 = vmatmul.bf16.gmra.mxu0 %v180
    %v257 = vpop.f32.mrf.mxu0
    %v258 = vadd.f32 %v145, %v257
    %v259 = vpop.f32.mrf.mxu0
    %v260 = vadd.f32 %v145, %v259
    %261 = vmatmul.bf16.gmra.mxu0 %v181
    %v262 = vpop.f32.mrf.mxu0
    %v263 = vadd.f32 %v145, %v262
    %v264 = vpop.f32.mrf.mxu0
    %v265 = vadd.f32 %v145, %v264
    %266 = vmatmul.bf16.gmra.mxu0 %v182
    %v267 = vpop.f32.mrf.mxu0
    %v268 = vadd.f32 %v145, %v267
    %v269 = vpop.f32.mrf.mxu0
    %v270 = vadd.f32 %v145, %v269
    %271 = vmatmul.bf16.gmra.mxu0 %v183
    %v272 = vpop.f32.mrf.mxu0
    %v273 = vadd.f32 %v145, %v272
    %v274 = vpop.f32.mrf.mxu0
    %v275 = vadd.f32 %v145, %v274
    %276 = vmatmul.bf16.gmra.mxu0 %v184
    %v277 = vpop.f32.mrf.mxu0
    %v278 = vadd.f32 %v145, %v277
    %v279 = vpop.f32.mrf.mxu0
    %v280 = vadd.f32 %v145, %v279
    %281 = vmatmul.bf16.gmra.mxu0 %v185
    %v282 = vpop.f32.mrf.mxu0
    %v283 = vadd.f32 %v145, %v282
    %v284 = vpop.f32.mrf.mxu0
    %v285 = vadd.f32 %v145, %v284
    %286 = vmatmul.bf16.gmra.mxu0 %v186
    %v287 = vpop.f32.mrf.mxu0
    %v288 = vadd.f32 %v145, %v287
    %v289 = vpop.f32.mrf.mxu0
    %v290 = vadd.f32 %v145, %v289
    %291 = vdwg.mxu0
    %v292 = vmax.f32 %v253, 0.0
    %v293 = vmax.f32 %v255, 0.0
    %v294 = vmax.f32 %v258, 0.0
    %v295 = vmax.f32 %v260, 0.0
    %v296 = vmax.f32 %v263, 0.0
    %v297 = vmax.f32 %v265, 0.0
    %v298 = vmax.f32 %v268, 0.0
    %v299 = vmax.f32 %v270, 0.0
    %v300 = vmax.f32 %v273, 0.0
    %v301 = vmax.f32 %v275, 0.0
    %v302 = vmax.f32 %v278, 0.0
    %v303 = vmax.f32 %v280, 0.0
    %v304 = vmax.f32 %v283, 0.0
    %v305 = vmax.f32 %v285, 0.0
    %v306 = vmax.f32 %v288, 0.0
    %v307 = vmax.f32 %v290, 0.0
    %v308 = vlaneseq
    %v309 = vshrl.u32 %v308, 7
    %v310 = vadd.s32 %v309, 8
    %v311 = vadd.s32 %v309, 16
    %v312 = vadd.s32 %v309, 24
    %v313 = vadd.s32 %v309, 32
    %v314 = vadd.s32 %v309, 40
    %v315 = vadd.s32 %v309, 48
    %v316 = vadd.s32 %v309, 56
    %v317 = vadd.s32 %v309, 64
    %v318 = vadd.s32 %v309, 72
    %v319 = vadd.s32 %v309, 80
    %v320 = vadd.s32 %v309, 88
    %v321 = vadd.s32 %v309, 96
    %v322 = vadd.s32 %v309, 104
    %v323 = vadd.s32 %v309, 112
    %v324 = vadd.s32 %v309, 120
    %v325 = vand.u32 %v309, 7
    %v326 = vand.u32 %v310, 7
    %v327 = vand.u32 %v311, 7
    %v328 = vand.u32 %v312, 7
    %v329 = vand.u32 %v313, 7
    %v330 = vand.u32 %v314, 7
    %v331 = vand.u32 %v315, 7
    %v332 = vand.u32 %v316, 7
    %v333 = vand.u32 %v317, 7
    %v334 = vand.u32 %v318, 7
    %v335 = vand.u32 %v319, 7
    %v336 = vand.u32 %v320, 7
    %v337 = vand.u32 %v321, 7
    %v338 = vand.u32 %v322, 7
    %v339 = vand.u32 %v323, 7
    %v340 = vand.u32 %v324, 7
    %v341 = vshra.s32 %v309, 3
    %v342 = vshra.s32 %v310, 3
    %v343 = vshra.s32 %v311, 3
    %v344 = vshra.s32 %v312, 3
    %v345 = vshra.s32 %v313, 3
    %v346 = vshra.s32 %v314, 3
    %v347 = vshra.s32 %v315, 3
    %v348 = vshra.s32 %v316, 3
    %v349 = vshra.s32 %v317, 3
    %v350 = vshra.s32 %v318, 3
    %v351 = vshra.s32 %v319, 3
    %v352 = vshra.s32 %v320, 3
    %v353 = vshra.s32 %v321, 3
    %v354 = vshra.s32 %v322, 3
    %v355 = vshra.s32 %v323, 3
    %v356 = vshra.s32 %v324, 3
    %v357 = vand.u32 %v341, 7
    %v358 = vand.u32 %v342, 7
    %v359 = vand.u32 %v343, 7
    %v360 = vand.u32 %v344, 7
    %v361 = vand.u32 %v345, 7
    %v362 = vand.u32 %v346, 7
    %v363 = vand.u32 %v347, 7
    %v364 = vand.u32 %v348, 7
    %v365 = vand.u32 %v349, 7
    %v366 = vand.u32 %v350, 7
    %v367 = vand.u32 %v351, 7
    %v368 = vand.u32 %v352, 7
    %v369 = vand.u32 %v353, 7
    %v370 = vand.u32 %v354, 7
    %v371 = vand.u32 %v355, 7
    %v372 = vand.u32 %v356, 7
    %v373 = vadd.s32 %v357, 4294967295
    %v374 = vadd.s32 %v358, 4294967295
    %v375 = vadd.s32 %v359, 4294967295
    %v376 = vadd.s32 %v360, 4294967295
    %v377 = vadd.s32 %v361, 4294967295
    %v378 = vadd.s32 %v362, 4294967295
    %v379 = vadd.s32 %v363, 4294967295
    %v380 = vadd.s32 %v364, 4294967295
    %v381 = vadd.s32 %v365, 4294967295
    %v382 = vadd.s32 %v366, 4294967295
    %v383 = vadd.s32 %v367, 4294967295
    %v384 = vadd.s32 %v368, 4294967295
    %v385 = vadd.s32 %v369, 4294967295
    %v386 = vadd.s32 %v370, 4294967295
    %v387 = vadd.s32 %v371, 4294967295
    %v388 = vadd.s32 %v372, 4294967295
    %vm389 = vcmp.ge.s32.totalorder %v373, 0
    %vm390 = vcmp.ge.s32.totalorder %v374, 0
    %vm391 = vcmp.ge.s32.totalorder %v375, 0
    %vm392 = vcmp.ge.s32.totalorder %v376, 0
    %vm393 = vcmp.ge.s32.totalorder %v377, 0
    %vm394 = vcmp.ge.s32.totalorder %v378, 0
    %vm395 = vcmp.ge.s32.totalorder %v379, 0
    %vm396 = vcmp.ge.s32.totalorder %v380, 0
    %vm397 = vcmp.ge.s32.totalorder %v381, 0
    %vm398 = vcmp.ge.s32.totalorder %v382, 0
    %vm399 = vcmp.ge.s32.totalorder %v383, 0
    %vm400 = vcmp.ge.s32.totalorder %v384, 0
    %vm401 = vcmp.ge.s32.totalorder %v385, 0
    %vm402 = vcmp.ge.s32.totalorder %v386, 0
    %vm403 = vcmp.ge.s32.totalorder %v387, 0
    %vm404 = vcmp.ge.s32.totalorder %v388, 0
    %vm405 = vcmp.lt.s32.totalorder %v373, 8
    %vm406 = vcmp.lt.s32.totalorder %v374, 8
    %vm407 = vcmp.lt.s32.totalorder %v375, 8
    %vm408 = vcmp.lt.s32.totalorder %v376, 8
    %vm409 = vcmp.lt.s32.totalorder %v377, 8
    %vm410 = vcmp.lt.s32.totalorder %v378, 8
    %vm411 = vcmp.lt.s32.totalorder %v379, 8
    %vm412 = vcmp.lt.s32.totalorder %v380, 8
    %vm413 = vcmp.lt.s32.totalorder %v381, 8
    %vm414 = vcmp.lt.s32.totalorder %v382, 8
    %vm415 = vcmp.lt.s32.totalorder %v383, 8
    %vm416 = vcmp.lt.s32.totalorder %v384, 8
    %vm417 = vcmp.lt.s32.totalorder %v385, 8
    %vm418 = vcmp.lt.s32.totalorder %v386, 8
    %vm419 = vcmp.lt.s32.totalorder %v387, 8
    %vm420 = vcmp.lt.s32.totalorder %v388, 8
    %vm421 = vmand %vm389, %vm405
    %vm422 = vmand %vm390, %vm406
    %vm423 = vmand %vm391, %vm407
    %vm424 = vmand %vm392, %vm408
    %vm425 = vmand %vm393, %vm409
    %vm426 = vmand %vm394, %vm410
    %vm427 = vmand %vm395, %vm411
    %vm428 = vmand %vm396, %vm412
    %vm429 = vmand %vm397, %vm413
    %vm430 = vmand %vm398, %vm414
    %vm431 = vmand %vm399, %vm415
    %vm432 = vmand %vm400, %vm416
    %vm433 = vmand %vm401, %vm417
    %vm434 = vmand %vm402, %vm418
    %vm435 = vmand %vm403, %vm419
    %vm436 = vmand %vm404, %vm420
    %vm437 = vcmp.ge.s32.totalorder %v357, 0
    %vm438 = vcmp.ge.s32.totalorder %v358, 0
    %vm439 = vcmp.ge.s32.totalorder %v359, 0
    %vm440 = vcmp.ge.s32.totalorder %v360, 0
    %vm441 = vcmp.ge.s32.totalorder %v361, 0
    %vm442 = vcmp.ge.s32.totalorder %v362, 0
    %vm443 = vcmp.ge.s32.totalorder %v363, 0
    %vm444 = vcmp.ge.s32.totalorder %v364, 0
    %vm445 = vcmp.ge.s32.totalorder %v365, 0
    %vm446 = vcmp.ge.s32.totalorder %v366, 0
    %vm447 = vcmp.ge.s32.totalorder %v367, 0
    %vm448 = vcmp.ge.s32.totalorder %v368, 0
    %vm449 = vcmp.ge.s32.totalorder %v369, 0
    %vm450 = vcmp.ge.s32.totalorder %v370, 0
    %vm451 = vcmp.ge.s32.totalorder %v371, 0
    %vm452 = vcmp.ge.s32.totalorder %v372, 0
    %vm453 = vcmp.lt.s32.totalorder %v357, 8
    %vm454 = vcmp.lt.s32.totalorder %v358, 8
    %vm455 = vcmp.lt.s32.totalorder %v359, 8
    %vm456 = vcmp.lt.s32.totalorder %v360, 8
    %vm457 = vcmp.lt.s32.totalorder %v361, 8
    %vm458 = vcmp.lt.s32.totalorder %v362, 8
    %vm459 = vcmp.lt.s32.totalorder %v363, 8
    %vm460 = vcmp.lt.s32.totalorder %v364, 8
    %vm461 = vcmp.lt.s32.totalorder %v365, 8
    %vm462 = vcmp.lt.s32.totalorder %v366, 8
    %vm463 = vcmp.lt.s32.totalorder %v367, 8
    %vm464 = vcmp.lt.s32.totalorder %v368, 8
    %vm465 = vcmp.lt.s32.totalorder %v369, 8
    %vm466 = vcmp.lt.s32.totalorder %v370, 8
    %vm467 = vcmp.lt.s32.totalorder %v371, 8
    %vm468 = vcmp.lt.s32.totalorder %v372, 8
    %vm469 = vmand %vm437, %vm453
    %vm470 = vmand %vm438, %vm454
    %vm471 = vmand %vm439, %vm455
    %vm472 = vmand %vm440, %vm456
    %vm473 = vmand %vm441, %vm457
    %vm474 = vmand %vm442, %vm458
    %vm475 = vmand %vm443, %vm459
    %vm476 = vmand %vm444, %vm460
    %vm477 = vmand %vm445, %vm461
    %vm478 = vmand %vm446, %vm462
    %vm479 = vmand %vm447, %vm463
    %vm480 = vmand %vm448, %vm464
    %vm481 = vmand %vm449, %vm465
    %vm482 = vmand %vm450, %vm466
    %vm483 = vmand %vm451, %vm467
    %vm484 = vmand %vm452, %vm468
    %v485 = vadd.s32 %v357, 1
    %v486 = vadd.s32 %v358, 1
    %v487 = vadd.s32 %v359, 1
    %v488 = vadd.s32 %v360, 1
    %v489 = vadd.s32 %v361, 1
    %v490 = vadd.s32 %v362, 1
    %v491 = vadd.s32 %v363, 1
    %v492 = vadd.s32 %v364, 1
    %v493 = vadd.s32 %v365, 1
    %v494 = vadd.s32 %v366, 1
    %v495 = vadd.s32 %v367, 1
    %v496 = vadd.s32 %v368, 1
    %v497 = vadd.s32 %v369, 1
    %v498 = vadd.s32 %v370, 1
    %v499 = vadd.s32 %v371, 1
    %v500 = vadd.s32 %v372, 1
    %vm501 = vcmp.ge.s32.totalorder %v485, 0
    %vm502 = vcmp.ge.s32.totalorder %v486, 0
    %vm503 = vcmp.ge.s32.totalorder %v487, 0
    %vm504 = vcmp.ge.s32.totalorder %v488, 0
    %vm505 = vcmp.ge.s32.totalorder %v489, 0
    %vm506 = vcmp.ge.s32.totalorder %v490, 0
    %vm507 = vcmp.ge.s32.totalorder %v491, 0
    %vm508 = vcmp.ge.s32.totalorder %v492, 0
    %vm509 = vcmp.ge.s32.totalorder %v493, 0
    %vm510 = vcmp.ge.s32.totalorder %v494, 0
    %vm511 = vcmp.ge.s32.totalorder %v495, 0
    %vm512 = vcmp.ge.s32.totalorder %v496, 0
    %vm513 = vcmp.ge.s32.totalorder %v497, 0
    %vm514 = vcmp.ge.s32.totalorder %v498, 0
    %vm515 = vcmp.ge.s32.totalorder %v499, 0
    %vm516 = vcmp.ge.s32.totalorder %v500, 0
    %vm517 = vcmp.lt.s32.totalorder %v485, 8
    %vm518 = vcmp.lt.s32.totalorder %v486, 8
    %vm519 = vcmp.lt.s32.totalorder %v487, 8
    %vm520 = vcmp.lt.s32.totalorder %v488, 8
    %vm521 = vcmp.lt.s32.totalorder %v489, 8
    %vm522 = vcmp.lt.s32.totalorder %v490, 8
    %vm523 = vcmp.lt.s32.totalorder %v491, 8
    %vm524 = vcmp.lt.s32.totalorder %v492, 8
    %vm525 = vcmp.lt.s32.totalorder %v493, 8
    %vm526 = vcmp.lt.s32.totalorder %v494, 8
    %vm527 = vcmp.lt.s32.totalorder %v495, 8
    %vm528 = vcmp.lt.s32.totalorder %v496, 8
    %vm529 = vcmp.lt.s32.totalorder %v497, 8
    %vm530 = vcmp.lt.s32.totalorder %v498, 8
    %vm531 = vcmp.lt.s32.totalorder %v499, 8
    %vm532 = vcmp.lt.s32.totalorder %v500, 8
    %vm533 = vmand %vm501, %vm517
    %vm534 = vmand %vm502, %vm518
    %vm535 = vmand %vm503, %vm519
    %vm536 = vmand %vm504, %vm520
    %vm537 = vmand %vm505, %vm521
    %vm538 = vmand %vm506, %vm522
    %vm539 = vmand %vm507, %vm523
    %vm540 = vmand %vm508, %vm524
    %vm541 = vmand %vm509, %vm525
    %vm542 = vmand %vm510, %vm526
    %vm543 = vmand %vm511, %vm527
    %vm544 = vmand %vm512, %vm528
    %vm545 = vmand %vm513, %vm529
    %vm546 = vmand %vm514, %vm530
    %vm547 = vmand %vm515, %vm531
    %vm548 = vmand %vm516, %vm532
    %v549 = vadd.s32 %v325, 4294967295
    %v550 = vadd.s32 %v326, 4294967295
    %v551 = vadd.s32 %v327, 4294967295
    %v552 = vadd.s32 %v328, 4294967295
    %v553 = vadd.s32 %v329, 4294967295
    %v554 = vadd.s32 %v330, 4294967295
    %v555 = vadd.s32 %v331, 4294967295
    %v556 = vadd.s32 %v332, 4294967295
    %v557 = vadd.s32 %v333, 4294967295
    %v558 = vadd.s32 %v334, 4294967295
    %v559 = vadd.s32 %v335, 4294967295
    %v560 = vadd.s32 %v336, 4294967295
    %v561 = vadd.s32 %v337, 4294967295
    %v562 = vadd.s32 %v338, 4294967295
    %v563 = vadd.s32 %v339, 4294967295
    %v564 = vadd.s32 %v340, 4294967295
    %vm565 = vcmp.ge.s32.totalorder %v549, 0
    %vm566 = vcmp.ge.s32.totalorder %v550, 0
    %vm567 = vcmp.ge.s32.totalorder %v551, 0
    %vm568 = vcmp.ge.s32.totalorder %v552, 0
    %vm569 = vcmp.ge.s32.totalorder %v553, 0
    %vm570 = vcmp.ge.s32.totalorder %v554, 0
    %vm571 = vcmp.ge.s32.totalorder %v555, 0
    %vm572 = vcmp.ge.s32.totalorder %v556, 0
    %vm573 = vcmp.ge.s32.totalorder %v557, 0
    %vm574 = vcmp.ge.s32.totalorder %v558, 0
    %vm575 = vcmp.ge.s32.totalorder %v559, 0
    %vm576 = vcmp.ge.s32.totalorder %v560, 0
    %vm577 = vcmp.ge.s32.totalorder %v561, 0
    %vm578 = vcmp.ge.s32.totalorder %v562, 0
    %vm579 = vcmp.ge.s32.totalorder %v563, 0
    %vm580 = vcmp.ge.s32.totalorder %v564, 0
    %vm581 = vcmp.lt.s32.totalorder %v549, 8
    %vm582 = vcmp.lt.s32.totalorder %v550, 8
    %vm583 = vcmp.lt.s32.totalorder %v551, 8
    %vm584 = vcmp.lt.s32.totalorder %v552, 8
    %vm585 = vcmp.lt.s32.totalorder %v553, 8
    %vm586 = vcmp.lt.s32.totalorder %v554, 8
    %vm587 = vcmp.lt.s32.totalorder %v555, 8
    %vm588 = vcmp.lt.s32.totalorder %v556, 8
    %vm589 = vcmp.lt.s32.totalorder %v557, 8
    %vm590 = vcmp.lt.s32.totalorder %v558, 8
    %vm591 = vcmp.lt.s32.totalorder %v559, 8
    %vm592 = vcmp.lt.s32.totalorder %v560, 8
    %vm593 = vcmp.lt.s32.totalorder %v561, 8
    %vm594 = vcmp.lt.s32.totalorder %v562, 8
    %vm595 = vcmp.lt.s32.totalorder %v563, 8
    %vm596 = vcmp.lt.s32.totalorder %v564, 8
    %vm597 = vmand %vm565, %vm581
    %vm598 = vmand %vm566, %vm582
    %vm599 = vmand %vm567, %vm583
    %vm600 = vmand %vm568, %vm584
    %vm601 = vmand %vm569, %vm585
    %vm602 = vmand %vm570, %vm586
    %vm603 = vmand %vm571, %vm587
    %vm604 = vmand %vm572, %vm588
    %vm605 = vmand %vm573, %vm589
    %vm606 = vmand %vm574, %vm590
    %vm607 = vmand %vm575, %vm591
    %vm608 = vmand %vm576, %vm592
    %vm609 = vmand %vm577, %vm593
    %vm610 = vmand %vm578, %vm594
    %vm611 = vmand %vm579, %vm595
    %vm612 = vmand %vm580, %vm596
    %vm613 = vcmp.ge.s32.totalorder %v325, 0
    %vm614 = vcmp.ge.s32.totalorder %v326, 0
    %vm615 = vcmp.ge.s32.totalorder %v327, 0
    %vm616 = vcmp.ge.s32.totalorder %v328, 0
    %vm617 = vcmp.ge.s32.totalorder %v329, 0
    %vm618 = vcmp.ge.s32.totalorder %v330, 0
    %vm619 = vcmp.ge.s32.totalorder %v331, 0
    %vm620 = vcmp.ge.s32.totalorder %v332, 0
    %vm621 = vcmp.ge.s32.totalorder %v333, 0
    %vm622 = vcmp.ge.s32.totalorder %v334, 0
    %vm623 = vcmp.ge.s32.totalorder %v335, 0
    %vm624 = vcmp.ge.s32.totalorder %v336, 0
    %vm625 = vcmp.ge.s32.totalorder %v337, 0
    %vm626 = vcmp.ge.s32.totalorder %v338, 0
    %vm627 = vcmp.ge.s32.totalorder %v339, 0
    %vm628 = vcmp.ge.s32.totalorder %v340, 0
    %vm629 = vcmp.lt.s32.totalorder %v325, 8
    %vm630 = vcmp.lt.s32.totalorder %v326, 8
    %vm631 = vcmp.lt.s32.totalorder %v327, 8
    %vm632 = vcmp.lt.s32.totalorder %v328, 8
    %vm633 = vcmp.lt.s32.totalorder %v329, 8
    %vm634 = vcmp.lt.s32.totalorder %v330, 8
    %vm635 = vcmp.lt.s32.totalorder %v331, 8
    %vm636 = vcmp.lt.s32.totalorder %v332, 8
    %vm637 = vcmp.lt.s32.totalorder %v333, 8
    %vm638 = vcmp.lt.s32.totalorder %v334, 8
    %vm639 = vcmp.lt.s32.totalorder %v335, 8
    %vm640 = vcmp.lt.s32.totalorder %v336, 8
    %vm641 = vcmp.lt.s32.totalorder %v337, 8
    %vm642 = vcmp.lt.s32.totalorder %v338, 8
    %vm643 = vcmp.lt.s32.totalorder %v339, 8
    %vm644 = vcmp.lt.s32.totalorder %v340, 8
    %vm645 = vmand %vm613, %vm629
    %vm646 = vmand %vm614, %vm630
    %vm647 = vmand %vm615, %vm631
    %vm648 = vmand %vm616, %vm632
    %vm649 = vmand %vm617, %vm633
    %vm650 = vmand %vm618, %vm634
    %vm651 = vmand %vm619, %vm635
    %vm652 = vmand %vm620, %vm636
    %vm653 = vmand %vm621, %vm637
    %vm654 = vmand %vm622, %vm638
    %vm655 = vmand %vm623, %vm639
    %vm656 = vmand %vm624, %vm640
    %vm657 = vmand %vm625, %vm641
    %vm658 = vmand %vm626, %vm642
    %vm659 = vmand %vm627, %vm643
    %vm660 = vmand %vm628, %vm644
    %v661 = vadd.s32 %v325, 1
    %v662 = vadd.s32 %v326, 1
    %v663 = vadd.s32 %v327, 1
    %v664 = vadd.s32 %v328, 1
    %v665 = vadd.s32 %v329, 1
    %v666 = vadd.s32 %v330, 1
    %v667 = vadd.s32 %v331, 1
    %v668 = vadd.s32 %v332, 1
    %v669 = vadd.s32 %v333, 1
    %v670 = vadd.s32 %v334, 1
    %v671 = vadd.s32 %v335, 1
    %v672 = vadd.s32 %v336, 1
    %v673 = vadd.s32 %v337, 1
    %v674 = vadd.s32 %v338, 1
    %v675 = vadd.s32 %v339, 1
    %v676 = vadd.s32 %v340, 1
    %vm677 = vcmp.ge.s32.totalorder %v661, 0
    %vm678 = vcmp.ge.s32.totalorder %v662, 0
    %vm679 = vcmp.ge.s32.totalorder %v663, 0
    %vm680 = vcmp.ge.s32.totalorder %v664, 0
    %vm681 = vcmp.ge.s32.totalorder %v665, 0
    %vm682 = vcmp.ge.s32.totalorder %v666, 0
    %vm683 = vcmp.ge.s32.totalorder %v667, 0
    %vm684 = vcmp.ge.s32.totalorder %v668, 0
    %vm685 = vcmp.ge.s32.totalorder %v669, 0
    %vm686 = vcmp.ge.s32.totalorder %v670, 0
    %vm687 = vcmp.ge.s32.totalorder %v671, 0
    %vm688 = vcmp.ge.s32.totalorder %v672, 0
    %vm689 = vcmp.ge.s32.totalorder %v673, 0
    %vm690 = vcmp.ge.s32.totalorder %v674, 0
    %vm691 = vcmp.ge.s32.totalorder %v675, 0
    %vm692 = vcmp.ge.s32.totalorder %v676, 0
    %vm693 = vcmp.lt.s32.totalorder %v661, 8
    %vm694 = vcmp.lt.s32.totalorder %v662, 8
    %vm695 = vcmp.lt.s32.totalorder %v663, 8
    %vm696 = vcmp.lt.s32.totalorder %v664, 8
    %vm697 = vcmp.lt.s32.totalorder %v665, 8
    %vm698 = vcmp.lt.s32.totalorder %v666, 8
    %vm699 = vcmp.lt.s32.totalorder %v667, 8
    %vm700 = vcmp.lt.s32.totalorder %v668, 8
    %vm701 = vcmp.lt.s32.totalorder %v669, 8
    %vm702 = vcmp.lt.s32.totalorder %v670, 8
    %vm703 = vcmp.lt.s32.totalorder %v671, 8
    %vm704 = vcmp.lt.s32.totalorder %v672, 8
    %vm705 = vcmp.lt.s32.totalorder %v673, 8
    %vm706 = vcmp.lt.s32.totalorder %v674, 8
    %vm707 = vcmp.lt.s32.totalorder %v675, 8
    %vm708 = vcmp.lt.s32.totalorder %v676, 8
    %vm709 = vmand %vm677, %vm693
    %vm710 = vmand %vm678, %vm694
    %vm711 = vmand %vm679, %vm695
    %vm712 = vmand %vm680, %vm696
    %vm713 = vmand %vm681, %vm697
    %vm714 = vmand %vm682, %vm698
    %vm715 = vmand %vm683, %vm699
    %vm716 = vmand %vm684, %vm700
    %vm717 = vmand %vm685, %vm701
    %vm718 = vmand %vm686, %vm702
    %vm719 = vmand %vm687, %vm703
    %vm720 = vmand %vm688, %vm704
    %vm721 = vmand %vm689, %vm705
    %vm722 = vmand %vm690, %vm706
    %vm723 = vmand %vm691, %vm707
    %vm724 = vmand %vm692, %vm708
    %v725 = vrot.slane %v292, 7
    %v726 = vrot.slane %v293, 7
    %v727 = vrot.slane %v294, 7
    %v728 = vrot.slane %v295, 7
    %v729 = vrot.slane %v296, 7
    %v730 = vrot.slane %v297, 7
    %v731 = vrot.slane %v298, 7
    %v732 = vrot.slane %v299, 7
    %v733 = vrot.slane %v300, 7
    %v734 = vrot.slane %v301, 7
    %v735 = vrot.slane %v302, 7
    %v736 = vrot.slane %v303, 7
    %v737 = vrot.slane %v304, 7
    %v738 = vrot.slane %v305, 7
    %v739 = vrot.slane %v306, 7
    %v740 = vrot.slane %v307, 7
    %vm741 = vcmp.lt.s32.totalorder %v309, 1
    %v742 = vsel %vm741, %v739, %v740
    %v743 = vsel %vm741, %v738, %v739
    %v744 = vsel %vm741, %v737, %v738
    %v745 = vsel %vm741, %v736, %v737
    %v746 = vsel %vm741, %v735, %v736
    %v747 = vsel %vm741, %v734, %v735
    %v748 = vsel %vm741, %v733, %v734
    %v749 = vsel %vm741, %v732, %v733
    %v750 = vsel %vm741, %v731, %v732
    %v751 = vsel %vm741, %v730, %v731
    %v752 = vsel %vm741, %v729, %v730
    %v753 = vsel %vm741, %v728, %v729
    %v754 = vsel %vm741, %v727, %v728
    %v755 = vsel %vm741, %v726, %v727
    %v756 = vsel %vm741, %v725, %v726
    %v757 = vsel %vm741, %v740, %v725
    %vm758 = vmand %vm421, %vm597
    %vm759 = vmand %vm422, %vm598
    %vm760 = vmand %vm423, %vm599
    %vm761 = vmand %vm424, %vm600
    %vm762 = vmand %vm425, %vm601
    %vm763 = vmand %vm426, %vm602
    %vm764 = vmand %vm427, %vm603
    %vm765 = vmand %vm428, %vm604
    %vm766 = vmand %vm429, %vm605
    %vm767 = vmand %vm430, %vm606
    %vm768 = vmand %vm431, %vm607
    %vm769 = vmand %vm432, %vm608
    %vm770 = vmand %vm433, %vm609
    %vm771 = vmand %vm434, %vm610
    %vm772 = vmand %vm435, %vm611
    %vm773 = vmand %vm436, %vm612
    %v774 = vsel %vm758, 1, 0
    %v775 = vsel %vm759, 1, 0
    %v776 = vsel %vm760, 1, 0
    %v777 = vsel %vm761, 1, 0
    %v778 = vsel %vm762, 1, 0
    %v779 = vsel %vm763, 1, 0
    %v780 = vsel %vm764, 1, 0
    %v781 = vsel %vm765, 1, 0
    %v782 = vsel %vm766, 1, 0
    %v783 = vsel %vm767, 1, 0
    %v784 = vsel %vm768, 1, 0
    %v785 = vsel %vm769, 1, 0
    %v786 = vsel %vm770, 1, 0
    %v787 = vsel %vm771, 1, 0
    %v788 = vsel %vm772, 1, 0
    %v789 = vsel %vm773, 1, 0
    %vm790 = vcmp.eq.s32.totalorder %v774, 1
    %vm791 = vcmp.eq.s32.totalorder %v775, 1
    %vm792 = vcmp.eq.s32.totalorder %v776, 1
    %vm793 = vcmp.eq.s32.totalorder %v777, 1
    %vm794 = vcmp.eq.s32.totalorder %v778, 1
    %vm795 = vcmp.eq.s32.totalorder %v779, 1
    %vm796 = vcmp.eq.s32.totalorder %v780, 1
    %vm797 = vcmp.eq.s32.totalorder %v781, 1
    %vm798 = vcmp.eq.s32.totalorder %v782, 1
    %vm799 = vcmp.eq.s32.totalorder %v783, 1
    %vm800 = vcmp.eq.s32.totalorder %v784, 1
    %vm801 = vcmp.eq.s32.totalorder %v785, 1
    %vm802 = vcmp.eq.s32.totalorder %v786, 1
    %vm803 = vcmp.eq.s32.totalorder %v787, 1
    %vm804 = vcmp.eq.s32.totalorder %v788, 1
    %vm805 = vcmp.eq.s32.totalorder %v789, 1
    %v806 = vsel %vm790, %v742, 0.0
    %v807 = vsel %vm791, %v757, 0.0
    %v808 = vsel %vm792, %v756, 0.0
    %v809 = vsel %vm793, %v755, 0.0
    %v810 = vsel %vm794, %v754, 0.0
    %v811 = vsel %vm795, %v753, 0.0
    %v812 = vsel %vm796, %v752, 0.0
    %v813 = vsel %vm797, %v751, 0.0
    %v814 = vsel %vm798, %v750, 0.0
    %v815 = vsel %vm799, %v749, 0.0
    %v816 = vsel %vm800, %v748, 0.0
    %v817 = vsel %vm801, %v747, 0.0
    %v818 = vsel %vm802, %v746, 0.0
    %v819 = vsel %vm803, %v745, 0.0
    %v820 = vsel %vm804, %v744, 0.0
    %v821 = vsel %vm805, %v743, 0.0
    %v822 = vpack.c.bf16 %v806, %v806
    %v823 = vpack.c.bf16 %v807, %v807
    %v824 = vpack.c.bf16 %v808, %v808
    %v825 = vpack.c.bf16 %v809, %v809
    %v826 = vpack.c.bf16 %v810, %v810
    %v827 = vpack.c.bf16 %v811, %v811
    %v828 = vpack.c.bf16 %v812, %v812
    %v829 = vpack.c.bf16 %v813, %v813
    %v830 = vpack.c.bf16 %v814, %v814
    %v831 = vpack.c.bf16 %v815, %v815
    %v832 = vpack.c.bf16 %v816, %v816
    %v833 = vpack.c.bf16 %v817, %v817
    %v834 = vpack.c.bf16 %v818, %v818
    %v835 = vpack.c.bf16 %v819, %v819
    %v836 = vpack.c.bf16 %v820, %v820
    %v837 = vpack.c.bf16 %v821, %v821
    %vm838 = vmand %vm421, %vm645
    %vm839 = vmand %vm422, %vm646
    %vm840 = vmand %vm423, %vm647
    %vm841 = vmand %vm424, %vm648
    %vm842 = vmand %vm425, %vm649
    %vm843 = vmand %vm426, %vm650
    %vm844 = vmand %vm427, %vm651
    %vm845 = vmand %vm428, %vm652
    %vm846 = vmand %vm429, %vm653
    %vm847 = vmand %vm430, %vm654
    %vm848 = vmand %vm431, %vm655
    %vm849 = vmand %vm432, %vm656
    %vm850 = vmand %vm433, %vm657
    %vm851 = vmand %vm434, %vm658
    %vm852 = vmand %vm435, %vm659
    %vm853 = vmand %vm436, %vm660
    %v854 = vsel %vm838, 1, 0
    %v855 = vsel %vm839, 1, 0
    %v856 = vsel %vm840, 1, 0
    %v857 = vsel %vm841, 1, 0
    %v858 = vsel %vm842, 1, 0
    %v859 = vsel %vm843, 1, 0
    %v860 = vsel %vm844, 1, 0
    %v861 = vsel %vm845, 1, 0
    %v862 = vsel %vm846, 1, 0
    %v863 = vsel %vm847, 1, 0
    %v864 = vsel %vm848, 1, 0
    %v865 = vsel %vm849, 1, 0
    %v866 = vsel %vm850, 1, 0
    %v867 = vsel %vm851, 1, 0
    %v868 = vsel %vm852, 1, 0
    %v869 = vsel %vm853, 1, 0
    %vm870 = vcmp.eq.s32.totalorder %v854, 1
    %vm871 = vcmp.eq.s32.totalorder %v855, 1
    %vm872 = vcmp.eq.s32.totalorder %v856, 1
    %vm873 = vcmp.eq.s32.totalorder %v857, 1
    %vm874 = vcmp.eq.s32.totalorder %v858, 1
    %vm875 = vcmp.eq.s32.totalorder %v859, 1
    %vm876 = vcmp.eq.s32.totalorder %v860, 1
    %vm877 = vcmp.eq.s32.totalorder %v861, 1
    %vm878 = vcmp.eq.s32.totalorder %v862, 1
    %vm879 = vcmp.eq.s32.totalorder %v863, 1
    %vm880 = vcmp.eq.s32.totalorder %v864, 1
    %vm881 = vcmp.eq.s32.totalorder %v865, 1
    %vm882 = vcmp.eq.s32.totalorder %v866, 1
    %vm883 = vcmp.eq.s32.totalorder %v867, 1
    %vm884 = vcmp.eq.s32.totalorder %v868, 1
    %vm885 = vcmp.eq.s32.totalorder %v869, 1
    %v886 = vsel %vm870, %v307, 0.0
    %v887 = vsel %vm871, %v292, 0.0
    %v888 = vsel %vm872, %v293, 0.0
    %v889 = vsel %vm873, %v294, 0.0
    %v890 = vsel %vm874, %v295, 0.0
    %v891 = vsel %vm875, %v296, 0.0
    %v892 = vsel %vm876, %v297, 0.0
    %v893 = vsel %vm877, %v298, 0.0
    %v894 = vsel %vm878, %v299, 0.0
    %v895 = vsel %vm879, %v300, 0.0
    %v896 = vsel %vm880, %v301, 0.0
    %v897 = vsel %vm881, %v302, 0.0
    %v898 = vsel %vm882, %v303, 0.0
    %v899 = vsel %vm883, %v304, 0.0
    %v900 = vsel %vm884, %v305, 0.0
    %v901 = vsel %vm885, %v306, 0.0
    %v902 = vpack.c.bf16 %v886, %v886
    %v903 = vpack.c.bf16 %v887, %v887
    %v904 = vpack.c.bf16 %v888, %v888
    %v905 = vpack.c.bf16 %v889, %v889
    %v906 = vpack.c.bf16 %v890, %v890
    %v907 = vpack.c.bf16 %v891, %v891
    %v908 = vpack.c.bf16 %v892, %v892
    %v909 = vpack.c.bf16 %v893, %v893
    %v910 = vpack.c.bf16 %v894, %v894
    %v911 = vpack.c.bf16 %v895, %v895
    %v912 = vpack.c.bf16 %v896, %v896
    %v913 = vpack.c.bf16 %v897, %v897
    %v914 = vpack.c.bf16 %v898, %v898
    %v915 = vpack.c.bf16 %v899, %v899
    %v916 = vpack.c.bf16 %v900, %v900
    %v917 = vpack.c.bf16 %v901, %v901
    %v918 = vrot.slane %v292, 1
    %v919 = vrot.slane %v293, 1
    %v920 = vrot.slane %v294, 1
    %v921 = vrot.slane %v295, 1
    %v922 = vrot.slane %v296, 1
    %v923 = vrot.slane %v297, 1
    %v924 = vrot.slane %v298, 1
    %v925 = vrot.slane %v299, 1
    %v926 = vrot.slane %v300, 1
    %v927 = vrot.slane %v301, 1
    %v928 = vrot.slane %v302, 1
    %v929 = vrot.slane %v303, 1
    %v930 = vrot.slane %v304, 1
    %v931 = vrot.slane %v305, 1
    %v932 = vrot.slane %v306, 1
    %v933 = vrot.slane %v307, 1
    %vm934 = vcmp.lt.s32.totalorder %v309, 7
    %v935 = vsel %vm934, %v932, %v933
    %v936 = vsel %vm934, %v931, %v932
    %v937 = vsel %vm934, %v930, %v931
    %v938 = vsel %vm934, %v929, %v930
    %v939 = vsel %vm934, %v928, %v929
    %v940 = vsel %vm934, %v927, %v928
    %v941 = vsel %vm934, %v926, %v927
    %v942 = vsel %vm934, %v925, %v926
    %v943 = vsel %vm934, %v924, %v925
    %v944 = vsel %vm934, %v923, %v924
    %v945 = vsel %vm934, %v922, %v923
    %v946 = vsel %vm934, %v921, %v922
    %v947 = vsel %vm934, %v920, %v921
    %v948 = vsel %vm934, %v919, %v920
    %v949 = vsel %vm934, %v918, %v919
    %v950 = vsel %vm934, %v933, %v918
    %vm951 = vmand %vm421, %vm709
    %vm952 = vmand %vm422, %vm710
    %vm953 = vmand %vm423, %vm711
    %vm954 = vmand %vm424, %vm712
    %vm955 = vmand %vm425, %vm713
    %vm956 = vmand %vm426, %vm714
    %vm957 = vmand %vm427, %vm715
    %vm958 = vmand %vm428, %vm716
    %vm959 = vmand %vm429, %vm717
    %vm960 = vmand %vm430, %vm718
    %vm961 = vmand %vm431, %vm719
    %vm962 = vmand %vm432, %vm720
    %vm963 = vmand %vm433, %vm721
    %vm964 = vmand %vm434, %vm722
    %vm965 = vmand %vm435, %vm723
    %vm966 = vmand %vm436, %vm724
    %v967 = vsel %vm951, 1, 0
    %v968 = vsel %vm952, 1, 0
    %v969 = vsel %vm953, 1, 0
    %v970 = vsel %vm954, 1, 0
    %v971 = vsel %vm955, 1, 0
    %v972 = vsel %vm956, 1, 0
    %v973 = vsel %vm957, 1, 0
    %v974 = vsel %vm958, 1, 0
    %v975 = vsel %vm959, 1, 0
    %v976 = vsel %vm960, 1, 0
    %v977 = vsel %vm961, 1, 0
    %v978 = vsel %vm962, 1, 0
    %v979 = vsel %vm963, 1, 0
    %v980 = vsel %vm964, 1, 0
    %v981 = vsel %vm965, 1, 0
    %v982 = vsel %vm966, 1, 0
    %vm983 = vcmp.eq.s32.totalorder %v967, 1
    %vm984 = vcmp.eq.s32.totalorder %v968, 1
    %vm985 = vcmp.eq.s32.totalorder %v969, 1
    %vm986 = vcmp.eq.s32.totalorder %v970, 1
    %vm987 = vcmp.eq.s32.totalorder %v971, 1
    %vm988 = vcmp.eq.s32.totalorder %v972, 1
    %vm989 = vcmp.eq.s32.totalorder %v973, 1
    %vm990 = vcmp.eq.s32.totalorder %v974, 1
    %vm991 = vcmp.eq.s32.totalorder %v975, 1
    %vm992 = vcmp.eq.s32.totalorder %v976, 1
    %vm993 = vcmp.eq.s32.totalorder %v977, 1
    %vm994 = vcmp.eq.s32.totalorder %v978, 1
    %vm995 = vcmp.eq.s32.totalorder %v979, 1
    %vm996 = vcmp.eq.s32.totalorder %v980, 1
    %vm997 = vcmp.eq.s32.totalorder %v981, 1
    %vm998 = vcmp.eq.s32.totalorder %v982, 1
    %v999 = vsel %vm983, %v950, 0.0
    %v1000 = vsel %vm984, %v949, 0.0
    %v1001 = vsel %vm985, %v948, 0.0
    %v1002 = vsel %vm986, %v947, 0.0
    %v1003 = vsel %vm987, %v946, 0.0
    %v1004 = vsel %vm988, %v945, 0.0
    %v1005 = vsel %vm989, %v944, 0.0
    %v1006 = vsel %vm990, %v943, 0.0
    %v1007 = vsel %vm991, %v942, 0.0
    %v1008 = vsel %vm992, %v941, 0.0
    %v1009 = vsel %vm993, %v940, 0.0
    %v1010 = vsel %vm994, %v939, 0.0
    %v1011 = vsel %vm995, %v938, 0.0
    %v1012 = vsel %vm996, %v937, 0.0
    %v1013 = vsel %vm997, %v936, 0.0
    %v1014 = vsel %vm998, %v935, 0.0
    %v1015 = vpack.c.bf16 %v999, %v999
    %v1016 = vpack.c.bf16 %v1000, %v1000
    %v1017 = vpack.c.bf16 %v1001, %v1001
    %v1018 = vpack.c.bf16 %v1002, %v1002
    %v1019 = vpack.c.bf16 %v1003, %v1003
    %v1020 = vpack.c.bf16 %v1004, %v1004
    %v1021 = vpack.c.bf16 %v1005, %v1005
    %v1022 = vpack.c.bf16 %v1006, %v1006
    %v1023 = vpack.c.bf16 %v1007, %v1007
    %v1024 = vpack.c.bf16 %v1008, %v1008
    %v1025 = vpack.c.bf16 %v1009, %v1009
    %v1026 = vpack.c.bf16 %v1010, %v1010
    %v1027 = vpack.c.bf16 %v1011, %v1011
    %v1028 = vpack.c.bf16 %v1012, %v1012
    %v1029 = vpack.c.bf16 %v1013, %v1013
    %v1030 = vpack.c.bf16 %v1014, %v1014
    %vm1031 = vmand %vm469, %vm597
    %vm1032 = vmand %vm470, %vm598
    %vm1033 = vmand %vm471, %vm599
    %vm1034 = vmand %vm472, %vm600
    %vm1035 = vmand %vm473, %vm601
    %vm1036 = vmand %vm474, %vm602
    %vm1037 = vmand %vm475, %vm603
    %vm1038 = vmand %vm476, %vm604
    %vm1039 = vmand %vm477, %vm605
    %vm1040 = vmand %vm478, %vm606
    %vm1041 = vmand %vm479, %vm607
    %vm1042 = vmand %vm480, %vm608
    %vm1043 = vmand %vm481, %vm609
    %vm1044 = vmand %vm482, %vm610
    %vm1045 = vmand %vm483, %vm611
    %vm1046 = vmand %vm484, %vm612
    %v1047 = vsel %vm1031, 1, 0
    %v1048 = vsel %vm1032, 1, 0
    %v1049 = vsel %vm1033, 1, 0
    %v1050 = vsel %vm1034, 1, 0
    %v1051 = vsel %vm1035, 1, 0
    %v1052 = vsel %vm1036, 1, 0
    %v1053 = vsel %vm1037, 1, 0
    %v1054 = vsel %vm1038, 1, 0
    %v1055 = vsel %vm1039, 1, 0
    %v1056 = vsel %vm1040, 1, 0
    %v1057 = vsel %vm1041, 1, 0
    %v1058 = vsel %vm1042, 1, 0
    %v1059 = vsel %vm1043, 1, 0
    %v1060 = vsel %vm1044, 1, 0
    %v1061 = vsel %vm1045, 1, 0
    %v1062 = vsel %vm1046, 1, 0
    %vm1063 = vcmp.eq.s32.totalorder %v1047, 1
    %vm1064 = vcmp.eq.s32.totalorder %v1048, 1
    %vm1065 = vcmp.eq.s32.totalorder %v1049, 1
    %vm1066 = vcmp.eq.s32.totalorder %v1050, 1
    %vm1067 = vcmp.eq.s32.totalorder %v1051, 1
    %vm1068 = vcmp.eq.s32.totalorder %v1052, 1
    %vm1069 = vcmp.eq.s32.totalorder %v1053, 1
    %vm1070 = vcmp.eq.s32.totalorder %v1054, 1
    %vm1071 = vcmp.eq.s32.totalorder %v1055, 1
    %vm1072 = vcmp.eq.s32.totalorder %v1056, 1
    %vm1073 = vcmp.eq.s32.totalorder %v1057, 1
    %vm1074 = vcmp.eq.s32.totalorder %v1058, 1
    %vm1075 = vcmp.eq.s32.totalorder %v1059, 1
    %vm1076 = vcmp.eq.s32.totalorder %v1060, 1
    %vm1077 = vcmp.eq.s32.totalorder %v1061, 1
    %vm1078 = vcmp.eq.s32.totalorder %v1062, 1
    %v1079 = vsel %vm1063, %v757, 0.0
    %v1080 = vsel %vm1064, %v756, 0.0
    %v1081 = vsel %vm1065, %v755, 0.0
    %v1082 = vsel %vm1066, %v754, 0.0
    %v1083 = vsel %vm1067, %v753, 0.0
    %v1084 = vsel %vm1068, %v752, 0.0
    %v1085 = vsel %vm1069, %v751, 0.0
    %v1086 = vsel %vm1070, %v750, 0.0
    %v1087 = vsel %vm1071, %v749, 0.0
    %v1088 = vsel %vm1072, %v748, 0.0
    %v1089 = vsel %vm1073, %v747, 0.0
    %v1090 = vsel %vm1074, %v746, 0.0
    %v1091 = vsel %vm1075, %v745, 0.0
    %v1092 = vsel %vm1076, %v744, 0.0
    %v1093 = vsel %vm1077, %v743, 0.0
    %v1094 = vsel %vm1078, %v742, 0.0
    %v1095 = vpack.c.bf16 %v1079, %v1079
    %v1096 = vpack.c.bf16 %v1080, %v1080
    %v1097 = vpack.c.bf16 %v1081, %v1081
    %v1098 = vpack.c.bf16 %v1082, %v1082
    %v1099 = vpack.c.bf16 %v1083, %v1083
    %v1100 = vpack.c.bf16 %v1084, %v1084
    %v1101 = vpack.c.bf16 %v1085, %v1085
    %v1102 = vpack.c.bf16 %v1086, %v1086
    %v1103 = vpack.c.bf16 %v1087, %v1087
    %v1104 = vpack.c.bf16 %v1088, %v1088
    %v1105 = vpack.c.bf16 %v1089, %v1089
    %v1106 = vpack.c.bf16 %v1090, %v1090
    %v1107 = vpack.c.bf16 %v1091, %v1091
    %v1108 = vpack.c.bf16 %v1092, %v1092
    %v1109 = vpack.c.bf16 %v1093, %v1093
    %v1110 = vpack.c.bf16 %v1094, %v1094
    %v1111 = vpack.c.bf16 %v292, %v292
    %v1112 = vpack.c.bf16 %v293, %v293
    %v1113 = vpack.c.bf16 %v294, %v294
    %v1114 = vpack.c.bf16 %v295, %v295
    %v1115 = vpack.c.bf16 %v296, %v296
    %v1116 = vpack.c.bf16 %v297, %v297
    %v1117 = vpack.c.bf16 %v298, %v298
    %v1118 = vpack.c.bf16 %v299, %v299
    %v1119 = vpack.c.bf16 %v300, %v300
    %v1120 = vpack.c.bf16 %v301, %v301
    %v1121 = vpack.c.bf16 %v302, %v302
    %v1122 = vpack.c.bf16 %v303, %v303
    %v1123 = vpack.c.bf16 %v304, %v304
    %v1124 = vpack.c.bf16 %v305, %v305
    %v1125 = vpack.c.bf16 %v306, %v306
    %v1126 = vpack.c.bf16 %v307, %v307
    %vm1127 = vmand %vm469, %vm709
    %vm1128 = vmand %vm470, %vm710
    %vm1129 = vmand %vm471, %vm711
    %vm1130 = vmand %vm472, %vm712
    %vm1131 = vmand %vm473, %vm713
    %vm1132 = vmand %vm474, %vm714
    %vm1133 = vmand %vm475, %vm715
    %vm1134 = vmand %vm476, %vm716
    %vm1135 = vmand %vm477, %vm717
    %vm1136 = vmand %vm478, %vm718
    %vm1137 = vmand %vm479, %vm719
    %vm1138 = vmand %vm480, %vm720
    %vm1139 = vmand %vm481, %vm721
    %vm1140 = vmand %vm482, %vm722
    %vm1141 = vmand %vm483, %vm723
    %vm1142 = vmand %vm484, %vm724
    %v1143 = vsel %vm1127, 1, 0
    %v1144 = vsel %vm1128, 1, 0
    %v1145 = vsel %vm1129, 1, 0
    %v1146 = vsel %vm1130, 1, 0
    %v1147 = vsel %vm1131, 1, 0
    %v1148 = vsel %vm1132, 1, 0
    %v1149 = vsel %vm1133, 1, 0
    %v1150 = vsel %vm1134, 1, 0
    %v1151 = vsel %vm1135, 1, 0
    %v1152 = vsel %vm1136, 1, 0
    %v1153 = vsel %vm1137, 1, 0
    %v1154 = vsel %vm1138, 1, 0
    %v1155 = vsel %vm1139, 1, 0
    %v1156 = vsel %vm1140, 1, 0
    %v1157 = vsel %vm1141, 1, 0
    %v1158 = vsel %vm1142, 1, 0
    %vm1159 = vcmp.eq.s32.totalorder %v1143, 1
    %vm1160 = vcmp.eq.s32.totalorder %v1144, 1
    %vm1161 = vcmp.eq.s32.totalorder %v1145, 1
    %vm1162 = vcmp.eq.s32.totalorder %v1146, 1
    %vm1163 = vcmp.eq.s32.totalorder %v1147, 1
    %vm1164 = vcmp.eq.s32.totalorder %v1148, 1
    %vm1165 = vcmp.eq.s32.totalorder %v1149, 1
    %vm1166 = vcmp.eq.s32.totalorder %v1150, 1
    %vm1167 = vcmp.eq.s32.totalorder %v1151, 1
    %vm1168 = vcmp.eq.s32.totalorder %v1152, 1
    %vm1169 = vcmp.eq.s32.totalorder %v1153, 1
    %vm1170 = vcmp.eq.s32.totalorder %v1154, 1
    %vm1171 = vcmp.eq.s32.totalorder %v1155, 1
    %vm1172 = vcmp.eq.s32.totalorder %v1156, 1
    %vm1173 = vcmp.eq.s32.totalorder %v1157, 1
    %vm1174 = vcmp.eq.s32.totalorder %v1158, 1
    %v1175 = vsel %vm1159, %v949, 0.0
    %v1176 = vsel %vm1160, %v948, 0.0
    %v1177 = vsel %vm1161, %v947, 0.0
    %v1178 = vsel %vm1162, %v946, 0.0
    %v1179 = vsel %vm1163, %v945, 0.0
    %v1180 = vsel %vm1164, %v944, 0.0
    %v1181 = vsel %vm1165, %v943, 0.0
    %v1182 = vsel %vm1166, %v942, 0.0
    %v1183 = vsel %vm1167, %v941, 0.0
    %v1184 = vsel %vm1168, %v940, 0.0
    %v1185 = vsel %vm1169, %v939, 0.0
    %v1186 = vsel %vm1170, %v938, 0.0
    %v1187 = vsel %vm1171, %v937, 0.0
    %v1188 = vsel %vm1172, %v936, 0.0
    %v1189 = vsel %vm1173, %v935, 0.0
    %v1190 = vsel %vm1174, %v950, 0.0
    %v1191 = vpack.c.bf16 %v1175, %v1175
    %v1192 = vpack.c.bf16 %v1176, %v1176
    %v1193 = vpack.c.bf16 %v1177, %v1177
    %v1194 = vpack.c.bf16 %v1178, %v1178
    %v1195 = vpack.c.bf16 %v1179, %v1179
    %v1196 = vpack.c.bf16 %v1180, %v1180
    %v1197 = vpack.c.bf16 %v1181, %v1181
    %v1198 = vpack.c.bf16 %v1182, %v1182
    %v1199 = vpack.c.bf16 %v1183, %v1183
    %v1200 = vpack.c.bf16 %v1184, %v1184
    %v1201 = vpack.c.bf16 %v1185, %v1185
    %v1202 = vpack.c.bf16 %v1186, %v1186
    %v1203 = vpack.c.bf16 %v1187, %v1187
    %v1204 = vpack.c.bf16 %v1188, %v1188
    %v1205 = vpack.c.bf16 %v1189, %v1189
    %v1206 = vpack.c.bf16 %v1190, %v1190
    %vm1207 = vmand %vm533, %vm597
    %vm1208 = vmand %vm534, %vm598
    %vm1209 = vmand %vm535, %vm599
    %vm1210 = vmand %vm536, %vm600
    %vm1211 = vmand %vm537, %vm601
    %vm1212 = vmand %vm538, %vm602
    %vm1213 = vmand %vm539, %vm603
    %vm1214 = vmand %vm540, %vm604
    %vm1215 = vmand %vm541, %vm605
    %vm1216 = vmand %vm542, %vm606
    %vm1217 = vmand %vm543, %vm607
    %vm1218 = vmand %vm544, %vm608
    %vm1219 = vmand %vm545, %vm609
    %vm1220 = vmand %vm546, %vm610
    %vm1221 = vmand %vm547, %vm611
    %vm1222 = vmand %vm548, %vm612
    %v1223 = vsel %vm1207, 1, 0
    %v1224 = vsel %vm1208, 1, 0
    %v1225 = vsel %vm1209, 1, 0
    %v1226 = vsel %vm1210, 1, 0
    %v1227 = vsel %vm1211, 1, 0
    %v1228 = vsel %vm1212, 1, 0
    %v1229 = vsel %vm1213, 1, 0
    %v1230 = vsel %vm1214, 1, 0
    %v1231 = vsel %vm1215, 1, 0
    %v1232 = vsel %vm1216, 1, 0
    %v1233 = vsel %vm1217, 1, 0
    %v1234 = vsel %vm1218, 1, 0
    %v1235 = vsel %vm1219, 1, 0
    %v1236 = vsel %vm1220, 1, 0
    %v1237 = vsel %vm1221, 1, 0
    %v1238 = vsel %vm1222, 1, 0
    %vm1239 = vcmp.eq.s32.totalorder %v1223, 1
    %vm1240 = vcmp.eq.s32.totalorder %v1224, 1
    %vm1241 = vcmp.eq.s32.totalorder %v1225, 1
    %vm1242 = vcmp.eq.s32.totalorder %v1226, 1
    %vm1243 = vcmp.eq.s32.totalorder %v1227, 1
    %vm1244 = vcmp.eq.s32.totalorder %v1228, 1
    %vm1245 = vcmp.eq.s32.totalorder %v1229, 1
    %vm1246 = vcmp.eq.s32.totalorder %v1230, 1
    %vm1247 = vcmp.eq.s32.totalorder %v1231, 1
    %vm1248 = vcmp.eq.s32.totalorder %v1232, 1
    %vm1249 = vcmp.eq.s32.totalorder %v1233, 1
    %vm1250 = vcmp.eq.s32.totalorder %v1234, 1
    %vm1251 = vcmp.eq.s32.totalorder %v1235, 1
    %vm1252 = vcmp.eq.s32.totalorder %v1236, 1
    %vm1253 = vcmp.eq.s32.totalorder %v1237, 1
    %vm1254 = vcmp.eq.s32.totalorder %v1238, 1
    %v1255 = vsel %vm1239, %v756, 0.0
    %v1256 = vsel %vm1240, %v755, 0.0
    %v1257 = vsel %vm1241, %v754, 0.0
    %v1258 = vsel %vm1242, %v753, 0.0
    %v1259 = vsel %vm1243, %v752, 0.0
    %v1260 = vsel %vm1244, %v751, 0.0
    %v1261 = vsel %vm1245, %v750, 0.0
    %v1262 = vsel %vm1246, %v749, 0.0
    %v1263 = vsel %vm1247, %v748, 0.0
    %v1264 = vsel %vm1248, %v747, 0.0
    %v1265 = vsel %vm1249, %v746, 0.0
    %v1266 = vsel %vm1250, %v745, 0.0
    %v1267 = vsel %vm1251, %v744, 0.0
    %v1268 = vsel %vm1252, %v743, 0.0
    %v1269 = vsel %vm1253, %v742, 0.0
    %v1270 = vsel %vm1254, %v757, 0.0
    %v1271 = vpack.c.bf16 %v1255, %v1255
    %v1272 = vpack.c.bf16 %v1256, %v1256
    %v1273 = vpack.c.bf16 %v1257, %v1257
    %v1274 = vpack.c.bf16 %v1258, %v1258
    %v1275 = vpack.c.bf16 %v1259, %v1259
    %v1276 = vpack.c.bf16 %v1260, %v1260
    %v1277 = vpack.c.bf16 %v1261, %v1261
    %v1278 = vpack.c.bf16 %v1262, %v1262
    %v1279 = vpack.c.bf16 %v1263, %v1263
    %v1280 = vpack.c.bf16 %v1264, %v1264
    %v1281 = vpack.c.bf16 %v1265, %v1265
    %v1282 = vpack.c.bf16 %v1266, %v1266
    %v1283 = vpack.c.bf16 %v1267, %v1267
    %v1284 = vpack.c.bf16 %v1268, %v1268
    %v1285 = vpack.c.bf16 %v1269, %v1269
    %v1286 = vpack.c.bf16 %v1270, %v1270
    %vm1287 = vmand %vm533, %vm645
    %vm1288 = vmand %vm534, %vm646
    %vm1289 = vmand %vm535, %vm647
    %vm1290 = vmand %vm536, %vm648
    %vm1291 = vmand %vm537, %vm649
    %vm1292 = vmand %vm538, %vm650
    %vm1293 = vmand %vm539, %vm651
    %vm1294 = vmand %vm540, %vm652
    %vm1295 = vmand %vm541, %vm653
    %vm1296 = vmand %vm542, %vm654
    %vm1297 = vmand %vm543, %vm655
    %vm1298 = vmand %vm544, %vm656
    %vm1299 = vmand %vm545, %vm657
    %vm1300 = vmand %vm546, %vm658
    %vm1301 = vmand %vm547, %vm659
    %vm1302 = vmand %vm548, %vm660
    %v1303 = vsel %vm1287, 1, 0
    %v1304 = vsel %vm1288, 1, 0
    %v1305 = vsel %vm1289, 1, 0
    %v1306 = vsel %vm1290, 1, 0
    %v1307 = vsel %vm1291, 1, 0
    %v1308 = vsel %vm1292, 1, 0
    %v1309 = vsel %vm1293, 1, 0
    %v1310 = vsel %vm1294, 1, 0
    %v1311 = vsel %vm1295, 1, 0
    %v1312 = vsel %vm1296, 1, 0
    %v1313 = vsel %vm1297, 1, 0
    %v1314 = vsel %vm1298, 1, 0
    %v1315 = vsel %vm1299, 1, 0
    %v1316 = vsel %vm1300, 1, 0
    %v1317 = vsel %vm1301, 1, 0
    %v1318 = vsel %vm1302, 1, 0
    %vm1319 = vcmp.eq.s32.totalorder %v1303, 1
    %vm1320 = vcmp.eq.s32.totalorder %v1304, 1
    %vm1321 = vcmp.eq.s32.totalorder %v1305, 1
    %vm1322 = vcmp.eq.s32.totalorder %v1306, 1
    %vm1323 = vcmp.eq.s32.totalorder %v1307, 1
    %vm1324 = vcmp.eq.s32.totalorder %v1308, 1
    %vm1325 = vcmp.eq.s32.totalorder %v1309, 1
    %vm1326 = vcmp.eq.s32.totalorder %v1310, 1
    %vm1327 = vcmp.eq.s32.totalorder %v1311, 1
    %vm1328 = vcmp.eq.s32.totalorder %v1312, 1
    %vm1329 = vcmp.eq.s32.totalorder %v1313, 1
    %vm1330 = vcmp.eq.s32.totalorder %v1314, 1
    %vm1331 = vcmp.eq.s32.totalorder %v1315, 1
    %vm1332 = vcmp.eq.s32.totalorder %v1316, 1
    %vm1333 = vcmp.eq.s32.totalorder %v1317, 1
    %vm1334 = vcmp.eq.s32.totalorder %v1318, 1
    %v1335 = vsel %vm1319, %v293, 0.0
    %v1336 = vsel %vm1320, %v294, 0.0
    %v1337 = vsel %vm1321, %v295, 0.0
    %v1338 = vsel %vm1322, %v296, 0.0
    %v1339 = vsel %vm1323, %v297, 0.0
    %v1340 = vsel %vm1324, %v298, 0.0
    %v1341 = vsel %vm1325, %v299, 0.0
    %v1342 = vsel %vm1326, %v300, 0.0
    %v1343 = vsel %vm1327, %v301, 0.0
    %v1344 = vsel %vm1328, %v302, 0.0
    %v1345 = vsel %vm1329, %v303, 0.0
    %v1346 = vsel %vm1330, %v304, 0.0
    %v1347 = vsel %vm1331, %v305, 0.0
    %v1348 = vsel %vm1332, %v306, 0.0
    %v1349 = vsel %vm1333, %v307, 0.0
    %v1350 = vsel %vm1334, %v292, 0.0
    %v1351 = vpack.c.bf16 %v1335, %v1335
    %v1352 = vpack.c.bf16 %v1336, %v1336
    %v1353 = vpack.c.bf16 %v1337, %v1337
    %v1354 = vpack.c.bf16 %v1338, %v1338
    %v1355 = vpack.c.bf16 %v1339, %v1339
    %v1356 = vpack.c.bf16 %v1340, %v1340
    %v1357 = vpack.c.bf16 %v1341, %v1341
    %v1358 = vpack.c.bf16 %v1342, %v1342
    %v1359 = vpack.c.bf16 %v1343, %v1343
    %v1360 = vpack.c.bf16 %v1344, %v1344
    %v1361 = vpack.c.bf16 %v1345, %v1345
    %v1362 = vpack.c.bf16 %v1346, %v1346
    %v1363 = vpack.c.bf16 %v1347, %v1347
    %v1364 = vpack.c.bf16 %v1348, %v1348
    %v1365 = vpack.c.bf16 %v1349, %v1349
    %v1366 = vpack.c.bf16 %v1350, %v1350
    %vm1367 = vmand %vm533, %vm709
    %vm1368 = vmand %vm534, %vm710
    %vm1369 = vmand %vm535, %vm711
    %vm1370 = vmand %vm536, %vm712
    %vm1371 = vmand %vm537, %vm713
    %vm1372 = vmand %vm538, %vm714
    %vm1373 = vmand %vm539, %vm715
    %vm1374 = vmand %vm540, %vm716
    %vm1375 = vmand %vm541, %vm717
    %vm1376 = vmand %vm542, %vm718
    %vm1377 = vmand %vm543, %vm719
    %vm1378 = vmand %vm544, %vm720
    %vm1379 = vmand %vm545, %vm721
    %vm1380 = vmand %vm546, %vm722
    %vm1381 = vmand %vm547, %vm723
    %vm1382 = vmand %vm548, %vm724
    %v1383 = vsel %vm1367, 1, 0
    %v1384 = vsel %vm1368, 1, 0
    %v1385 = vsel %vm1369, 1, 0
    %v1386 = vsel %vm1370, 1, 0
    %v1387 = vsel %vm1371, 1, 0
    %v1388 = vsel %vm1372, 1, 0
    %v1389 = vsel %vm1373, 1, 0
    %v1390 = vsel %vm1374, 1, 0
    %v1391 = vsel %vm1375, 1, 0
    %v1392 = vsel %vm1376, 1, 0
    %v1393 = vsel %vm1377, 1, 0
    %v1394 = vsel %vm1378, 1, 0
    %v1395 = vsel %vm1379, 1, 0
    %v1396 = vsel %vm1380, 1, 0
    %v1397 = vsel %vm1381, 1, 0
    %v1398 = vsel %vm1382, 1, 0
    %vm1399 = vcmp.eq.s32.totalorder %v1383, 1
    %vm1400 = vcmp.eq.s32.totalorder %v1384, 1
    %vm1401 = vcmp.eq.s32.totalorder %v1385, 1
    %vm1402 = vcmp.eq.s32.totalorder %v1386, 1
    %vm1403 = vcmp.eq.s32.totalorder %v1387, 1
    %vm1404 = vcmp.eq.s32.totalorder %v1388, 1
    %vm1405 = vcmp.eq.s32.totalorder %v1389, 1
    %vm1406 = vcmp.eq.s32.totalorder %v1390, 1
    %vm1407 = vcmp.eq.s32.totalorder %v1391, 1
    %vm1408 = vcmp.eq.s32.totalorder %v1392, 1
    %vm1409 = vcmp.eq.s32.totalorder %v1393, 1
    %vm1410 = vcmp.eq.s32.totalorder %v1394, 1
    %vm1411 = vcmp.eq.s32.totalorder %v1395, 1
    %vm1412 = vcmp.eq.s32.totalorder %v1396, 1
    %vm1413 = vcmp.eq.s32.totalorder %v1397, 1
    %vm1414 = vcmp.eq.s32.totalorder %v1398, 1
    %v1415 = vsel %vm1399, %v948, 0.0
    %v1416 = vsel %vm1400, %v947, 0.0
    %v1417 = vsel %vm1401, %v946, 0.0
    %v1418 = vsel %vm1402, %v945, 0.0
    %v1419 = vsel %vm1403, %v944, 0.0
    %v1420 = vsel %vm1404, %v943, 0.0
    %v1421 = vsel %vm1405, %v942, 0.0
    %v1422 = vsel %vm1406, %v941, 0.0
    %v1423 = vsel %vm1407, %v940, 0.0
    %v1424 = vsel %vm1408, %v939, 0.0
    %v1425 = vsel %vm1409, %v938, 0.0
    %v1426 = vsel %vm1410, %v937, 0.0
    %v1427 = vsel %vm1411, %v936, 0.0
    %v1428 = vsel %vm1412, %v935, 0.0
    %v1429 = vsel %vm1413, %v950, 0.0
    %v1430 = vsel %vm1414, %v949, 0.0
    %v1431 = vpack.c.bf16 %v1415, %v1415
    %v1432 = vpack.c.bf16 %v1416, %v1416
    %v1433 = vpack.c.bf16 %v1417, %v1417
    %v1434 = vpack.c.bf16 %v1418, %v1418
    %v1435 = vpack.c.bf16 %v1419, %v1419
    %v1436 = vpack.c.bf16 %v1420, %v1420
    %v1437 = vpack.c.bf16 %v1421, %v1421
    %v1438 = vpack.c.bf16 %v1422, %v1422
    %v1439 = vpack.c.bf16 %v1423, %v1423
    %v1440 = vpack.c.bf16 %v1424, %v1424
    %v1441 = vpack.c.bf16 %v1425, %v1425
    %v1442 = vpack.c.bf16 %v1426, %v1426
    %v1443 = vpack.c.bf16 %v1427, %v1427
    %v1444 = vpack.c.bf16 %v1428, %v1428
    %v1445 = vpack.c.bf16 %v1429, %v1429
    %v1446 = vpack.c.bf16 %v1430, %v1430
    %v1463 = vunpack.c.l.b16 %v822
    %v1464 = vunpack.c.l.b16 %v823
    %v1465 = vunpack.c.l.b16 %v824
    %v1466 = vunpack.c.l.b16 %v825
    %v1467 = vunpack.c.l.b16 %v826
    %v1468 = vunpack.c.l.b16 %v827
    %v1469 = vunpack.c.l.b16 %v828
    %v1470 = vunpack.c.l.b16 %v829
    %v1471 = vunpack.c.l.b16 %v830
    %v1472 = vunpack.c.l.b16 %v831
    %v1473 = vunpack.c.l.b16 %v832
    %v1474 = vunpack.c.l.b16 %v833
    %v1475 = vunpack.c.l.b16 %v834
    %v1476 = vunpack.c.l.b16 %v835
    %v1477 = vunpack.c.l.b16 %v836
    %v1478 = vunpack.c.l.b16 %v837
    %v1479 = vpack.c.b16 %v1464, %v1463
    %v1480 = vpack.c.b16 %v1466, %v1465
    %v1481 = vpack.c.b16 %v1468, %v1467
    %v1482 = vpack.c.b16 %v1470, %v1469
    %v1483 = vpack.c.b16 %v1472, %v1471
    %v1484 = vpack.c.b16 %v1474, %v1473
    %v1485 = vpack.c.b16 %v1476, %v1475
    %v1486 = vpack.c.b16 %v1478, %v1477
    %v1511 = vunpack.c.l.b16 %v902
    %v1512 = vunpack.c.l.b16 %v903
    %v1513 = vunpack.c.l.b16 %v904
    %v1514 = vunpack.c.l.b16 %v905
    %v1515 = vunpack.c.l.b16 %v906
    %v1516 = vunpack.c.l.b16 %v907
    %v1517 = vunpack.c.l.b16 %v908
    %v1518 = vunpack.c.l.b16 %v909
    %v1519 = vunpack.c.l.b16 %v910
    %v1520 = vunpack.c.l.b16 %v911
    %v1521 = vunpack.c.l.b16 %v912
    %v1522 = vunpack.c.l.b16 %v913
    %v1523 = vunpack.c.l.b16 %v914
    %v1524 = vunpack.c.l.b16 %v915
    %v1525 = vunpack.c.l.b16 %v916
    %v1526 = vunpack.c.l.b16 %v917
    %v1527 = vpack.c.b16 %v1512, %v1511
    %v1528 = vpack.c.b16 %v1514, %v1513
    %v1529 = vpack.c.b16 %v1516, %v1515
    %v1530 = vpack.c.b16 %v1518, %v1517
    %v1531 = vpack.c.b16 %v1520, %v1519
    %v1532 = vpack.c.b16 %v1522, %v1521
    %v1533 = vpack.c.b16 %v1524, %v1523
    %v1534 = vpack.c.b16 %v1526, %v1525
    %v1559 = vunpack.c.l.b16 %v1015
    %v1560 = vunpack.c.l.b16 %v1016
    %v1561 = vunpack.c.l.b16 %v1017
    %v1562 = vunpack.c.l.b16 %v1018
    %v1563 = vunpack.c.l.b16 %v1019
    %v1564 = vunpack.c.l.b16 %v1020
    %v1565 = vunpack.c.l.b16 %v1021
    %v1566 = vunpack.c.l.b16 %v1022
    %v1567 = vunpack.c.l.b16 %v1023
    %v1568 = vunpack.c.l.b16 %v1024
    %v1569 = vunpack.c.l.b16 %v1025
    %v1570 = vunpack.c.l.b16 %v1026
    %v1571 = vunpack.c.l.b16 %v1027
    %v1572 = vunpack.c.l.b16 %v1028
    %v1573 = vunpack.c.l.b16 %v1029
    %v1574 = vunpack.c.l.b16 %v1030
    %v1575 = vpack.c.b16 %v1560, %v1559
    %v1576 = vpack.c.b16 %v1562, %v1561
    %v1577 = vpack.c.b16 %v1564, %v1563
    %v1578 = vpack.c.b16 %v1566, %v1565
    %v1579 = vpack.c.b16 %v1568, %v1567
    %v1580 = vpack.c.b16 %v1570, %v1569
    %v1581 = vpack.c.b16 %v1572, %v1571
    %v1582 = vpack.c.b16 %v1574, %v1573
    %v1607 = vunpack.c.l.b16 %v1095
    %v1608 = vunpack.c.l.b16 %v1096
    %v1609 = vunpack.c.l.b16 %v1097
    %v1610 = vunpack.c.l.b16 %v1098
    %v1611 = vunpack.c.l.b16 %v1099
    %v1612 = vunpack.c.l.b16 %v1100
    %v1613 = vunpack.c.l.b16 %v1101
    %v1614 = vunpack.c.l.b16 %v1102
    %v1615 = vunpack.c.l.b16 %v1103
    %v1616 = vunpack.c.l.b16 %v1104
    %v1617 = vunpack.c.l.b16 %v1105
    %v1618 = vunpack.c.l.b16 %v1106
    %v1619 = vunpack.c.l.b16 %v1107
    %v1620 = vunpack.c.l.b16 %v1108
    %v1621 = vunpack.c.l.b16 %v1109
    %v1622 = vunpack.c.l.b16 %v1110
    %v1623 = vpack.c.b16 %v1608, %v1607
    %v1624 = vpack.c.b16 %v1610, %v1609
    %v1625 = vpack.c.b16 %v1612, %v1611
    %v1626 = vpack.c.b16 %v1614, %v1613
    %v1627 = vpack.c.b16 %v1616, %v1615
    %v1628 = vpack.c.b16 %v1618, %v1617
    %v1629 = vpack.c.b16 %v1620, %v1619
    %v1630 = vpack.c.b16 %v1622, %v1621
    %v1655 = vunpack.c.l.b16 %v1111
    %v1656 = vunpack.c.l.b16 %v1112
    %v1657 = vunpack.c.l.b16 %v1113
    %v1658 = vunpack.c.l.b16 %v1114
    %v1659 = vunpack.c.l.b16 %v1115
    %v1660 = vunpack.c.l.b16 %v1116
    %v1661 = vunpack.c.l.b16 %v1117
    %v1662 = vunpack.c.l.b16 %v1118
    %v1663 = vunpack.c.l.b16 %v1119
    %v1664 = vunpack.c.l.b16 %v1120
    %v1665 = vunpack.c.l.b16 %v1121
    %v1666 = vunpack.c.l.b16 %v1122
    %v1667 = vunpack.c.l.b16 %v1123
    %v1668 = vunpack.c.l.b16 %v1124
    %v1669 = vunpack.c.l.b16 %v1125
    %v1670 = vunpack.c.l.b16 %v1126
    %v1671 = vpack.c.b16 %v1656, %v1655
    %v1672 = vpack.c.b16 %v1658, %v1657
    %v1673 = vpack.c.b16 %v1660, %v1659
    %v1674 = vpack.c.b16 %v1662, %v1661
    %v1675 = vpack.c.b16 %v1664, %v1663
    %v1676 = vpack.c.b16 %v1666, %v1665
    %v1677 = vpack.c.b16 %v1668, %v1667
    %v1678 = vpack.c.b16 %v1670, %v1669
    %v1703 = vunpack.c.l.b16 %v1191
    %v1704 = vunpack.c.l.b16 %v1192
    %v1705 = vunpack.c.l.b16 %v1193
    %v1706 = vunpack.c.l.b16 %v1194
    %v1707 = vunpack.c.l.b16 %v1195
    %v1708 = vunpack.c.l.b16 %v1196
    %v1709 = vunpack.c.l.b16 %v1197
    %v1710 = vunpack.c.l.b16 %v1198
    %v1711 = vunpack.c.l.b16 %v1199
    %v1712 = vunpack.c.l.b16 %v1200
    %v1713 = vunpack.c.l.b16 %v1201
    %v1714 = vunpack.c.l.b16 %v1202
    %v1715 = vunpack.c.l.b16 %v1203
    %v1716 = vunpack.c.l.b16 %v1204
    %v1717 = vunpack.c.l.b16 %v1205
    %v1718 = vunpack.c.l.b16 %v1206
    %v1719 = vpack.c.b16 %v1704, %v1703
    %v1720 = vpack.c.b16 %v1706, %v1705
    %v1721 = vpack.c.b16 %v1708, %v1707
    %v1722 = vpack.c.b16 %v1710, %v1709
    %v1723 = vpack.c.b16 %v1712, %v1711
    %v1724 = vpack.c.b16 %v1714, %v1713
    %v1725 = vpack.c.b16 %v1716, %v1715
    %v1726 = vpack.c.b16 %v1718, %v1717
    %v1751 = vunpack.c.l.b16 %v1271
    %v1752 = vunpack.c.l.b16 %v1272
    %v1753 = vunpack.c.l.b16 %v1273
    %v1754 = vunpack.c.l.b16 %v1274
    %v1755 = vunpack.c.l.b16 %v1275
    %v1756 = vunpack.c.l.b16 %v1276
    %v1757 = vunpack.c.l.b16 %v1277
    %v1758 = vunpack.c.l.b16 %v1278
    %v1759 = vunpack.c.l.b16 %v1279
    %v1760 = vunpack.c.l.b16 %v1280
    %v1761 = vunpack.c.l.b16 %v1281
    %v1762 = vunpack.c.l.b16 %v1282
    %v1763 = vunpack.c.l.b16 %v1283
    %v1764 = vunpack.c.l.b16 %v1284
    %v1765 = vunpack.c.l.b16 %v1285
    %v1766 = vunpack.c.l.b16 %v1286
    %v1767 = vpack.c.b16 %v1752, %v1751
    %v1768 = vpack.c.b16 %v1754, %v1753
    %v1769 = vpack.c.b16 %v1756, %v1755
    %v1770 = vpack.c.b16 %v1758, %v1757
    %v1771 = vpack.c.b16 %v1760, %v1759
    %v1772 = vpack.c.b16 %v1762, %v1761
    %v1773 = vpack.c.b16 %v1764, %v1763
    %v1774 = vpack.c.b16 %v1766, %v1765
    %v1799 = vunpack.c.l.b16 %v1351
    %v1800 = vunpack.c.l.b16 %v1352
    %v1801 = vunpack.c.l.b16 %v1353
    %v1802 = vunpack.c.l.b16 %v1354
    %v1803 = vunpack.c.l.b16 %v1355
    %v1804 = vunpack.c.l.b16 %v1356
    %v1805 = vunpack.c.l.b16 %v1357
    %v1806 = vunpack.c.l.b16 %v1358
    %v1807 = vunpack.c.l.b16 %v1359
    %v1808 = vunpack.c.l.b16 %v1360
    %v1809 = vunpack.c.l.b16 %v1361
    %v1810 = vunpack.c.l.b16 %v1362
    %v1811 = vunpack.c.l.b16 %v1363
    %v1812 = vunpack.c.l.b16 %v1364
    %v1813 = vunpack.c.l.b16 %v1365
    %v1814 = vunpack.c.l.b16 %v1366
    %v1815 = vpack.c.b16 %v1800, %v1799
    %v1816 = vpack.c.b16 %v1802, %v1801
    %v1817 = vpack.c.b16 %v1804, %v1803
    %v1818 = vpack.c.b16 %v1806, %v1805
    %v1819 = vpack.c.b16 %v1808, %v1807
    %v1820 = vpack.c.b16 %v1810, %v1809
    %v1821 = vpack.c.b16 %v1812, %v1811
    %v1822 = vpack.c.b16 %v1814, %v1813
    %v1847 = vunpack.c.l.b16 %v1431
    %v1848 = vunpack.c.l.b16 %v1432
    %v1849 = vunpack.c.l.b16 %v1433
    %v1850 = vunpack.c.l.b16 %v1434
    %v1851 = vunpack.c.l.b16 %v1435
    %v1852 = vunpack.c.l.b16 %v1436
    %v1853 = vunpack.c.l.b16 %v1437
    %v1854 = vunpack.c.l.b16 %v1438
    %v1855 = vunpack.c.l.b16 %v1439
    %v1856 = vunpack.c.l.b16 %v1440
    %v1857 = vunpack.c.l.b16 %v1441
    %v1858 = vunpack.c.l.b16 %v1442
    %v1859 = vunpack.c.l.b16 %v1443
    %v1860 = vunpack.c.l.b16 %v1444
    %v1861 = vunpack.c.l.b16 %v1445
    %v1862 = vunpack.c.l.b16 %v1446
    %v1863 = vpack.c.b16 %v1848, %v1847
    %v1864 = vpack.c.b16 %v1850, %v1849
    %v1865 = vpack.c.b16 %v1852, %v1851
    %v1866 = vpack.c.b16 %v1854, %v1853
    %v1867 = vpack.c.b16 %v1856, %v1855
    %v1868 = vpack.c.b16 %v1858, %v1857
    %v1869 = vpack.c.b16 %v1860, %v1859
    %v1870 = vpack.c.b16 %v1862, %v1861
    %v1879 = vld [vmem:[#allocation7] sm:$0xf]
    %v1880 = vld [vmem:[#allocation7 + $0x4] sm:$0xf]
    %v1881 = vld [vmem:[#allocation7 + $0x8] sm:$0xf]
    %v1882 = vld [vmem:[#allocation7 + $0xc] sm:$0xf]
    %v1883 = vld [vmem:[#allocation7 + $0x10] sm:$0xf]
    %v1884 = vld [vmem:[#allocation7 + $0x14] sm:$0xf]
    %v1885 = vld [vmem:[#allocation7 + $0x18] sm:$0xf]
    %v1886 = vld [vmem:[#allocation7 + $0x1c] sm:$0xf]
    %v1887 = vld [vmem:[#allocation7 + $0x20] sm:$0xf]
    %v1888 = vld [vmem:[#allocation7 + $0x24] sm:$0xf]
    %v1889 = vld [vmem:[#allocation7 + $0x28] sm:$0xf]
    %v1890 = vld [vmem:[#allocation7 + $0x2c] sm:$0xf]
    %v1891 = vld [vmem:[#allocation7 + $0x30] sm:$0xf]
    %v1892 = vld [vmem:[#allocation7 + $0x34] sm:$0xf]
    %v1893 = vld [vmem:[#allocation7 + $0x38] sm:$0xf]
    %v1894 = vld [vmem:[#allocation7 + $0x3c] sm:$0xf]
    %v1895 = vld [vmem:[#allocation7 + $0x40] sm:$0xf]
    %v1896 = vld [vmem:[#allocation7 + $0x44] sm:$0xf]
    %v1897 = vld [vmem:[#allocation7 + $0x48] sm:$0xf]
    %v1898 = vld [vmem:[#allocation7 + $0x4c] sm:$0xf]
    %v1899 = vld [vmem:[#allocation7 + $0x50] sm:$0xf]
    %v1900 = vld [vmem:[#allocation7 + $0x54] sm:$0xf]
    %v1901 = vld [vmem:[#allocation7 + $0x58] sm:$0xf]
    %v1902 = vld [vmem:[#allocation7 + $0x5c] sm:$0xf]
    %v1903 = vld [vmem:[#allocation7 + $0x60] sm:$0xf]
    %v1904 = vld [vmem:[#allocation7 + $0x64] sm:$0xf]
    %v1905 = vld [vmem:[#allocation7 + $0x68] sm:$0xf]
    %v1906 = vld [vmem:[#allocation7 + $0x6c] sm:$0xf]
    %v1907 = vld [vmem:[#allocation7 + $0x70] sm:$0xf]
    %v1908 = vld [vmem:[#allocation7 + $0x74] sm:$0xf]
    %v1909 = vld [vmem:[#allocation7 + $0x78] sm:$0xf]
    %v1910 = vld [vmem:[#allocation7 + $0x7c] sm:$0xf]
    %v1911 = vld [vmem:[#allocation7 + $0x80] sm:$0xf]
    %v1912 = vld [vmem:[#allocation7 + $0x84] sm:$0xf]
    %v1913 = vld [vmem:[#allocation7 + $0x88] sm:$0xf]
    %v1914 = vld [vmem:[#allocation7 + $0x8c] sm:$0xf]
    %v1915 = vld [vmem:[#allocation7 + $0x90] sm:$0xf]
    %v1916 = vld [vmem:[#allocation7 + $0x94] sm:$0xf]
    %v1917 = vld [vmem:[#allocation7 + $0x98] sm:$0xf]
    %v1918 = vld [vmem:[#allocation7 + $0x9c] sm:$0xf]
    %v1919 = vld [vmem:[#allocation7 + $0xa0] sm:$0xf]
    %v1920 = vld [vmem:[#allocation7 + $0xa4] sm:$0xf]
    %v1921 = vld [vmem:[#allocation7 + $0xa8] sm:$0xf]
    %v1922 = vld [vmem:[#allocation7 + $0xac] sm:$0xf]
    %v1923 = vld [vmem:[#allocation7 + $0xb0] sm:$0xf]
    %v1924 = vld [vmem:[#allocation7 + $0xb4] sm:$0xf]
    %v1925 = vld [vmem:[#allocation7 + $0xb8] sm:$0xf]
    %v1926 = vld [vmem:[#allocation7 + $0xbc] sm:$0xf]
    %v1927 = vld [vmem:[#allocation7 + $0xc0] sm:$0xf]
    %v1928 = vld [vmem:[#allocation7 + $0xc4] sm:$0xf]
    %v1929 = vld [vmem:[#allocation7 + $0xc8] sm:$0xf]
    %v1930 = vld [vmem:[#allocation7 + $0xcc] sm:$0xf]
    %v1931 = vld [vmem:[#allocation7 + $0xd0] sm:$0xf]
    %v1932 = vld [vmem:[#allocation7 + $0xd4] sm:$0xf]
    %v1933 = vld [vmem:[#allocation7 + $0xd8] sm:$0xf]
    %v1934 = vld [vmem:[#allocation7 + $0xdc] sm:$0xf]
    %v1935 = vld [vmem:[#allocation7 + $0xe0] sm:$0xf]
    %v1936 = vld [vmem:[#allocation7 + $0xe4] sm:$0xf]
    %v1937 = vld [vmem:[#allocation7 + $0xe8] sm:$0xf]
    %v1938 = vld [vmem:[#allocation7 + $0xec] sm:$0xf]
    %v1939 = vld [vmem:[#allocation7 + $0xf0] sm:$0xf]
    %v1940 = vld [vmem:[#allocation7 + $0xf4] sm:$0xf]
    %v1941 = vld [vmem:[#allocation7 + $0xf8] sm:$0xf]
    %v1942 = vld [vmem:[#allocation7 + $0xfc] sm:$0xf]
    %v1943 = vld [vmem:[#allocation7 + $0x100] sm:$0xf]
    %v1944 = vld [vmem:[#allocation7 + $0x104] sm:$0xf]
    %v1945 = vld [vmem:[#allocation7 + $0x108] sm:$0xf]
    %v1946 = vld [vmem:[#allocation7 + $0x10c] sm:$0xf]
    %v1947 = vld [vmem:[#allocation7 + $0x110] sm:$0xf]
    %v1948 = vld [vmem:[#allocation7 + $0x114] sm:$0xf]
    %v1949 = vld [vmem:[#allocation7 + $0x118] sm:$0xf]
    %v1950 = vld [vmem:[#allocation7 + $0x11c] sm:$0xf]
    %v1951 = vld [vmem:[#allocation7 + $0x120] sm:$0xf]
    %v1952 = vld [vmem:[#allocation7 + $0x124] sm:$0xf]
    %v1953 = vld [vmem:[#allocation7 + $0x128] sm:$0xf]
    %v1954 = vld [vmem:[#allocation7 + $0x12c] sm:$0xf]
    %v1955 = vld [vmem:[#allocation7 + $0x130] sm:$0xf]
    %v1956 = vld [vmem:[#allocation7 + $0x134] sm:$0xf]
    %v1957 = vld [vmem:[#allocation7 + $0x138] sm:$0xf]
    %v1958 = vld [vmem:[#allocation7 + $0x13c] sm:$0xf]
    %v1959 = vld [vmem:[#allocation7 + $0x140] sm:$0xf]
    %v1960 = vld [vmem:[#allocation7 + $0x144] sm:$0xf]
    %v1961 = vld [vmem:[#allocation7 + $0x148] sm:$0xf]
    %v1962 = vld [vmem:[#allocation7 + $0x14c] sm:$0xf]
    %v1963 = vld [vmem:[#allocation7 + $0x150] sm:$0xf]
    %v1964 = vld [vmem:[#allocation7 + $0x154] sm:$0xf]
    %v1965 = vld [vmem:[#allocation7 + $0x158] sm:$0xf]
    %v1966 = vld [vmem:[#allocation7 + $0x15c] sm:$0xf]
    %v1967 = vld [vmem:[#allocation7 + $0x160] sm:$0xf]
    %v1968 = vld [vmem:[#allocation7 + $0x164] sm:$0xf]
    %v1969 = vld [vmem:[#allocation7 + $0x168] sm:$0xf]
    %v1970 = vld [vmem:[#allocation7 + $0x16c] sm:$0xf]
    %v1971 = vld [vmem:[#allocation7 + $0x170] sm:$0xf]
    %v1972 = vld [vmem:[#allocation7 + $0x174] sm:$0xf]
    %v1973 = vld [vmem:[#allocation7 + $0x178] sm:$0xf]
    %v1974 = vld [vmem:[#allocation7 + $0x17c] sm:$0xf]
    %v1975 = vld [vmem:[#allocation7 + $0x180] sm:$0xf]
    %v1976 = vld [vmem:[#allocation7 + $0x184] sm:$0xf]
    %v1977 = vld [vmem:[#allocation7 + $0x188] sm:$0xf]
    %v1978 = vld [vmem:[#allocation7 + $0x18c] sm:$0xf]
    %v1979 = vld [vmem:[#allocation7 + $0x190] sm:$0xf]
    %v1980 = vld [vmem:[#allocation7 + $0x194] sm:$0xf]
    %v1981 = vld [vmem:[#allocation7 + $0x198] sm:$0xf]
    %v1982 = vld [vmem:[#allocation7 + $0x19c] sm:$0xf]
    %v1983 = vld [vmem:[#allocation7 + $0x1a0] sm:$0xf]
    %v1984 = vld [vmem:[#allocation7 + $0x1a4] sm:$0xf]
    %v1985 = vld [vmem:[#allocation7 + $0x1a8] sm:$0xf]
    %v1986 = vld [vmem:[#allocation7 + $0x1ac] sm:$0xf]
    %v1987 = vld [vmem:[#allocation7 + $0x1b0] sm:$0xf]
    %v1988 = vld [vmem:[#allocation7 + $0x1b4] sm:$0xf]
    %v1989 = vld [vmem:[#allocation7 + $0x1b8] sm:$0xf]
    %v1990 = vld [vmem:[#allocation7 + $0x1bc] sm:$0xf]
    %v1991 = vld [vmem:[#allocation7 + $0x1c0] sm:$0xf]
    %v1992 = vld [vmem:[#allocation7 + $0x1c4] sm:$0xf]
    %v1993 = vld [vmem:[#allocation7 + $0x1c8] sm:$0xf]
    %v1994 = vld [vmem:[#allocation7 + $0x1cc] sm:$0xf]
    %v1995 = vld [vmem:[#allocation7 + $0x1d0] sm:$0xf]
    %v1996 = vld [vmem:[#allocation7 + $0x1d4] sm:$0xf]
    %v1997 = vld [vmem:[#allocation7 + $0x1d8] sm:$0xf]
    %v1998 = vld [vmem:[#allocation7 + $0x1dc] sm:$0xf]
    %v1999 = vld [vmem:[#allocation7 + $0x1e0] sm:$0xf]
    %v2000 = vld [vmem:[#allocation7 + $0x1e4] sm:$0xf]
    %v2001 = vld [vmem:[#allocation7 + $0x1e8] sm:$0xf]
    %v2002 = vld [vmem:[#allocation7 + $0x1ec] sm:$0xf]
    %v2003 = vld [vmem:[#allocation7 + $0x1f0] sm:$0xf]
    %v2004 = vld [vmem:[#allocation7 + $0x1f4] sm:$0xf]
    %v2005 = vld [vmem:[#allocation7 + $0x1f8] sm:$0xf]
    %v2006 = vld [vmem:[#allocation7 + $0x1fc] sm:$0xf]
    %v2007 = vld [vmem:[#allocation7 + $0x200] sm:$0xf]
    %v2008 = vld [vmem:[#allocation7 + $0x204] sm:$0xf]
    %v2009 = vld [vmem:[#allocation7 + $0x208] sm:$0xf]
    %v2010 = vld [vmem:[#allocation7 + $0x20c] sm:$0xf]
    %v2011 = vld [vmem:[#allocation7 + $0x210] sm:$0xf]
    %v2012 = vld [vmem:[#allocation7 + $0x214] sm:$0xf]
    %v2013 = vld [vmem:[#allocation7 + $0x218] sm:$0xf]
    %v2014 = vld [vmem:[#allocation7 + $0x21c] sm:$0xf]
    %v2015 = vld [vmem:[#allocation7 + $0x220] sm:$0xf]
    %v2016 = vld [vmem:[#allocation7 + $0x224] sm:$0xf]
    %v2017 = vld [vmem:[#allocation7 + $0x228] sm:$0xf]
    %v2018 = vld [vmem:[#allocation7 + $0x22c] sm:$0xf]
    %v2019 = vld [vmem:[#allocation7 + $0x230] sm:$0xf]
    %v2020 = vld [vmem:[#allocation7 + $0x234] sm:$0xf]
    %v2021 = vld [vmem:[#allocation7 + $0x238] sm:$0xf]
    %v2022 = vld [vmem:[#allocation7 + $0x23c] sm:$0xf]
    %v2023 = vld [vmem:[%s4] sm:$0x1]
    %v2025 = vperm.slane %v2023, 0
    %v2171 = vunpack.c.l.b16 %v1879
    %v2172 = vunpack.c.l.b16 %v1880
    %v2173 = vunpack.c.l.b16 %v1881
    %v2174 = vunpack.c.l.b16 %v1882
    %v2175 = vunpack.c.l.b16 %v1883
    %v2176 = vunpack.c.l.b16 %v1884
    %v2177 = vunpack.c.l.b16 %v1885
    %v2178 = vunpack.c.l.b16 %v1886
    %v2179 = vunpack.c.l.b16 %v1887
    %v2180 = vunpack.c.l.b16 %v1888
    %v2181 = vunpack.c.l.b16 %v1889
    %v2182 = vunpack.c.l.b16 %v1890
    %v2183 = vunpack.c.l.b16 %v1891
    %v2184 = vunpack.c.l.b16 %v1892
    %v2185 = vunpack.c.l.b16 %v1893
    %v2186 = vunpack.c.l.b16 %v1894
    %v2187 = vunpack.c.l.b16 %v1895
    %v2188 = vunpack.c.l.b16 %v1896
    %v2189 = vunpack.c.l.b16 %v1897
    %v2190 = vunpack.c.l.b16 %v1898
    %v2191 = vunpack.c.l.b16 %v1899
    %v2192 = vunpack.c.l.b16 %v1900
    %v2193 = vunpack.c.l.b16 %v1901
    %v2194 = vunpack.c.l.b16 %v1902
    %v2195 = vunpack.c.l.b16 %v1903
    %v2196 = vunpack.c.l.b16 %v1904
    %v2197 = vunpack.c.l.b16 %v1905
    %v2198 = vunpack.c.l.b16 %v1906
    %v2199 = vunpack.c.l.b16 %v1907
    %v2200 = vunpack.c.l.b16 %v1908
    %v2201 = vunpack.c.l.b16 %v1909
    %v2202 = vunpack.c.l.b16 %v1910
    %v2203 = vunpack.c.l.b16 %v1911
    %v2204 = vunpack.c.l.b16 %v1912
    %v2205 = vunpack.c.l.b16 %v1913
    %v2206 = vunpack.c.l.b16 %v1914
    %v2207 = vunpack.c.l.b16 %v1915
    %v2208 = vunpack.c.l.b16 %v1916
    %v2209 = vunpack.c.l.b16 %v1917
    %v2210 = vunpack.c.l.b16 %v1918
    %v2211 = vunpack.c.l.b16 %v1919
    %v2212 = vunpack.c.l.b16 %v1920
    %v2213 = vunpack.c.l.b16 %v1921
    %v2214 = vunpack.c.l.b16 %v1922
    %v2215 = vunpack.c.l.b16 %v1923
    %v2216 = vunpack.c.l.b16 %v1924
    %v2217 = vunpack.c.l.b16 %v1925
    %v2218 = vunpack.c.l.b16 %v1926
    %v2219 = vunpack.c.l.b16 %v1927
    %v2220 = vunpack.c.l.b16 %v1928
    %v2221 = vunpack.c.l.b16 %v1929
    %v2222 = vunpack.c.l.b16 %v1930
    %v2223 = vunpack.c.l.b16 %v1931
    %v2224 = vunpack.c.l.b16 %v1932
    %v2225 = vunpack.c.l.b16 %v1933
    %v2226 = vunpack.c.l.b16 %v1934
    %v2227 = vunpack.c.l.b16 %v1935
    %v2228 = vunpack.c.l.b16 %v1936
    %v2229 = vunpack.c.l.b16 %v1937
    %v2230 = vunpack.c.l.b16 %v1938
    %v2231 = vunpack.c.l.b16 %v1939
    %v2232 = vunpack.c.l.b16 %v1940
    %v2233 = vunpack.c.l.b16 %v1941
    %v2234 = vunpack.c.l.b16 %v1942
    %v2235 = vunpack.c.l.b16 %v1943
    %v2236 = vunpack.c.l.b16 %v1944
    %v2237 = vunpack.c.l.b16 %v1945
    %v2238 = vunpack.c.l.b16 %v1946
    %v2239 = vunpack.c.l.b16 %v1947
    %v2240 = vunpack.c.l.b16 %v1948
    %v2241 = vunpack.c.l.b16 %v1949
    %v2242 = vunpack.c.l.b16 %v1950
    %v2243 = vunpack.c.l.b16 %v1951
    %v2244 = vunpack.c.l.b16 %v1952
    %v2245 = vunpack.c.l.b16 %v1953
    %v2246 = vunpack.c.l.b16 %v1954
    %v2247 = vunpack.c.l.b16 %v1955
    %v2248 = vunpack.c.l.b16 %v1956
    %v2249 = vunpack.c.l.b16 %v1957
    %v2250 = vunpack.c.l.b16 %v1958
    %v2251 = vunpack.c.l.b16 %v1959
    %v2252 = vunpack.c.l.b16 %v1960
    %v2253 = vunpack.c.l.b16 %v1961
    %v2254 = vunpack.c.l.b16 %v1962
    %v2255 = vunpack.c.l.b16 %v1963
    %v2256 = vunpack.c.l.b16 %v1964
    %v2257 = vunpack.c.l.b16 %v1965
    %v2258 = vunpack.c.l.b16 %v1966
    %v2259 = vunpack.c.l.b16 %v1967
    %v2260 = vunpack.c.l.b16 %v1968
    %v2261 = vunpack.c.l.b16 %v1969
    %v2262 = vunpack.c.l.b16 %v1970
    %v2263 = vunpack.c.l.b16 %v1971
    %v2264 = vunpack.c.l.b16 %v1972
    %v2265 = vunpack.c.l.b16 %v1973
    %v2266 = vunpack.c.l.b16 %v1974
    %v2267 = vunpack.c.l.b16 %v1975
    %v2268 = vunpack.c.l.b16 %v1976
    %v2269 = vunpack.c.l.b16 %v1977
    %v2270 = vunpack.c.l.b16 %v1978
    %v2271 = vunpack.c.l.b16 %v1979
    %v2272 = vunpack.c.l.b16 %v1980
    %v2273 = vunpack.c.l.b16 %v1981
    %v2274 = vunpack.c.l.b16 %v1982
    %v2275 = vunpack.c.l.b16 %v1983
    %v2276 = vunpack.c.l.b16 %v1984
    %v2277 = vunpack.c.l.b16 %v1985
    %v2278 = vunpack.c.l.b16 %v1986
    %v2279 = vunpack.c.l.b16 %v1987
    %v2280 = vunpack.c.l.b16 %v1988
    %v2281 = vunpack.c.l.b16 %v1989
    %v2282 = vunpack.c.l.b16 %v1990
    %v2283 = vunpack.c.l.b16 %v1991
    %v2284 = vunpack.c.l.b16 %v1992
    %v2285 = vunpack.c.l.b16 %v1993
    %v2286 = vunpack.c.l.b16 %v1994
    %v2287 = vunpack.c.l.b16 %v1995
    %v2288 = vunpack.c.l.b16 %v1996
    %v2289 = vunpack.c.l.b16 %v1997
    %v2290 = vunpack.c.l.b16 %v1998
    %v2291 = vunpack.c.l.b16 %v1999
    %v2292 = vunpack.c.l.b16 %v2000
    %v2293 = vunpack.c.l.b16 %v2001
    %v2294 = vunpack.c.l.b16 %v2002
    %v2295 = vunpack.c.l.b16 %v2003
    %v2296 = vunpack.c.l.b16 %v2004
    %v2297 = vunpack.c.l.b16 %v2005
    %v2298 = vunpack.c.l.b16 %v2006
    %v2299 = vunpack.c.l.b16 %v2007
    %v2300 = vunpack.c.l.b16 %v2008
    %v2301 = vunpack.c.l.b16 %v2009
    %v2302 = vunpack.c.l.b16 %v2010
    %v2303 = vunpack.c.l.b16 %v2011
    %v2304 = vunpack.c.l.b16 %v2012
    %v2305 = vunpack.c.l.b16 %v2013
    %v2306 = vunpack.c.l.b16 %v2014
    %v2307 = vunpack.c.l.b16 %v2015
    %v2308 = vunpack.c.l.b16 %v2016
    %v2309 = vunpack.c.l.b16 %v2017
    %v2310 = vunpack.c.l.b16 %v2018
    %v2311 = vunpack.c.l.b16 %v2019
    %v2312 = vunpack.c.l.b16 %v2020
    %v2313 = vunpack.c.l.b16 %v2021
    %v2314 = vunpack.c.l.b16 %v2022
    %v2315 = vpack.c.b16 %v2172, %v2171
    %v2316 = vpack.c.b16 %v2174, %v2173
    %v2317 = vpack.c.b16 %v2176, %v2175
    %v2318 = vpack.c.b16 %v2178, %v2177
    %v2319 = vpack.c.b16 %v2180, %v2179
    %v2320 = vpack.c.b16 %v2182, %v2181
    %v2321 = vpack.c.b16 %v2184, %v2183
    %v2322 = vpack.c.b16 %v2186, %v2185
    %v2323 = vpack.c.b16 %v2188, %v2187
    %v2324 = vpack.c.b16 %v2190, %v2189
    %v2325 = vpack.c.b16 %v2192, %v2191
    %v2326 = vpack.c.b16 %v2194, %v2193
    %v2327 = vpack.c.b16 %v2196, %v2195
    %v2328 = vpack.c.b16 %v2198, %v2197
    %v2329 = vpack.c.b16 %v2200, %v2199
    %v2330 = vpack.c.b16 %v2202, %v2201
    %v2331 = vpack.c.b16 %v2204, %v2203
    %v2332 = vpack.c.b16 %v2206, %v2205
    %v2333 = vpack.c.b16 %v2208, %v2207
    %v2334 = vpack.c.b16 %v2210, %v2209
    %v2335 = vpack.c.b16 %v2212, %v2211
    %v2336 = vpack.c.b16 %v2214, %v2213
    %v2337 = vpack.c.b16 %v2216, %v2215
    %v2338 = vpack.c.b16 %v2218, %v2217
    %v2339 = vpack.c.b16 %v2220, %v2219
    %v2340 = vpack.c.b16 %v2222, %v2221
    %v2341 = vpack.c.b16 %v2224, %v2223
    %v2342 = vpack.c.b16 %v2226, %v2225
    %v2343 = vpack.c.b16 %v2228, %v2227
    %v2344 = vpack.c.b16 %v2230, %v2229
    %v2345 = vpack.c.b16 %v2232, %v2231
    %v2346 = vpack.c.b16 %v2234, %v2233
    %v2347 = vpack.c.b16 %v2236, %v2235
    %v2348 = vpack.c.b16 %v2238, %v2237
    %v2349 = vpack.c.b16 %v2240, %v2239
    %v2350 = vpack.c.b16 %v2242, %v2241
    %v2351 = vpack.c.b16 %v2244, %v2243
    %v2352 = vpack.c.b16 %v2246, %v2245
    %v2353 = vpack.c.b16 %v2248, %v2247
    %v2354 = vpack.c.b16 %v2250, %v2249
    %v2355 = vpack.c.b16 %v2252, %v2251
    %v2356 = vpack.c.b16 %v2254, %v2253
    %v2357 = vpack.c.b16 %v2256, %v2255
    %v2358 = vpack.c.b16 %v2258, %v2257
    %v2359 = vpack.c.b16 %v2260, %v2259
    %v2360 = vpack.c.b16 %v2262, %v2261
    %v2361 = vpack.c.b16 %v2264, %v2263
    %v2362 = vpack.c.b16 %v2266, %v2265
    %v2363 = vpack.c.b16 %v2268, %v2267
    %v2364 = vpack.c.b16 %v2270, %v2269
    %v2365 = vpack.c.b16 %v2272, %v2271
    %v2366 = vpack.c.b16 %v2274, %v2273
    %v2367 = vpack.c.b16 %v2276, %v2275
    %v2368 = vpack.c.b16 %v2278, %v2277
    %v2369 = vpack.c.b16 %v2280, %v2279
    %v2370 = vpack.c.b16 %v2282, %v2281
    %v2371 = vpack.c.b16 %v2284, %v2283
    %v2372 = vpack.c.b16 %v2286, %v2285
    %v2373 = vpack.c.b16 %v2288, %v2287
    %v2374 = vpack.c.b16 %v2290, %v2289
    %v2375 = vpack.c.b16 %v2292, %v2291
    %v2376 = vpack.c.b16 %v2294, %v2293
    %v2377 = vpack.c.b16 %v2296, %v2295
    %v2378 = vpack.c.b16 %v2298, %v2297
    %v2379 = vpack.c.b16 %v2300, %v2299
    %v2380 = vpack.c.b16 %v2302, %v2301
    %v2381 = vpack.c.b16 %v2304, %v2303
    %v2382 = vpack.c.b16 %v2306, %v2305
    %v2383 = vpack.c.b16 %v2308, %v2307
    %v2384 = vpack.c.b16 %v2310, %v2309
    %v2385 = vpack.c.b16 %v2312, %v2311
    %v2386 = vpack.c.b16 %v2314, %v2313
    %2459 = vmatpush.bf16.msra.mxu0 %v2322
    %2460 = vmatpush.bf16.msra.mxu0 %v2321
    %2461 = vmatpush.bf16.msra.mxu0 %v2320
    %2462 = vmatpush.bf16.msra.mxu0 %v2319
    %2463 = vmatpush.bf16.msra.mxu0 %v2318
    %2464 = vmatpush.bf16.msra.mxu0 %v2317
    %2465 = vmatpush.bf16.msra.mxu0 %v2316
    %2466 = vmatpush.bf16.msra.mxu0 %v2315
    %2467 = vmatmul.bf16.gmra.mxu0 %v1479
    %v2468 = vpop.f32.mrf.mxu0
    %v2469 = vadd.f32 %v2025, %v2468
    %v2470 = vpop.f32.mrf.mxu0
    %v2471 = vadd.f32 %v2025, %v2470
    %2472 = vmatmul.bf16.gmra.mxu0 %v1480
    %v2473 = vpop.f32.mrf.mxu0
    %v2474 = vadd.f32 %v2025, %v2473
    %v2475 = vpop.f32.mrf.mxu0
    %v2476 = vadd.f32 %v2025, %v2475
    %2477 = vmatmul.bf16.gmra.mxu0 %v1481
    %v2478 = vpop.f32.mrf.mxu0
    %v2479 = vadd.f32 %v2025, %v2478
    %v2480 = vpop.f32.mrf.mxu0
    %v2481 = vadd.f32 %v2025, %v2480
    %2482 = vmatmul.bf16.gmra.mxu0 %v1482
    %v2483 = vpop.f32.mrf.mxu0
    %v2484 = vadd.f32 %v2025, %v2483
    %v2485 = vpop.f32.mrf.mxu0
    %v2486 = vadd.f32 %v2025, %v2485
    %2487 = vmatmul.bf16.gmra.mxu0 %v1483
    %v2488 = vpop.f32.mrf.mxu0
    %v2489 = vadd.f32 %v2025, %v2488
    %v2490 = vpop.f32.mrf.mxu0
    %v2491 = vadd.f32 %v2025, %v2490
    %2492 = vmatmul.bf16.gmra.mxu0 %v1484
    %v2493 = vpop.f32.mrf.mxu0
    %v2494 = vadd.f32 %v2025, %v2493
    %v2495 = vpop.f32.mrf.mxu0
    %v2496 = vadd.f32 %v2025, %v2495
    %2497 = vmatmul.bf16.gmra.mxu0 %v1485
    %v2498 = vpop.f32.mrf.mxu0
    %v2499 = vadd.f32 %v2025, %v2498
    %v2500 = vpop.f32.mrf.mxu0
    %v2501 = vadd.f32 %v2025, %v2500
    %2502 = vmatmul.bf16.gmra.mxu0 %v1486
    %v2503 = vpop.f32.mrf.mxu0
    %v2504 = vadd.f32 %v2025, %v2503
    %v2505 = vpop.f32.mrf.mxu0
    %v2506 = vadd.f32 %v2025, %v2505
    %2507 = vdwg.mxu0
    %2508 = vmatpush.bf16.msra.mxu0 %v2330
    %2509 = vmatpush.bf16.msra.mxu0 %v2329
    %2510 = vmatpush.bf16.msra.mxu0 %v2328
    %2511 = vmatpush.bf16.msra.mxu0 %v2327
    %2512 = vmatpush.bf16.msra.mxu0 %v2326
    %2513 = vmatpush.bf16.msra.mxu0 %v2325
    %2514 = vmatpush.bf16.msra.mxu0 %v2324
    %2515 = vmatpush.bf16.msra.mxu0 %v2323
    %2516 = vmatmul.bf16.gmra.mxu0 %v1527
    %v2517 = vpop.f32.mrf.mxu0
    %v2518 = vadd.f32 %v2469, %v2517
    %v2519 = vpop.f32.mrf.mxu0
    %v2520 = vadd.f32 %v2471, %v2519
    %2521 = vmatmul.bf16.gmra.mxu0 %v1528
    %v2522 = vpop.f32.mrf.mxu0
    %v2523 = vadd.f32 %v2474, %v2522
    %v2524 = vpop.f32.mrf.mxu0
    %v2525 = vadd.f32 %v2476, %v2524
    %2526 = vmatmul.bf16.gmra.mxu0 %v1529
    %v2527 = vpop.f32.mrf.mxu0
    %v2528 = vadd.f32 %v2479, %v2527
    %v2529 = vpop.f32.mrf.mxu0
    %v2530 = vadd.f32 %v2481, %v2529
    %2531 = vmatmul.bf16.gmra.mxu0 %v1530
    %v2532 = vpop.f32.mrf.mxu0
    %v2533 = vadd.f32 %v2484, %v2532
    %v2534 = vpop.f32.mrf.mxu0
    %v2535 = vadd.f32 %v2486, %v2534
    %2536 = vmatmul.bf16.gmra.mxu0 %v1531
    %v2537 = vpop.f32.mrf.mxu0
    %v2538 = vadd.f32 %v2489, %v2537
    %v2539 = vpop.f32.mrf.mxu0
    %v2540 = vadd.f32 %v2491, %v2539
    %2541 = vmatmul.bf16.gmra.mxu0 %v1532
    %v2542 = vpop.f32.mrf.mxu0
    %v2543 = vadd.f32 %v2494, %v2542
    %v2544 = vpop.f32.mrf.mxu0
    %v2545 = vadd.f32 %v2496, %v2544
    %2546 = vmatmul.bf16.gmra.mxu0 %v1533
    %v2547 = vpop.f32.mrf.mxu0
    %v2548 = vadd.f32 %v2499, %v2547
    %v2549 = vpop.f32.mrf.mxu0
    %v2550 = vadd.f32 %v2501, %v2549
    %2551 = vmatmul.bf16.gmra.mxu0 %v1534
    %v2552 = vpop.f32.mrf.mxu0
    %v2553 = vadd.f32 %v2504, %v2552
    %v2554 = vpop.f32.mrf.mxu0
    %v2555 = vadd.f32 %v2506, %v2554
    %2556 = vdwg.mxu0
    %2557 = vmatpush.bf16.msra.mxu0 %v2338
    %2558 = vmatpush.bf16.msra.mxu0 %v2337
    %2559 = vmatpush.bf16.msra.mxu0 %v2336
    %2560 = vmatpush.bf16.msra.mxu0 %v2335
    %2561 = vmatpush.bf16.msra.mxu0 %v2334
    %2562 = vmatpush.bf16.msra.mxu0 %v2333
    %2563 = vmatpush.bf16.msra.mxu0 %v2332
    %2564 = vmatpush.bf16.msra.mxu0 %v2331
    %2565 = vmatmul.bf16.gmra.mxu0 %v1575
    %v2566 = vpop.f32.mrf.mxu0
    %v2567 = vadd.f32 %v2518, %v2566
    %v2568 = vpop.f32.mrf.mxu0
    %v2569 = vadd.f32 %v2520, %v2568
    %2570 = vmatmul.bf16.gmra.mxu0 %v1576
    %v2571 = vpop.f32.mrf.mxu0
    %v2572 = vadd.f32 %v2523, %v2571
    %v2573 = vpop.f32.mrf.mxu0
    %v2574 = vadd.f32 %v2525, %v2573
    %2575 = vmatmul.bf16.gmra.mxu0 %v1577
    %v2576 = vpop.f32.mrf.mxu0
    %v2577 = vadd.f32 %v2528, %v2576
    %v2578 = vpop.f32.mrf.mxu0
    %v2579 = vadd.f32 %v2530, %v2578
    %2580 = vmatmul.bf16.gmra.mxu0 %v1578
    %v2581 = vpop.f32.mrf.mxu0
    %v2582 = vadd.f32 %v2533, %v2581
    %v2583 = vpop.f32.mrf.mxu0
    %v2584 = vadd.f32 %v2535, %v2583
    %2585 = vmatmul.bf16.gmra.mxu0 %v1579
    %v2586 = vpop.f32.mrf.mxu0
    %v2587 = vadd.f32 %v2538, %v2586
    %v2588 = vpop.f32.mrf.mxu0
    %v2589 = vadd.f32 %v2540, %v2588
    %2590 = vmatmul.bf16.gmra.mxu0 %v1580
    %v2591 = vpop.f32.mrf.mxu0
    %v2592 = vadd.f32 %v2543, %v2591
    %v2593 = vpop.f32.mrf.mxu0
    %v2594 = vadd.f32 %v2545, %v2593
    %2595 = vmatmul.bf16.gmra.mxu0 %v1581
    %v2596 = vpop.f32.mrf.mxu0
    %v2597 = vadd.f32 %v2548, %v2596
    %v2598 = vpop.f32.mrf.mxu0
    %v2599 = vadd.f32 %v2550, %v2598
    %2600 = vmatmul.bf16.gmra.mxu0 %v1582
    %v2601 = vpop.f32.mrf.mxu0
    %v2602 = vadd.f32 %v2553, %v2601
    %v2603 = vpop.f32.mrf.mxu0
    %v2604 = vadd.f32 %v2555, %v2603
    %2605 = vdwg.mxu0
    %2606 = vmatpush.bf16.msra.mxu0 %v2346
    %2607 = vmatpush.bf16.msra.mxu0 %v2345
    %2608 = vmatpush.bf16.msra.mxu0 %v2344
    %2609 = vmatpush.bf16.msra.mxu0 %v2343
    %2610 = vmatpush.bf16.msra.mxu0 %v2342
    %2611 = vmatpush.bf16.msra.mxu0 %v2341
    %2612 = vmatpush.bf16.msra.mxu0 %v2340
    %2613 = vmatpush.bf16.msra.mxu0 %v2339
    %2614 = vmatmul.bf16.gmra.mxu0 %v1623
    %v2615 = vpop.f32.mrf.mxu0
    %v2616 = vadd.f32 %v2567, %v2615
    %v2617 = vpop.f32.mrf.mxu0
    %v2618 = vadd.f32 %v2569, %v2617
    %2619 = vmatmul.bf16.gmra.mxu0 %v1624
    %v2620 = vpop.f32.mrf.mxu0
    %v2621 = vadd.f32 %v2572, %v2620
    %v2622 = vpop.f32.mrf.mxu0
    %v2623 = vadd.f32 %v2574, %v2622
    %2624 = vmatmul.bf16.gmra.mxu0 %v1625
    %v2625 = vpop.f32.mrf.mxu0
    %v2626 = vadd.f32 %v2577, %v2625
    %v2627 = vpop.f32.mrf.mxu0
    %v2628 = vadd.f32 %v2579, %v2627
    %2629 = vmatmul.bf16.gmra.mxu0 %v1626
    %v2630 = vpop.f32.mrf.mxu0
    %v2631 = vadd.f32 %v2582, %v2630
    %v2632 = vpop.f32.mrf.mxu0
    %v2633 = vadd.f32 %v2584, %v2632
    %2634 = vmatmul.bf16.gmra.mxu0 %v1627
    %v2635 = vpop.f32.mrf.mxu0
    %v2636 = vadd.f32 %v2587, %v2635
    %v2637 = vpop.f32.mrf.mxu0
    %v2638 = vadd.f32 %v2589, %v2637
    %2639 = vmatmul.bf16.gmra.mxu0 %v1628
    %v2640 = vpop.f32.mrf.mxu0
    %v2641 = vadd.f32 %v2592, %v2640
    %v2642 = vpop.f32.mrf.mxu0
    %v2643 = vadd.f32 %v2594, %v2642
    %2644 = vmatmul.bf16.gmra.mxu0 %v1629
    %v2645 = vpop.f32.mrf.mxu0
    %v2646 = vadd.f32 %v2597, %v2645
    %v2647 = vpop.f32.mrf.mxu0
    %v2648 = vadd.f32 %v2599, %v2647
    %2649 = vmatmul.bf16.gmra.mxu0 %v1630
    %v2650 = vpop.f32.mrf.mxu0
    %v2651 = vadd.f32 %v2602, %v2650
    %v2652 = vpop.f32.mrf.mxu0
    %v2653 = vadd.f32 %v2604, %v2652
    %2654 = vdwg.mxu0
    %2655 = vmatpush.bf16.msra.mxu0 %v2354
    %2656 = vmatpush.bf16.msra.mxu0 %v2353
    %2657 = vmatpush.bf16.msra.mxu0 %v2352
    %2658 = vmatpush.bf16.msra.mxu0 %v2351
    %2659 = vmatpush.bf16.msra.mxu0 %v2350
    %2660 = vmatpush.bf16.msra.mxu0 %v2349
    %2661 = vmatpush.bf16.msra.mxu0 %v2348
    %2662 = vmatpush.bf16.msra.mxu0 %v2347
    %2663 = vmatmul.bf16.gmra.mxu0 %v1671
    %v2664 = vpop.f32.mrf.mxu0
    %v2665 = vadd.f32 %v2616, %v2664
    %v2666 = vpop.f32.mrf.mxu0
    %v2667 = vadd.f32 %v2618, %v2666
    %2668 = vmatmul.bf16.gmra.mxu0 %v1672
    %v2669 = vpop.f32.mrf.mxu0
    %v2670 = vadd.f32 %v2621, %v2669
    %v2671 = vpop.f32.mrf.mxu0
    %v2672 = vadd.f32 %v2623, %v2671
    %2673 = vmatmul.bf16.gmra.mxu0 %v1673
    %v2674 = vpop.f32.mrf.mxu0
    %v2675 = vadd.f32 %v2626, %v2674
    %v2676 = vpop.f32.mrf.mxu0
    %v2677 = vadd.f32 %v2628, %v2676
    %2678 = vmatmul.bf16.gmra.mxu0 %v1674
    %v2679 = vpop.f32.mrf.mxu0
    %v2680 = vadd.f32 %v2631, %v2679
    %v2681 = vpop.f32.mrf.mxu0
    %v2682 = vadd.f32 %v2633, %v2681
    %2683 = vmatmul.bf16.gmra.mxu0 %v1675
    %v2684 = vpop.f32.mrf.mxu0
    %v2685 = vadd.f32 %v2636, %v2684
    %v2686 = vpop.f32.mrf.mxu0
    %v2687 = vadd.f32 %v2638, %v2686
    %2688 = vmatmul.bf16.gmra.mxu0 %v1676
    %v2689 = vpop.f32.mrf.mxu0
    %v2690 = vadd.f32 %v2641, %v2689
    %v2691 = vpop.f32.mrf.mxu0
    %v2692 = vadd.f32 %v2643, %v2691
    %2693 = vmatmul.bf16.gmra.mxu0 %v1677
    %v2694 = vpop.f32.mrf.mxu0
    %v2695 = vadd.f32 %v2646, %v2694
    %v2696 = vpop.f32.mrf.mxu0
    %v2697 = vadd.f32 %v2648, %v2696
    %2698 = vmatmul.bf16.gmra.mxu0 %v1678
    %v2699 = vpop.f32.mrf.mxu0
    %v2700 = vadd.f32 %v2651, %v2699
    %v2701 = vpop.f32.mrf.mxu0
    %v2702 = vadd.f32 %v2653, %v2701
    %2703 = vdwg.mxu0
    %2704 = vmatpush.bf16.msra.mxu0 %v2362
    %2705 = vmatpush.bf16.msra.mxu0 %v2361
    %2706 = vmatpush.bf16.msra.mxu0 %v2360
    %2707 = vmatpush.bf16.msra.mxu0 %v2359
    %2708 = vmatpush.bf16.msra.mxu0 %v2358
    %2709 = vmatpush.bf16.msra.mxu0 %v2357
    %2710 = vmatpush.bf16.msra.mxu0 %v2356
    %2711 = vmatpush.bf16.msra.mxu0 %v2355
    %2712 = vmatmul.bf16.gmra.mxu0 %v1719
    %v2713 = vpop.f32.mrf.mxu0
    %v2714 = vadd.f32 %v2665, %v2713
    %v2715 = vpop.f32.mrf.mxu0
    %v2716 = vadd.f32 %v2667, %v2715
    %2717 = vmatmul.bf16.gmra.mxu0 %v1720
    %v2718 = vpop.f32.mrf.mxu0
    %v2719 = vadd.f32 %v2670, %v2718
    %v2720 = vpop.f32.mrf.mxu0
    %v2721 = vadd.f32 %v2672, %v2720
    %2722 = vmatmul.bf16.gmra.mxu0 %v1721
    %v2723 = vpop.f32.mrf.mxu0
    %v2724 = vadd.f32 %v2675, %v2723
    %v2725 = vpop.f32.mrf.mxu0
    %v2726 = vadd.f32 %v2677, %v2725
    %2727 = vmatmul.bf16.gmra.mxu0 %v1722
    %v2728 = vpop.f32.mrf.mxu0
    %v2729 = vadd.f32 %v2680, %v2728
    %v2730 = vpop.f32.mrf.mxu0
    %v2731 = vadd.f32 %v2682, %v2730
    %2732 = vmatmul.bf16.gmra.mxu0 %v1723
    %v2733 = vpop.f32.mrf.mxu0
    %v2734 = vadd.f32 %v2685, %v2733
    %v2735 = vpop.f32.mrf.mxu0
    %v2736 = vadd.f32 %v2687, %v2735
    %2737 = vmatmul.bf16.gmra.mxu0 %v1724
    %v2738 = vpop.f32.mrf.mxu0
    %v2739 = vadd.f32 %v2690, %v2738
    %v2740 = vpop.f32.mrf.mxu0
    %v2741 = vadd.f32 %v2692, %v2740
    %2742 = vmatmul.bf16.gmra.mxu0 %v1725
    %v2743 = vpop.f32.mrf.mxu0
    %v2744 = vadd.f32 %v2695, %v2743
    %v2745 = vpop.f32.mrf.mxu0
    %v2746 = vadd.f32 %v2697, %v2745
    %2747 = vmatmul.bf16.gmra.mxu0 %v1726
    %v2748 = vpop.f32.mrf.mxu0
    %v2749 = vadd.f32 %v2700, %v2748
    %v2750 = vpop.f32.mrf.mxu0
    %v2751 = vadd.f32 %v2702, %v2750
    %2752 = vdwg.mxu0
    %2753 = vmatpush.bf16.msra.mxu0 %v2370
    %2754 = vmatpush.bf16.msra.mxu0 %v2369
    %2755 = vmatpush.bf16.msra.mxu0 %v2368
    %2756 = vmatpush.bf16.msra.mxu0 %v2367
    %2757 = vmatpush.bf16.msra.mxu0 %v2366
    %2758 = vmatpush.bf16.msra.mxu0 %v2365
    %2759 = vmatpush.bf16.msra.mxu0 %v2364
    %2760 = vmatpush.bf16.msra.mxu0 %v2363
    %2761 = vmatmul.bf16.gmra.mxu0 %v1767
    %v2762 = vpop.f32.mrf.mxu0
    %v2763 = vadd.f32 %v2714, %v2762
    %v2764 = vpop.f32.mrf.mxu0
    %v2765 = vadd.f32 %v2716, %v2764
    %2766 = vmatmul.bf16.gmra.mxu0 %v1768
    %v2767 = vpop.f32.mrf.mxu0
    %v2768 = vadd.f32 %v2719, %v2767
    %v2769 = vpop.f32.mrf.mxu0
    %v2770 = vadd.f32 %v2721, %v2769
    %2771 = vmatmul.bf16.gmra.mxu0 %v1769
    %v2772 = vpop.f32.mrf.mxu0
    %v2773 = vadd.f32 %v2724, %v2772
    %v2774 = vpop.f32.mrf.mxu0
    %v2775 = vadd.f32 %v2726, %v2774
    %2776 = vmatmul.bf16.gmra.mxu0 %v1770
    %v2777 = vpop.f32.mrf.mxu0
    %v2778 = vadd.f32 %v2729, %v2777
    %v2779 = vpop.f32.mrf.mxu0
    %v2780 = vadd.f32 %v2731, %v2779
    %2781 = vmatmul.bf16.gmra.mxu0 %v1771
    %v2782 = vpop.f32.mrf.mxu0
    %v2783 = vadd.f32 %v2734, %v2782
    %v2784 = vpop.f32.mrf.mxu0
    %v2785 = vadd.f32 %v2736, %v2784
    %2786 = vmatmul.bf16.gmra.mxu0 %v1772
    %v2787 = vpop.f32.mrf.mxu0
    %v2788 = vadd.f32 %v2739, %v2787
    %v2789 = vpop.f32.mrf.mxu0
    %v2790 = vadd.f32 %v2741, %v2789
    %2791 = vmatmul.bf16.gmra.mxu0 %v1773
    %v2792 = vpop.f32.mrf.mxu0
    %v2793 = vadd.f32 %v2744, %v2792
    %v2794 = vpop.f32.mrf.mxu0
    %v2795 = vadd.f32 %v2746, %v2794
    %2796 = vmatmul.bf16.gmra.mxu0 %v1774
    %v2797 = vpop.f32.mrf.mxu0
    %v2798 = vadd.f32 %v2749, %v2797
    %v2799 = vpop.f32.mrf.mxu0
    %v2800 = vadd.f32 %v2751, %v2799
    %2801 = vdwg.mxu0
    %2802 = vmatpush.bf16.msra.mxu0 %v2378
    %2803 = vmatpush.bf16.msra.mxu0 %v2377
    %2804 = vmatpush.bf16.msra.mxu0 %v2376
    %2805 = vmatpush.bf16.msra.mxu0 %v2375
    %2806 = vmatpush.bf16.msra.mxu0 %v2374
    %2807 = vmatpush.bf16.msra.mxu0 %v2373
    %2808 = vmatpush.bf16.msra.mxu0 %v2372
    %2809 = vmatpush.bf16.msra.mxu0 %v2371
    %2810 = vmatmul.bf16.gmra.mxu0 %v1815
    %v2811 = vpop.f32.mrf.mxu0
    %v2812 = vadd.f32 %v2763, %v2811
    %v2813 = vpop.f32.mrf.mxu0
    %v2814 = vadd.f32 %v2765, %v2813
    %2815 = vmatmul.bf16.gmra.mxu0 %v1816
    %v2816 = vpop.f32.mrf.mxu0
    %v2817 = vadd.f32 %v2768, %v2816
    %v2818 = vpop.f32.mrf.mxu0
    %v2819 = vadd.f32 %v2770, %v2818
    %2820 = vmatmul.bf16.gmra.mxu0 %v1817
    %v2821 = vpop.f32.mrf.mxu0
    %v2822 = vadd.f32 %v2773, %v2821
    %v2823 = vpop.f32.mrf.mxu0
    %v2824 = vadd.f32 %v2775, %v2823
    %2825 = vmatmul.bf16.gmra.mxu0 %v1818
    %v2826 = vpop.f32.mrf.mxu0
    %v2827 = vadd.f32 %v2778, %v2826
    %v2828 = vpop.f32.mrf.mxu0
    %v2829 = vadd.f32 %v2780, %v2828
    %2830 = vmatmul.bf16.gmra.mxu0 %v1819
    %v2831 = vpop.f32.mrf.mxu0
    %v2832 = vadd.f32 %v2783, %v2831
    %v2833 = vpop.f32.mrf.mxu0
    %v2834 = vadd.f32 %v2785, %v2833
    %2835 = vmatmul.bf16.gmra.mxu0 %v1820
    %v2836 = vpop.f32.mrf.mxu0
    %v2837 = vadd.f32 %v2788, %v2836
    %v2838 = vpop.f32.mrf.mxu0
    %v2839 = vadd.f32 %v2790, %v2838
    %2840 = vmatmul.bf16.gmra.mxu0 %v1821
    %v2841 = vpop.f32.mrf.mxu0
    %v2842 = vadd.f32 %v2793, %v2841
    %v2843 = vpop.f32.mrf.mxu0
    %v2844 = vadd.f32 %v2795, %v2843
    %2845 = vmatmul.bf16.gmra.mxu0 %v1822
    %v2846 = vpop.f32.mrf.mxu0
    %v2847 = vadd.f32 %v2798, %v2846
    %v2848 = vpop.f32.mrf.mxu0
    %v2849 = vadd.f32 %v2800, %v2848
    %2850 = vdwg.mxu0
    %2851 = vmatpush.bf16.msra.mxu0 %v2386
    %2852 = vmatpush.bf16.msra.mxu0 %v2385
    %2853 = vmatpush.bf16.msra.mxu0 %v2384
    %2854 = vmatpush.bf16.msra.mxu0 %v2383
    %2855 = vmatpush.bf16.msra.mxu0 %v2382
    %2856 = vmatpush.bf16.msra.mxu0 %v2381
    %2857 = vmatpush.bf16.msra.mxu0 %v2380
    %2858 = vmatpush.bf16.msra.mxu0 %v2379
    %2859 = vmatmul.bf16.gmra.mxu0 %v1863
    %v2860 = vpop.f32.mrf.mxu0
    %v2861 = vadd.f32 %v2812, %v2860
    %v2862 = vpop.f32.mrf.mxu0
    %v2863 = vadd.f32 %v2814, %v2862
    %2864 = vmatmul.bf16.gmra.mxu0 %v1864
    %v2865 = vpop.f32.mrf.mxu0
    %v2866 = vadd.f32 %v2817, %v2865
    %v2867 = vpop.f32.mrf.mxu0
    %v2868 = vadd.f32 %v2819, %v2867
    %2869 = vmatmul.bf16.gmra.mxu0 %v1865
    %v2870 = vpop.f32.mrf.mxu0
    %v2871 = vadd.f32 %v2822, %v2870
    %v2872 = vpop.f32.mrf.mxu0
    %v2873 = vadd.f32 %v2824, %v2872
    %2874 = vmatmul.bf16.gmra.mxu0 %v1866
    %v2875 = vpop.f32.mrf.mxu0
    %v2876 = vadd.f32 %v2827, %v2875
    %v2877 = vpop.f32.mrf.mxu0
    %v2878 = vadd.f32 %v2829, %v2877
    %2879 = vmatmul.bf16.gmra.mxu0 %v1867
    %v2880 = vpop.f32.mrf.mxu0
    %v2881 = vadd.f32 %v2832, %v2880
    %v2882 = vpop.f32.mrf.mxu0
    %v2883 = vadd.f32 %v2834, %v2882
    %2884 = vmatmul.bf16.gmra.mxu0 %v1868
    %v2885 = vpop.f32.mrf.mxu0
    %v2886 = vadd.f32 %v2837, %v2885
    %v2887 = vpop.f32.mrf.mxu0
    %v2888 = vadd.f32 %v2839, %v2887
    %2889 = vmatmul.bf16.gmra.mxu0 %v1869
    %v2890 = vpop.f32.mrf.mxu0
    %v2891 = vadd.f32 %v2842, %v2890
    %v2892 = vpop.f32.mrf.mxu0
    %v2893 = vadd.f32 %v2844, %v2892
    %2894 = vmatmul.bf16.gmra.mxu0 %v1870
    %v2895 = vpop.f32.mrf.mxu0
    %v2896 = vadd.f32 %v2847, %v2895
    %v2897 = vpop.f32.mrf.mxu0
    %v2898 = vadd.f32 %v2849, %v2897
    %2899 = vdwg.mxu0
    %v2900 = vmax.f32 %v2861, 0.0
    %v2901 = vmax.f32 %v2863, 0.0
    %v2902 = vmax.f32 %v2866, 0.0
    %v2903 = vmax.f32 %v2868, 0.0
    %v2904 = vmax.f32 %v2871, 0.0
    %v2905 = vmax.f32 %v2873, 0.0
    %v2906 = vmax.f32 %v2876, 0.0
    %v2907 = vmax.f32 %v2878, 0.0
    %v2908 = vmax.f32 %v2881, 0.0
    %v2909 = vmax.f32 %v2883, 0.0
    %v2910 = vmax.f32 %v2886, 0.0
    %v2911 = vmax.f32 %v2888, 0.0
    %v2912 = vmax.f32 %v2891, 0.0
    %v2913 = vmax.f32 %v2893, 0.0
    %v2914 = vmax.f32 %v2896, 0.0
    %v2915 = vmax.f32 %v2898, 0.0
    %v2916 = vpack.c.bf16 %v2901, %v2900
    %v2917 = vpack.c.bf16 %v2903, %v2902
    %v2918 = vpack.c.bf16 %v2905, %v2904
    %v2919 = vpack.c.bf16 %v2907, %v2906
    %v2920 = vpack.c.bf16 %v2909, %v2908
    %v2921 = vpack.c.bf16 %v2911, %v2910
    %v2922 = vpack.c.bf16 %v2913, %v2912
    %v2923 = vpack.c.bf16 %v2915, %v2914
    %v2924 = vld [vmem:[#allocation10] sm:$0xf]
    %v2925 = vld [vmem:[#allocation10 + $0x4] sm:$0xf]
    %v2926 = vld [vmem:[#allocation10 + $0x8] sm:$0xf]
    %v2927 = vld [vmem:[#allocation10 + $0xc] sm:$0xf]
    %v2928 = vld [vmem:[#allocation10 + $0x10] sm:$0xf]
    %v2929 = vld [vmem:[#allocation10 + $0x14] sm:$0xf]
    %v2930 = vld [vmem:[#allocation10 + $0x18] sm:$0xf]
    %v2931 = vld [vmem:[#allocation10 + $0x1c] sm:$0xf]
    %v2932 = vld [vmem:[#allocation10 + $0x20] sm:$0xf]
    %v2933 = vld [vmem:[#allocation10 + $0x24] sm:$0xf]
    %v2934 = vld [vmem:[#allocation10 + $0x28] sm:$0xf]
    %v2935 = vld [vmem:[#allocation10 + $0x2c] sm:$0xf]
    %v2936 = vld [vmem:[#allocation10 + $0x30] sm:$0xf]
    %v2937 = vld [vmem:[#allocation10 + $0x34] sm:$0xf]
    %v2938 = vld [vmem:[#allocation10 + $0x38] sm:$0xf]
    %v2939 = vld [vmem:[#allocation10 + $0x3c] sm:$0xf]
    %v2940 = vld [vmem:[%s8] sm:$0x1]
    %v2942 = vperm.slane %v2940, 0
    %v2960 = vunpack.c.l.b16 %v2924
    %v2961 = vunpack.c.l.b16 %v2925
    %v2962 = vunpack.c.l.b16 %v2926
    %v2963 = vunpack.c.l.b16 %v2927
    %v2964 = vunpack.c.l.b16 %v2928
    %v2965 = vunpack.c.l.b16 %v2929
    %v2966 = vunpack.c.l.b16 %v2930
    %v2967 = vunpack.c.l.b16 %v2931
    %v2968 = vunpack.c.l.b16 %v2932
    %v2969 = vunpack.c.l.b16 %v2933
    %v2970 = vunpack.c.l.b16 %v2934
    %v2971 = vunpack.c.l.b16 %v2935
    %v2972 = vunpack.c.l.b16 %v2936
    %v2973 = vunpack.c.l.b16 %v2937
    %v2974 = vunpack.c.l.b16 %v2938
    %v2975 = vunpack.c.l.b16 %v2939
    %v2976 = vpack.c.b16 %v2961, %v2960
    %v2977 = vpack.c.b16 %v2963, %v2962
    %v2978 = vpack.c.b16 %v2965, %v2964
    %v2979 = vpack.c.b16 %v2967, %v2966
    %v2980 = vpack.c.b16 %v2969, %v2968
    %v2981 = vpack.c.b16 %v2971, %v2970
    %v2982 = vpack.c.b16 %v2973, %v2972
    %v2983 = vpack.c.b16 %v2975, %v2974
    %2992 = vmatpush.bf16.msra.mxu0 %v2983
    %2993 = vmatpush.bf16.msra.mxu0 %v2982
    %2994 = vmatpush.bf16.msra.mxu0 %v2981
    %2995 = vmatpush.bf16.msra.mxu0 %v2980
    %2996 = vmatpush.bf16.msra.mxu0 %v2979
    %2997 = vmatpush.bf16.msra.mxu0 %v2978
    %2998 = vmatpush.bf16.msra.mxu0 %v2977
    %2999 = vmatpush.bf16.msra.mxu0 %v2976
    %3000 = vmatmul.bf16.gmra.mxu0 %v179
    %v3001 = vpop.f32.mrf.mxu0
    %v3002 = vadd.f32 %v2942, %v3001
    %v3003 = vpop.f32.mrf.mxu0
    %v3004 = vadd.f32 %v2942, %v3003
    %3005 = vmatmul.bf16.gmra.mxu0 %v180
    %v3006 = vpop.f32.mrf.mxu0
    %v3007 = vadd.f32 %v2942, %v3006
    %v3008 = vpop.f32.mrf.mxu0
    %v3009 = vadd.f32 %v2942, %v3008
    %3010 = vmatmul.bf16.gmra.mxu0 %v181
    %v3011 = vpop.f32.mrf.mxu0
    %v3012 = vadd.f32 %v2942, %v3011
    %v3013 = vpop.f32.mrf.mxu0
    %v3014 = vadd.f32 %v2942, %v3013
    %3015 = vmatmul.bf16.gmra.mxu0 %v182
    %v3016 = vpop.f32.mrf.mxu0
    %v3017 = vadd.f32 %v2942, %v3016
    %v3018 = vpop.f32.mrf.mxu0
    %v3019 = vadd.f32 %v2942, %v3018
    %3020 = vmatmul.bf16.gmra.mxu0 %v183
    %v3021 = vpop.f32.mrf.mxu0
    %v3022 = vadd.f32 %v2942, %v3021
    %v3023 = vpop.f32.mrf.mxu0
    %v3024 = vadd.f32 %v2942, %v3023
    %3025 = vmatmul.bf16.gmra.mxu0 %v184
    %v3026 = vpop.f32.mrf.mxu0
    %v3027 = vadd.f32 %v2942, %v3026
    %v3028 = vpop.f32.mrf.mxu0
    %v3029 = vadd.f32 %v2942, %v3028
    %3030 = vmatmul.bf16.gmra.mxu0 %v185
    %v3031 = vpop.f32.mrf.mxu0
    %v3032 = vadd.f32 %v2942, %v3031
    %v3033 = vpop.f32.mrf.mxu0
    %v3034 = vadd.f32 %v2942, %v3033
    %3035 = vmatmul.bf16.gmra.mxu0 %v186
    %v3036 = vpop.f32.mrf.mxu0
    %v3037 = vadd.f32 %v2942, %v3036
    %v3038 = vpop.f32.mrf.mxu0
    %v3039 = vadd.f32 %v2942, %v3038
    %3040 = vdwg.mxu0
    %v3041 = vld [vmem:[#allocation8] sm:$0xf]
    %v3042 = vld [vmem:[#allocation8 + $0x4] sm:$0xf]
    %v3043 = vld [vmem:[#allocation8 + $0x8] sm:$0xf]
    %v3044 = vld [vmem:[#allocation8 + $0xc] sm:$0xf]
    %v3045 = vld [vmem:[#allocation8 + $0x10] sm:$0xf]
    %v3046 = vld [vmem:[#allocation8 + $0x14] sm:$0xf]
    %v3047 = vld [vmem:[#allocation8 + $0x18] sm:$0xf]
    %v3048 = vld [vmem:[#allocation8 + $0x1c] sm:$0xf]
    %v3049 = vld [vmem:[#allocation8 + $0x20] sm:$0xf]
    %v3050 = vld [vmem:[#allocation8 + $0x24] sm:$0xf]
    %v3051 = vld [vmem:[#allocation8 + $0x28] sm:$0xf]
    %v3052 = vld [vmem:[#allocation8 + $0x2c] sm:$0xf]
    %v3053 = vld [vmem:[#allocation8 + $0x30] sm:$0xf]
    %v3054 = vld [vmem:[#allocation8 + $0x34] sm:$0xf]
    %v3055 = vld [vmem:[#allocation8 + $0x38] sm:$0xf]
    %v3056 = vld [vmem:[#allocation8 + $0x3c] sm:$0xf]
    %v3057 = vld [vmem:[%s6] sm:$0x1]
    %v3059 = vperm.slane %v3057, 0
    %v3077 = vunpack.c.l.b16 %v3041
    %v3078 = vunpack.c.l.b16 %v3042
    %v3079 = vunpack.c.l.b16 %v3043
    %v3080 = vunpack.c.l.b16 %v3044
    %v3081 = vunpack.c.l.b16 %v3045
    %v3082 = vunpack.c.l.b16 %v3046
    %v3083 = vunpack.c.l.b16 %v3047
    %v3084 = vunpack.c.l.b16 %v3048
    %v3085 = vunpack.c.l.b16 %v3049
    %v3086 = vunpack.c.l.b16 %v3050
    %v3087 = vunpack.c.l.b16 %v3051
    %v3088 = vunpack.c.l.b16 %v3052
    %v3089 = vunpack.c.l.b16 %v3053
    %v3090 = vunpack.c.l.b16 %v3054
    %v3091 = vunpack.c.l.b16 %v3055
    %v3092 = vunpack.c.l.b16 %v3056
    %v3093 = vpack.c.b16 %v3078, %v3077
    %v3094 = vpack.c.b16 %v3080, %v3079
    %v3095 = vpack.c.b16 %v3082, %v3081
    %v3096 = vpack.c.b16 %v3084, %v3083
    %v3097 = vpack.c.b16 %v3086, %v3085
    %v3098 = vpack.c.b16 %v3088, %v3087
    %v3099 = vpack.c.b16 %v3090, %v3089
    %v3100 = vpack.c.b16 %v3092, %v3091
    %3109 = vmatpush.bf16.msra.mxu0 %v3100
    %3110 = vmatpush.bf16.msra.mxu0 %v3099
    %3111 = vmatpush.bf16.msra.mxu0 %v3098
    %3112 = vmatpush.bf16.msra.mxu0 %v3097
    %3113 = vmatpush.bf16.msra.mxu0 %v3096
    %3114 = vmatpush.bf16.msra.mxu0 %v3095
    %3115 = vmatpush.bf16.msra.mxu0 %v3094
    %3116 = vmatpush.bf16.msra.mxu0 %v3093
    %3117 = vmatmul.bf16.gmra.mxu0 %v2916
    %v3118 = vpop.f32.mrf.mxu0
    %v3119 = vadd.f32 %v3059, %v3118
    %v3120 = vpop.f32.mrf.mxu0
    %v3121 = vadd.f32 %v3059, %v3120
    %3122 = vmatmul.bf16.gmra.mxu0 %v2917
    %v3123 = vpop.f32.mrf.mxu0
    %v3124 = vadd.f32 %v3059, %v3123
    %v3125 = vpop.f32.mrf.mxu0
    %v3126 = vadd.f32 %v3059, %v3125
    %3127 = vmatmul.bf16.gmra.mxu0 %v2918
    %v3128 = vpop.f32.mrf.mxu0
    %v3129 = vadd.f32 %v3059, %v3128
    %v3130 = vpop.f32.mrf.mxu0
    %v3131 = vadd.f32 %v3059, %v3130
    %3132 = vmatmul.bf16.gmra.mxu0 %v2919
    %v3133 = vpop.f32.mrf.mxu0
    %v3134 = vadd.f32 %v3059, %v3133
    %v3135 = vpop.f32.mrf.mxu0
    %v3136 = vadd.f32 %v3059, %v3135
    %3137 = vmatmul.bf16.gmra.mxu0 %v2920
    %v3138 = vpop.f32.mrf.mxu0
    %v3139 = vadd.f32 %v3059, %v3138
    %v3140 = vpop.f32.mrf.mxu0
    %v3141 = vadd.f32 %v3059, %v3140
    %3142 = vmatmul.bf16.gmra.mxu0 %v2921
    %v3143 = vpop.f32.mrf.mxu0
    %v3144 = vadd.f32 %v3059, %v3143
    %v3145 = vpop.f32.mrf.mxu0
    %v3146 = vadd.f32 %v3059, %v3145
    %3147 = vmatmul.bf16.gmra.mxu0 %v2922
    %v3148 = vpop.f32.mrf.mxu0
    %v3149 = vadd.f32 %v3059, %v3148
    %v3150 = vpop.f32.mrf.mxu0
    %v3151 = vadd.f32 %v3059, %v3150
    %3152 = vmatmul.bf16.gmra.mxu0 %v2923
    %v3153 = vpop.f32.mrf.mxu0
    %v3154 = vadd.f32 %v3059, %v3153
    %v3155 = vpop.f32.mrf.mxu0
    %v3156 = vadd.f32 %v3059, %v3155
    %3157 = vdwg.mxu0
    %v3158 = vadd.f32 %v3119, %v3002
    %v3159 = vadd.f32 %v3121, %v3004
    %v3160 = vadd.f32 %v3124, %v3007
    %v3161 = vadd.f32 %v3126, %v3009
    %v3162 = vadd.f32 %v3129, %v3012
    %v3163 = vadd.f32 %v3131, %v3014
    %v3164 = vadd.f32 %v3134, %v3017
    %v3165 = vadd.f32 %v3136, %v3019
    %v3166 = vadd.f32 %v3139, %v3022
    %v3167 = vadd.f32 %v3141, %v3024
    %v3168 = vadd.f32 %v3144, %v3027
    %v3169 = vadd.f32 %v3146, %v3029
    %v3170 = vadd.f32 %v3149, %v3032
    %v3171 = vadd.f32 %v3151, %v3034
    %v3172 = vadd.f32 %v3154, %v3037
    %v3173 = vadd.f32 %v3156, %v3039
    %v3174 = vmax.f32 %v3158, 0.0
    %v3175 = vmax.f32 %v3159, 0.0
    %v3176 = vmax.f32 %v3160, 0.0
    %v3177 = vmax.f32 %v3161, 0.0
    %v3178 = vmax.f32 %v3162, 0.0
    %v3179 = vmax.f32 %v3163, 0.0
    %v3180 = vmax.f32 %v3164, 0.0
    %v3181 = vmax.f32 %v3165, 0.0
    %v3182 = vmax.f32 %v3166, 0.0
    %v3183 = vmax.f32 %v3167, 0.0
    %v3184 = vmax.f32 %v3168, 0.0
    %v3185 = vmax.f32 %v3169, 0.0
    %v3186 = vmax.f32 %v3170, 0.0
    %v3187 = vmax.f32 %v3171, 0.0
    %v3188 = vmax.f32 %v3172, 0.0
    %v3189 = vmax.f32 %v3173, 0.0
    %v3190 = vpack.c.bf16 %v3174, %v3174
    %v3191 = vpack.c.bf16 %v3175, %v3175
    %v3192 = vpack.c.bf16 %v3176, %v3176
    %v3193 = vpack.c.bf16 %v3177, %v3177
    %v3194 = vpack.c.bf16 %v3178, %v3178
    %v3195 = vpack.c.bf16 %v3179, %v3179
    %v3196 = vpack.c.bf16 %v3180, %v3180
    %v3197 = vpack.c.bf16 %v3181, %v3181
    %v3198 = vpack.c.bf16 %v3182, %v3182
    %v3199 = vpack.c.bf16 %v3183, %v3183
    %v3200 = vpack.c.bf16 %v3184, %v3184
    %v3201 = vpack.c.bf16 %v3185, %v3185
    %v3202 = vpack.c.bf16 %v3186, %v3186
    %v3203 = vpack.c.bf16 %v3187, %v3187
    %v3204 = vpack.c.bf16 %v3188, %v3188
    %v3205 = vpack.c.bf16 %v3189, %v3189
    %3206 = vst [vmem:[#allocation11] sm:$0xf] %v3190
    %3207 = vst [vmem:[#allocation11 + $0x4] sm:$0xf] %v3191
    %3208 = vst [vmem:[#allocation11 + $0x8] sm:$0xf] %v3192
    %3209 = vst [vmem:[#allocation11 + $0xc] sm:$0xf] %v3193
    %3210 = vst [vmem:[#allocation11 + $0x10] sm:$0xf] %v3194
    %3211 = vst [vmem:[#allocation11 + $0x14] sm:$0xf] %v3195
    %3212 = vst [vmem:[#allocation11 + $0x18] sm:$0xf] %v3196
    %3213 = vst [vmem:[#allocation11 + $0x1c] sm:$0xf] %v3197
    %3214 = vst [vmem:[#allocation11 + $0x20] sm:$0xf] %v3198
    %3215 = vst [vmem:[#allocation11 + $0x24] sm:$0xf] %v3199
    %3216 = vst [vmem:[#allocation11 + $0x28] sm:$0xf] %v3200
    %3217 = vst [vmem:[#allocation11 + $0x2c] sm:$0xf] %v3201
    %3218 = vst [vmem:[#allocation11 + $0x30] sm:$0xf] %v3202
    %3219 = vst [vmem:[#allocation11 + $0x34] sm:$0xf] %v3203
    %3220 = vst [vmem:[#allocation11 + $0x38] sm:$0xf] %v3204
    %3221 = vst [vmem:[#allocation11 + $0x3c] sm:$0xf] %v3205
    // Predicated region
    $region58: #{tpu_custom_call.1} parent=1 // pred_check
      _
    $region59: #{tpu_custom_call.1} parent=1 // pred_check_branch
      %3223 = sbr.rel (0) target = $region61
    $region60: #{tpu_custom_call.1} parent=1 // pred_region
      %3225 = vsyncadd [#allocation4], 0
      %s3226 = sshll.u32 [#allocation11], 4
      %s3227 = int_to_ptr.vmem [resolvable:$true] %s3226
      %s3228 = sshll.u32 %s9, 4
      %s3229 = int_to_ptr.hbm [resolvable:$true] %s3228
      %3234 = dma.vmem_to_hbm [thread:$0]  %s3227, 1024, %s3229, [#allocation4], 64, 64, 4
    $region61: #{tpu_custom_call.1} parent=1 // pred_fallthru
      _
    // Predicated region
    $region62: #{tpu_custom_call.1} parent=1 // pred_check
      _
    $region63: #{tpu_custom_call.1} parent=1 // pred_check_branch
      %3236 = sbr.rel (0) target = $region65
    $region64: #{tpu_custom_call.1} parent=1 // pred_region
      %3238 = dma.done [#allocation4], 1024
    $region65: #{tpu_custom_call.1} parent=1 // pred_fallthru
      _
    %3239 = vsyncpa [#allocation3], 1
    %3240 = vsyncpa [#allocation6], 1
    %3241 = vsyncpa [#allocation9], 1
    %3242 = vsyncpa [#allocation4], 1

</llo_original>
